<compile_context>
chip_gen: v7x
topology: tpu7x:2x2x1
jax: 0.10.0
libtpu: 0.0.40
codegen_flags: <defaults>
</compile_context>

<pallas_src>
import functools

import jax
import jax.numpy as jnp
from jax.experimental import pallas as pl
from jax.experimental.pallas import tpu as pltpu


# ----------------------------------------------------------------------------
# Fused Key+Value 3x3 conv kernel (same padding, stride 1).
# ----------------------------------------------------------------------------
def _make_keyvalue_kernel(TH, W, Cin, keydim, valdim):
    Ctot = keydim + valdim
    Wp = W + 2                 # padded width
    ROWS = TH * Wp             # rows of the flat accumulator (incl. 2 junk cols/row)

    def kernel(x_ref, top_ref, bot_ref, w_ref, b_ref, key_ref, val_ref, xpad_ref):
        r = pl.program_id(1)
        n_r = pl.num_programs(1)

        # ---- build the zero-padded tile in the flat bf16 VMEM scratch -------
        xpad_ref[...] = jnp.zeros_like(xpad_ref)

        xt = x_ref[0].astype(jnp.bfloat16)              # (TH, W, Cin)
        for h in range(TH):                             # interior rows
            xpad_ref[pl.ds((h + 1) * Wp + 1, W), :] = xt[h]

        @pl.when(r > 0)                                 # top halo row
        def _():
            xpad_ref[pl.ds(1, W), :] = top_ref[0, 0].astype(jnp.bfloat16)

        @pl.when(r < n_r - 1)                           # bottom halo row
        def _():
            xpad_ref[pl.ds((TH + 1) * Wp + 1, W), :] = (
                bot_ref[0, 0].astype(jnp.bfloat16))

        # ---- 9 accumulated MXU matmuls over contiguous flat slices ----------
        acc = jnp.zeros((ROWS, Ctot), jnp.float32)
        for ky in range(3):
            for kx in range(3):
                off = ky * Wp + kx
                patch = xpad_ref[pl.ds(off, ROWS), :]   # (ROWS, Cin) bf16, copy-free
                acc = acc + jnp.dot(patch, w_ref[ky, kx],
                                    preferred_element_type=jnp.float32)
        acc = acc + b_ref[...]                          # (1, Ctot) broadcast

        out = acc.reshape(TH, Wp, Ctot)[:, :W, :]       # crop 2 wrap-around cols
        key_ref[0] = out[:, :, :keydim]
        val_ref[0] = out[:, :, keydim:]

    return kernel


def _pick_row_tile(H, W, Cin, Ctot, budget_bytes=8 * 1024 * 1024):
    """Largest divisor of H fitting the per-step VMEM budget (kept modest so
    double-buffering stays well inside v7x's 64 MiB)."""
    Wp = W + 2

    def step_bytes(th):
        x_tile = th * W * Cin * 4
        halos = 2 * W * Cin * 4
        outs = th * W * Ctot * 4
        scratch = (th + 3) * Wp * Cin * 2
        acc = th * Wp * Ctot * 4
        return 2 * (x_tile + halos + outs) + scratch + acc

    cap = min(128, max(8, H // 2))     # keep >= 2 row tiles when H >= 16
    best = 1
    for th in range(1, H + 1):
        if H % th == 0 and th <= cap and step_bytes(th) <= budget_bytes:
            best = th
    return best


def _vmem_limit_bytes(TH, W, Cin, keydim, valdim):
    Wp = W + 2
    Ctot = keydim + valdim
    weights = 9 * Cin * Ctot * 2 + Ctot * 4
    step = (2 * (TH * W * Cin + 2 * W * Cin + TH * W * Ctot) * 4
            + 2 * weights
            + (TH + 3) * Wp * Cin * 2
            + 2 * TH * Wp * Ctot * 4)
    return int(min(100 * 2**20, max(32 * 2**20, 4 * step)))


def key_value_nhwc(x, key_w, key_b, val_w, val_b, *, row_tile=None):
    """x: (N,H,W,Cin) f32; weights HWIO (3,3,Cin,Cout). Returns (key, value) NHWC f32."""
    N, H, W, Cin = x.shape
    keydim = key_w.shape[-1]
    valdim = val_w.shape[-1]
    Ctot = keydim + valdim

    # Concatenate Key/Value weights along Cout; bf16 operands, f32 accumulation.
    w = jnp.concatenate([key_w, val_w], axis=-1).astype(jnp.bfloat16)
    b = jnp.concatenate([key_b, val_b], axis=0).astype(jnp.float32).reshape(1, Ctot)

    TH = _pick_row_tile(H, W, Cin, Ctot) if row_tile is None else int(row_tile)
    if H % TH != 0:
        raise ValueError(f"row_tile {TH} must divide H={H}")
    nR = H // TH
    Wp = W + 2

    kernel = _make_keyvalue_kernel(TH, W, Cin, keydim, valdim)

    in_specs = [
        # main row tile
        pl.BlockSpec((1, TH, W, Cin), lambda n, r: (n, r, 0, 0)),
        # single-row halo views (clamped at the image edges; masked in-kernel)
        pl.BlockSpec((1, 1, W, Cin),
                     lambda n, r: (n, jnp.maximum(r * TH - 1, 0), 0, 0)),
        pl.BlockSpec((1, 1, W, Cin),
                     lambda n, r: (n, jnp.minimum(r * TH + TH, H - 1), 0, 0)),
        # fused weights / bias (constant block index -> fetched once)
        pl.BlockSpec((3, 3, Cin, Ctot), lambda n, r: (0, 0, 0, 0)),
        pl.BlockSpec((1, Ctot), lambda n, r: (0, 0)),
    ]
    out_specs = (
        pl.BlockSpec((1, TH, W, keydim), lambda n, r: (n, r, 0, 0)),
        pl.BlockSpec((1, TH, W, valdim), lambda n, r: (n, r, 0, 0)),
    )
    out_shape = (
        jax.ShapeDtypeStruct((N, H, W, keydim), jnp.float32),
        jax.ShapeDtypeStruct((N, H, W, valdim), jnp.float32),
    )

    return pl.pallas_call(
        kernel,
        out_shape=out_shape,
        grid_spec=pltpu.PrefetchScalarGridSpec(
            num_scalar_prefetch=0,
            grid=(N, nR),
            in_specs=in_specs,
            out_specs=out_specs,
            scratch_shapes=[pltpu.VMEM(((TH + 3) * Wp, Cin), jnp.bfloat16)],
        ),
        compiler_params=pltpu.CompilerParams(
            dimension_semantics=("parallel", "parallel"),
            vmem_limit_bytes=_vmem_limit_bytes(TH, W, Cin, keydim, valdim),
        ),
    )(x, x, x, w, b)


# ----------------------------------------------------------------------------
# Module-level port (PyTorch NCHW in / out).
# ----------------------------------------------------------------------------
def key_value_forward(x_nchw, params, *, row_tile=None):
    """Exact port of KeyValue.forward: returns (Key(x), Value(x)), both NCHW."""
    x = jnp.transpose(x_nchw, (0, 2, 3, 1)).astype(jnp.float32)
    k, v = key_value_nhwc(x, params["key_w"], params["key_b"],
                          params["val_w"], params["val_b"], row_tile=row_tile)
    return jnp.transpose(k, (0, 3, 1, 2)), jnp.transpose(v, (0, 3, 1, 2))


def init_key_value_params(key, indim, keydim, valdim):
    k1, k2, k3, k4 = jax.random.split(key, 4)

    def conv_init(kw, kb, cin, cout, scale=0.1):
        w = scale * jax.random.normal(kw, (3, 3, cin, cout), jnp.float32)
        b = 0.01 * jax.random.normal(kb, (cout,), jnp.float32)
        return w, b

    key_w, key_b = conv_init(k1, k2, indim, keydim)
    val_w, val_b = conv_init(k3, k4, indim, valdim)
    return {"key_w": key_w, "key_b": key_b, "val_w": val_w, "val_b": val_b}


def key_value_reference(x_nchw, params):
    """Plain-JAX reference (f32) for numerical validation."""
    x = jnp.transpose(x_nchw, (0, 2, 3, 1)).astype(jnp.float32)

    def conv(w, b):
        y = jax.lax.conv_general_dilated(
            x, w, window_strides=(1, 1), padding="SAME",
            dimension_numbers=("NHWC", "HWIO", "NHWC"))
        return y + b

    k = conv(params["key_w"], params["key_b"])
    v = conv(params["val_w"], params["val_b"])
    return jnp.transpose(k, (0, 3, 1, 2)), jnp.transpose(v, (0, 3, 1, 2))


if __name__ == "__main__":
    key = jax.random.PRNGKey(0)
    k_x, k_p = jax.random.split(key)

    N, indim, keydim, valdim = 2, 8, 4, 8
    H, W = 16, 16

    x = jax.random.normal(k_x, (N, indim, H, W), jnp.float32)      # NCHW
    params = init_key_value_params(k_p, indim, keydim, valdim)

    fwd = jax.jit(functools.partial(key_value_forward, params=params, row_tile=8))
    k_out, v_out = fwd(x)
    jax.block_until_ready((k_out, v_out))
    assert k_out.shape == (N, keydim, H, W)
    assert v_out.shape == (N, valdim, H, W)

    # Validate against a plain-JAX conv reference (bf16 MXU operands with f32
    # accumulation -> small expected deviation).
    k_ref, v_ref = key_value_reference(x, params)
    err = max(float(jnp.max(jnp.abs(k_out - k_ref))),
              float(jnp.max(jnp.abs(v_out - v_ref))))
    assert err < 5e-2, f"max abs error {err}"

    print("KERNEL_OK")
</pallas_src>

<mosaic_0001>
module attributes {stable_mosaic.version = 11 : i64} {
  func.func @kernel(%arg0: i32, %arg1: i32, %arg2: memref<1x8x16x8xf32, #tpu.memory_space<vmem>>, %arg3: memref<1x1x16x8xf32, #tpu.memory_space<vmem>>, %arg4: memref<1x1x16x8xf32, #tpu.memory_space<vmem>>, %arg5: memref<3x3x8x12xbf16, #tpu.memory_space<vmem>>, %arg6: memref<1x12xf32, #tpu.memory_space<vmem>>, %arg7: memref<1x8x16x4xf32, #tpu.memory_space<vmem>>, %arg8: memref<1x8x16x8xf32, #tpu.memory_space<vmem>>, %arg9: memref<198x8xbf16, #tpu.memory_space<vmem>>) attributes {dimension_semantics = [#tpu.dimension_semantics<parallel>, #tpu.dimension_semantics<parallel>], iteration_bounds = array<i64: 2, 2>, scalar_prefetch = 0 : i64, scratch_operands = 1 : i64, tpu.core_type = #tpu.core_type<tc>, window_params = [{transform_indices = @transform_0, window_bounds = array<i64: 1, 8, 16, 8>}, {transform_indices = @transform_1, window_bounds = array<i64: 1, 1, 16, 8>}, {transform_indices = @transform_2, window_bounds = array<i64: 1, 1, 16, 8>}, {pipeline_mode = #tpu.pipeline_mode<synchronous>, transform_indices = @transform_3, window_bounds = array<i64: 3, 3, 8, 12>}, {pipeline_mode = #tpu.pipeline_mode<synchronous>, transform_indices = @transform_4, window_bounds = array<i64: 1, 12>}, {transform_indices = @transform_5, window_bounds = array<i64: 1, 8, 16, 4>}, {transform_indices = @transform_6, window_bounds = array<i64: 1, 8, 16, 8>}]} {
    %cst = arith.constant 0.000000e+00 : bf16
    %0 = vector.broadcast %cst : bf16 to vector<198x8xbf16>
    %c0 = arith.constant 0 : index
    %c0_0 = arith.constant 0 : index
    %1 = vector.load %arg9[%c0, %c0_0] : memref<198x8xbf16, #tpu.memory_space<vmem>>, vector<198x8xbf16>
    tpu.vector_store %arg9[%c0, %c0_0], %0 {strides = array<i32>} : memref<198x8xbf16, #tpu.memory_space<vmem>>, vector<198x8xbf16>,
    %c0_1 = arith.constant 0 : index
    %c0_2 = arith.constant 0 : index
    %c0_3 = arith.constant 0 : index
    %c0_4 = arith.constant 0 : index
    %2 = vector.load %arg2[%c0_1, %c0_2, %c0_3, %c0_4] : memref<1x8x16x8xf32, #tpu.memory_space<vmem>>, vector<1x8x16x8xf32>
    %3 = vector.shape_cast %2 : vector<1x8x16x8xf32> to vector<8x16x8xf32>
    %4 = arith.truncf %3 : vector<8x16x8xf32> to vector<8x16x8xbf16>
    %5 = vector.extract_strided_slice %4 {offsets = [0, 0, 0], sizes = [1, 16, 8], strides = [1, 1, 1]} : vector<8x16x8xbf16> to vector<1x16x8xbf16>
    %6 = vector.shape_cast %5 : vector<1x16x8xbf16> to vector<16x8xbf16>
    %c19 = arith.constant 19 : index
    %c0_5 = arith.constant 0 : index
    %7 = vector.load %arg9[%c19, %c0_5] : memref<198x8xbf16, #tpu.memory_space<vmem>>, vector<16x8xbf16>
    tpu.vector_store %arg9[%c19, %c0_5], %6 {strides = array<i32>} : memref<198x8xbf16, #tpu.memory_space<vmem>>, vector<16x8xbf16>,
    %8 = vector.extract_strided_slice %4 {offsets = [1, 0, 0], sizes = [1, 16, 8], strides = [1, 1, 1]} : vector<8x16x8xbf16> to vector<1x16x8xbf16>
    %9 = vector.shape_cast %8 : vector<1x16x8xbf16> to vector<16x8xbf16>
    %c37 = arith.constant 37 : index
    %c0_6 = arith.constant 0 : index
    %10 = vector.load %arg9[%c37, %c0_6] : memref<198x8xbf16, #tpu.memory_space<vmem>>, vector<16x8xbf16>
    tpu.vector_store %arg9[%c37, %c0_6], %9 {strides = array<i32>} : memref<198x8xbf16, #tpu.memory_space<vmem>>, vector<16x8xbf16>,
    %11 = vector.extract_strided_slice %4 {offsets = [2, 0, 0], sizes = [1, 16, 8], strides = [1, 1, 1]} : vector<8x16x8xbf16> to vector<1x16x8xbf16>
    %12 = vector.shape_cast %11 : vector<1x16x8xbf16> to vector<16x8xbf16>
    %c55 = arith.constant 55 : index
    %c0_7 = arith.constant 0 : index
    %13 = vector.load %arg9[%c55, %c0_7] : memref<198x8xbf16, #tpu.memory_space<vmem>>, vector<16x8xbf16>
    tpu.vector_store %arg9[%c55, %c0_7], %12 {strides = array<i32>} : memref<198x8xbf16, #tpu.memory_space<vmem>>, vector<16x8xbf16>,
    %14 = vector.extract_strided_slice %4 {offsets = [3, 0, 0], sizes = [1, 16, 8], strides = [1, 1, 1]} : vector<8x16x8xbf16> to vector<1x16x8xbf16>
    %15 = vector.shape_cast %14 : vector<1x16x8xbf16> to vector<16x8xbf16>
    %c73 = arith.constant 73 : index
    %c0_8 = arith.constant 0 : index
    %16 = vector.load %arg9[%c73, %c0_8] : memref<198x8xbf16, #tpu.memory_space<vmem>>, vector<16x8xbf16>
    tpu.vector_store %arg9[%c73, %c0_8], %15 {strides = array<i32>} : memref<198x8xbf16, #tpu.memory_space<vmem>>, vector<16x8xbf16>,
    %17 = vector.extract_strided_slice %4 {offsets = [4, 0, 0], sizes = [1, 16, 8], strides = [1, 1, 1]} : vector<8x16x8xbf16> to vector<1x16x8xbf16>
    %18 = vector.shape_cast %17 : vector<1x16x8xbf16> to vector<16x8xbf16>
    %c91 = arith.constant 91 : index
    %c0_9 = arith.constant 0 : index
    %19 = vector.load %arg9[%c91, %c0_9] : memref<198x8xbf16, #tpu.memory_space<vmem>>, vector<16x8xbf16>
    tpu.vector_store %arg9[%c91, %c0_9], %18 {strides = array<i32>} : memref<198x8xbf16, #tpu.memory_space<vmem>>, vector<16x8xbf16>,
    %20 = vector.extract_strided_slice %4 {offsets = [5, 0, 0], sizes = [1, 16, 8], strides = [1, 1, 1]} : vector<8x16x8xbf16> to vector<1x16x8xbf16>
    %21 = vector.shape_cast %20 : vector<1x16x8xbf16> to vector<16x8xbf16>
    %c109 = arith.constant 109 : index
    %c0_10 = arith.constant 0 : index
    %22 = vector.load %arg9[%c109, %c0_10] : memref<198x8xbf16, #tpu.memory_space<vmem>>, vector<16x8xbf16>
    tpu.vector_store %arg9[%c109, %c0_10], %21 {strides = array<i32>} : memref<198x8xbf16, #tpu.memory_space<vmem>>, vector<16x8xbf16>,
    %23 = vector.extract_strided_slice %4 {offsets = [6, 0, 0], sizes = [1, 16, 8], strides = [1, 1, 1]} : vector<8x16x8xbf16> to vector<1x16x8xbf16>
    %24 = vector.shape_cast %23 : vector<1x16x8xbf16> to vector<16x8xbf16>
    %c127 = arith.constant 127 : index
    %c0_11 = arith.constant 0 : index
    %25 = vector.load %arg9[%c127, %c0_11] : memref<198x8xbf16, #tpu.memory_space<vmem>>, vector<16x8xbf16>
    tpu.vector_store %arg9[%c127, %c0_11], %24 {strides = array<i32>} : memref<198x8xbf16, #tpu.memory_space<vmem>>, vector<16x8xbf16>,
    %26 = vector.extract_strided_slice %4 {offsets = [7, 0, 0], sizes = [1, 16, 8], strides = [1, 1, 1]} : vector<8x16x8xbf16> to vector<1x16x8xbf16>
    %27 = vector.shape_cast %26 : vector<1x16x8xbf16> to vector<16x8xbf16>
    %c145 = arith.constant 145 : index
    %c0_12 = arith.constant 0 : index
    %28 = vector.load %arg9[%c145, %c0_12] : memref<198x8xbf16, #tpu.memory_space<vmem>>, vector<16x8xbf16>
    tpu.vector_store %arg9[%c145, %c0_12], %27 {strides = array<i32>} : memref<198x8xbf16, #tpu.memory_space<vmem>>, vector<16x8xbf16>,
    %c0_i32 = arith.constant 0 : i32
    %29 = arith.cmpi sgt, %arg1, %c0_i32 : i32
    %30 = arith.extui %29 : i1 to i32
    %c0_i32_13 = arith.constant 0 : i32
    %31 = arith.cmpi ne, %30, %c0_i32_13 : i32
    scf.if %31 {
      %c0_83 = arith.constant 0 : index
      %c0_84 = arith.constant 0 : index
      %c0_85 = arith.constant 0 : index
      %c0_86 = arith.constant 0 : index
      %94 = vector.load %arg3[%c0_83, %c0_84, %c0_85, %c0_86] : memref<1x1x16x8xf32, #tpu.memory_space<vmem>>, vector<1x1x16x8xf32>
      %95 = vector.shape_cast %94 : vector<1x1x16x8xf32> to vector<16x8xf32>
      %96 = arith.truncf %95 : vector<16x8xf32> to vector<16x8xbf16>
      %c1_87 = arith.constant 1 : index
      %c0_88 = arith.constant 0 : index
      %97 = vector.load %arg9[%c1_87, %c0_88] : memref<198x8xbf16, #tpu.memory_space<vmem>>, vector<16x8xbf16>
      tpu.vector_store %arg9[%c1_87, %c0_88], %96 {strides = array<i32>} : memref<198x8xbf16, #tpu.memory_space<vmem>>, vector<16x8xbf16>,
    } else {
    }
    %c1_i32 = arith.constant 1 : i32
    %32 = arith.cmpi slt, %arg1, %c1_i32 : i32
    %33 = arith.extui %32 : i1 to i32
    %c0_i32_14 = arith.constant 0 : i32
    %34 = arith.cmpi ne, %33, %c0_i32_14 : i32
    scf.if %34 {
      %c0_83 = arith.constant 0 : index
      %c0_84 = arith.constant 0 : index
      %c0_85 = arith.constant 0 : index
      %c0_86 = arith.constant 0 : index
      %94 = vector.load %arg4[%c0_83, %c0_84, %c0_85, %c0_86] : memref<1x1x16x8xf32, #tpu.memory_space<vmem>>, vector<1x1x16x8xf32>
      %95 = vector.shape_cast %94 : vector<1x1x16x8xf32> to vector<16x8xf32>
      %96 = arith.truncf %95 : vector<16x8xf32> to vector<16x8xbf16>
      %c163 = arith.constant 163 : index
      %c0_87 = arith.constant 0 : index
      %97 = vector.load %arg9[%c163, %c0_87] : memref<198x8xbf16, #tpu.memory_space<vmem>>, vector<16x8xbf16>
      tpu.vector_store %arg9[%c163, %c0_87], %96 {strides = array<i32>} : memref<198x8xbf16, #tpu.memory_space<vmem>>, vector<16x8xbf16>,
    } else {
    }
    %cst_15 = arith.constant 0.000000e+00 : f32
    %35 = vector.broadcast %cst_15 : f32 to vector<144x12xf32>
    %c0_16 = arith.constant 0 : index
    %c0_17 = arith.constant 0 : index
    %36 = vector.load %arg9[%c0_16, %c0_17] : memref<198x8xbf16, #tpu.memory_space<vmem>>, vector<144x8xbf16>
    %c0_18 = arith.constant 0 : index
    %c0_19 = arith.constant 0 : index
    %c0_20 = arith.constant 0 : index
    %c0_21 = arith.constant 0 : index
    %37 = vector.load %arg5[%c0_18, %c0_19, %c0_20, %c0_21] : memref<3x3x8x12xbf16, #tpu.memory_space<vmem>>, vector<1x1x8x12xbf16>
    %38 = vector.shape_cast %37 : vector<1x1x8x12xbf16> to vector<8x12xbf16>
    %cst_22 = arith.constant dense<0.000000e+00> : vector<144x12xf32>
    %39 = tpu.matmul %36, %38, %cst_22 {dimension_numbers = #tpu.dot_dimension_numbers<[1], [0], [0], [1], [0, 0, 1, 1], [], []>} : vector<144x8xbf16>, vector<8x12xbf16>, vector<144x12xf32> -> vector<144x12xf32>
    %40 = arith.addf %35, %39 : vector<144x12xf32>
    %c1 = arith.constant 1 : index
    %c0_23 = arith.constant 0 : index
    %41 = vector.load %arg9[%c1, %c0_23] : memref<198x8xbf16, #tpu.memory_space<vmem>>, vector<144x8xbf16>
    %c0_24 = arith.constant 0 : index
    %c1_25 = arith.constant 1 : index
    %c0_26 = arith.constant 0 : index
    %c0_27 = arith.constant 0 : index
    %42 = vector.load %arg5[%c0_24, %c1_25, %c0_26, %c0_27] : memref<3x3x8x12xbf16, #tpu.memory_space<vmem>>, vector<1x1x8x12xbf16>
    %43 = vector.shape_cast %42 : vector<1x1x8x12xbf16> to vector<8x12xbf16>
    %cst_28 = arith.constant dense<0.000000e+00> : vector<144x12xf32>
    %44 = tpu.matmul %41, %43, %cst_28 {dimension_numbers = #tpu.dot_dimension_numbers<[1], [0], [0], [1], [0, 0, 1, 1], [], []>} : vector<144x8xbf16>, vector<8x12xbf16>, vector<144x12xf32> -> vector<144x12xf32>
    %45 = arith.addf %40, %44 : vector<144x12xf32>
    %c2 = arith.constant 2 : index
    %c0_29 = arith.constant 0 : index
    %46 = vector.load %arg9[%c2, %c0_29] : memref<198x8xbf16, #tpu.memory_space<vmem>>, vector<144x8xbf16>
    %c0_30 = arith.constant 0 : index
    %c2_31 = arith.constant 2 : index
    %c0_32 = arith.constant 0 : index
    %c0_33 = arith.constant 0 : index
    %47 = vector.load %arg5[%c0_30, %c2_31, %c0_32, %c0_33] : memref<3x3x8x12xbf16, #tpu.memory_space<vmem>>, vector<1x1x8x12xbf16>
    %48 = vector.shape_cast %47 : vector<1x1x8x12xbf16> to vector<8x12xbf16>
    %cst_34 = arith.constant dense<0.000000e+00> : vector<144x12xf32>
    %49 = tpu.matmul %46, %48, %cst_34 {dimension_numbers = #tpu.dot_dimension_numbers<[1], [0], [0], [1], [0, 0, 1, 1], [], []>} : vector<144x8xbf16>, vector<8x12xbf16>, vector<144x12xf32> -> vector<144x12xf32>
    %50 = arith.addf %45, %49 : vector<144x12xf32>
    %c18 = arith.constant 18 : index
    %c0_35 = arith.constant 0 : index
    %51 = vector.load %arg9[%c18, %c0_35] : memref<198x8xbf16, #tpu.memory_space<vmem>>, vector<144x8xbf16>
    %c1_36 = arith.constant 1 : index
    %c0_37 = arith.constant 0 : index
    %c0_38 = arith.constant 0 : index
    %c0_39 = arith.constant 0 : index
    %52 = vector.load %arg5[%c1_36, %c0_37, %c0_38, %c0_39] : memref<3x3x8x12xbf16, #tpu.memory_space<vmem>>, vector<1x1x8x12xbf16>
    %53 = vector.shape_cast %52 : vector<1x1x8x12xbf16> to vector<8x12xbf16>
    %cst_40 = arith.constant dense<0.000000e+00> : vector<144x12xf32>
    %54 = tpu.matmul %51, %53, %cst_40 {dimension_numbers = #tpu.dot_dimension_numbers<[1], [0], [0], [1], [0, 0, 1, 1], [], []>} : vector<144x8xbf16>, vector<8x12xbf16>, vector<144x12xf32> -> vector<144x12xf32>
    %55 = arith.addf %50, %54 : vector<144x12xf32>
    %c19_41 = arith.constant 19 : index
    %c0_42 = arith.constant 0 : index
    %56 = vector.load %arg9[%c19_41, %c0_42] : memref<198x8xbf16, #tpu.memory_space<vmem>>, vector<144x8xbf16>
    %c1_43 = arith.constant 1 : index
    %c1_44 = arith.constant 1 : index
    %c0_45 = arith.constant 0 : index
    %c0_46 = arith.constant 0 : index
    %57 = vector.load %arg5[%c1_43, %c1_44, %c0_45, %c0_46] : memref<3x3x8x12xbf16, #tpu.memory_space<vmem>>, vector<1x1x8x12xbf16>
    %58 = vector.shape_cast %57 : vector<1x1x8x12xbf16> to vector<8x12xbf16>
    %cst_47 = arith.constant dense<0.000000e+00> : vector<144x12xf32>
    %59 = tpu.matmul %56, %58, %cst_47 {dimension_numbers = #tpu.dot_dimension_numbers<[1], [0], [0], [1], [0, 0, 1, 1], [], []>} : vector<144x8xbf16>, vector<8x12xbf16>, vector<144x12xf32> -> vector<144x12xf32>
    %60 = arith.addf %55, %59 : vector<144x12xf32>
    %c20 = arith.constant 20 : index
    %c0_48 = arith.constant 0 : index
    %61 = vector.load %arg9[%c20, %c0_48] : memref<198x8xbf16, #tpu.memory_space<vmem>>, vector<144x8xbf16>
    %c1_49 = arith.constant 1 : index
    %c2_50 = arith.constant 2 : index
    %c0_51 = arith.constant 0 : index
    %c0_52 = arith.constant 0 : index
    %62 = vector.load %arg5[%c1_49, %c2_50, %c0_51, %c0_52] : memref<3x3x8x12xbf16, #tpu.memory_space<vmem>>, vector<1x1x8x12xbf16>
    %63 = vector.shape_cast %62 : vector<1x1x8x12xbf16> to vector<8x12xbf16>
    %cst_53 = arith.constant dense<0.000000e+00> : vector<144x12xf32>
    %64 = tpu.matmul %61, %63, %cst_53 {dimension_numbers = #tpu.dot_dimension_numbers<[1], [0], [0], [1], [0, 0, 1, 1], [], []>} : vector<144x8xbf16>, vector<8x12xbf16>, vector<144x12xf32> -> vector<144x12xf32>
    %65 = arith.addf %60, %64 : vector<144x12xf32>
    %c36 = arith.constant 36 : index
    %c0_54 = arith.constant 0 : index
    %66 = vector.load %arg9[%c36, %c0_54] : memref<198x8xbf16, #tpu.memory_space<vmem>>, vector<144x8xbf16>
    %c2_55 = arith.constant 2 : index
    %c0_56 = arith.constant 0 : index
    %c0_57 = arith.constant 0 : index
    %c0_58 = arith.constant 0 : index
    %67 = vector.load %arg5[%c2_55, %c0_56, %c0_57, %c0_58] : memref<3x3x8x12xbf16, #tpu.memory_space<vmem>>, vector<1x1x8x12xbf16>
    %68 = vector.shape_cast %67 : vector<1x1x8x12xbf16> to vector<8x12xbf16>
    %cst_59 = arith.constant dense<0.000000e+00> : vector<144x12xf32>
    %69 = tpu.matmul %66, %68, %cst_59 {dimension_numbers = #tpu.dot_dimension_numbers<[1], [0], [0], [1], [0, 0, 1, 1], [], []>} : vector<144x8xbf16>, vector<8x12xbf16>, vector<144x12xf32> -> vector<144x12xf32>
    %70 = arith.addf %65, %69 : vector<144x12xf32>
    %c37_60 = arith.constant 37 : index
    %c0_61 = arith.constant 0 : index
    %71 = vector.load %arg9[%c37_60, %c0_61] : memref<198x8xbf16, #tpu.memory_space<vmem>>, vector<144x8xbf16>
    %c2_62 = arith.constant 2 : index
    %c1_63 = arith.constant 1 : index
    %c0_64 = arith.constant 0 : index
    %c0_65 = arith.constant 0 : index
    %72 = vector.load %arg5[%c2_62, %c1_63, %c0_64, %c0_65] : memref<3x3x8x12xbf16, #tpu.memory_space<vmem>>, vector<1x1x8x12xbf16>
    %73 = vector.shape_cast %72 : vector<1x1x8x12xbf16> to vector<8x12xbf16>
    %cst_66 = arith.constant dense<0.000000e+00> : vector<144x12xf32>
    %74 = tpu.matmul %71, %73, %cst_66 {dimension_numbers = #tpu.dot_dimension_numbers<[1], [0], [0], [1], [0, 0, 1, 1], [], []>} : vector<144x8xbf16>, vector<8x12xbf16>, vector<144x12xf32> -> vector<144x12xf32>
    %75 = arith.addf %70, %74 : vector<144x12xf32>
    %c38 = arith.constant 38 : index
    %c0_67 = arith.constant 0 : index
    %76 = vector.load %arg9[%c38, %c0_67] : memref<198x8xbf16, #tpu.memory_space<vmem>>, vector<144x8xbf16>
    %c2_68 = arith.constant 2 : index
    %c2_69 = arith.constant 2 : index
    %c0_70 = arith.constant 0 : index
    %c0_71 = arith.constant 0 : index
    %77 = vector.load %arg5[%c2_68, %c2_69, %c0_70, %c0_71] : memref<3x3x8x12xbf16, #tpu.memory_space<vmem>>, vector<1x1x8x12xbf16>
    %78 = vector.shape_cast %77 : vector<1x1x8x12xbf16> to vector<8x12xbf16>
    %cst_72 = arith.constant dense<0.000000e+00> : vector<144x12xf32>
    %79 = tpu.matmul %76, %78, %cst_72 {dimension_numbers = #tpu.dot_dimension_numbers<[1], [0], [0], [1], [0, 0, 1, 1], [], []>} : vector<144x8xbf16>, vector<8x12xbf16>, vector<144x12xf32> -> vector<144x12xf32>
    %80 = arith.addf %75, %79 : vector<144x12xf32>
    %c0_73 = arith.constant 0 : index
    %c0_74 = arith.constant 0 : index
    %81 = vector.load %arg6[%c0_73, %c0_74] : memref<1x12xf32, #tpu.memory_space<vmem>>, vector<1x12xf32>
    %82 = vector.broadcast %81 : vector<1x12xf32> to vector<144x12xf32>
    %83 = arith.addf %80, %82 : vector<144x12xf32>
    %84 = vector.shape_cast %83 : vector<144x12xf32> to vector<8x18x12xf32>
    %85 = vector.extract_strided_slice %84 {offsets = [0, 0, 0], sizes = [8, 16, 12], strides = [1, 1, 1]} : vector<8x18x12xf32> to vector<8x16x12xf32>
    %86 = vector.extract_strided_slice %85 {offsets = [0, 0, 0], sizes = [8, 16, 4], strides = [1, 1, 1]} : vector<8x16x12xf32> to vector<8x16x4xf32>
    %c0_75 = arith.constant 0 : index
    %c0_76 = arith.constant 0 : index
    %c0_77 = arith.constant 0 : index
    %c0_78 = arith.constant 0 : index
    %87 = vector.load %arg7[%c0_75, %c0_76, %c0_77, %c0_78] : memref<1x8x16x4xf32, #tpu.memory_space<vmem>>, vector<1x8x16x4xf32>
    %88 = vector.shape_cast %87 : vector<1x8x16x4xf32> to vector<8x16x4xf32>
    %89 = vector.shape_cast %86 : vector<8x16x4xf32> to vector<1x8x16x4xf32>
    tpu.vector_store %arg7[%c0_75, %c0_76, %c0_77, %c0_78], %89 {strides = array<i32>} : memref<1x8x16x4xf32, #tpu.memory_space<vmem>>, vector<1x8x16x4xf32>,
    %90 = vector.extract_strided_slice %85 {offsets = [0, 0, 4], sizes = [8, 16, 8], strides = [1, 1, 1]} : vector<8x16x12xf32> to vector<8x16x8xf32>
    %c0_79 = arith.constant 0 : index
    %c0_80 = arith.constant 0 : index
    %c0_81 = arith.constant 0 : index
    %c0_82 = arith.constant 0 : index
    %91 = vector.load %arg8[%c0_79, %c0_80, %c0_81, %c0_82] : memref<1x8x16x8xf32, #tpu.memory_space<vmem>>, vector<1x8x16x8xf32>
    %92 = vector.shape_cast %91 : vector<1x8x16x8xf32> to vector<8x16x8xf32>
    %93 = vector.shape_cast %90 : vector<8x16x8xf32> to vector<1x8x16x8xf32>
    tpu.vector_store %arg8[%c0_79, %c0_80, %c0_81, %c0_82], %93 {strides = array<i32>} : memref<1x8x16x8xf32, #tpu.memory_space<vmem>>, vector<1x8x16x8xf32>,
    return
  }
  func.func @transform_0(%arg0: i32, %arg1: i32) -> (i32, i32, i32, i32) {
    %c0_i32 = arith.constant 0 : i32
    %c0_i32_0 = arith.constant 0 : i32
    %c0_i32_1 = arith.constant 0 : i32
    return %arg0, %arg1, %c0_i32, %c0_i32_0 : i32, i32, i32, i32
  }
  func.func @transform_1(%arg0: i32, %arg1: i32) -> (i32, i32, i32, i32) {
    %c8_i32 = arith.constant 8 : i32
    %0 = arith.muli %arg1, %c8_i32 : i32
    %c1_i32 = arith.constant 1 : i32
    %1 = arith.subi %0, %c1_i32 : i32
    %c0_i32 = arith.constant 0 : i32
    %2 = arith.maxsi %1, %c0_i32 : i32
    %c0_i32_0 = arith.constant 0 : i32
    %c0_i32_1 = arith.constant 0 : i32
    %c0_i32_2 = arith.constant 0 : i32
    return %arg0, %2, %c0_i32_0, %c0_i32_1 : i32, i32, i32, i32
  }
  func.func @transform_2(%arg0: i32, %arg1: i32) -> (i32, i32, i32, i32) {
    %c8_i32 = arith.constant 8 : i32
    %0 = arith.muli %arg1, %c8_i32 : i32
    %c8_i32_0 = arith.constant 8 : i32
    %1 = arith.addi %0, %c8_i32_0 : i32
    %c15_i32 = arith.constant 15 : i32
    %2 = arith.minsi %1, %c15_i32 : i32
    %c0_i32 = arith.constant 0 : i32
    %c0_i32_1 = arith.constant 0 : i32
    %c0_i32_2 = arith.constant 0 : i32
    return %arg0, %2, %c0_i32, %c0_i32_1 : i32, i32, i32, i32
  }
  func.func @transform_3(%arg0: i32, %arg1: i32) -> (i32, i32, i32, i32) {
    %c0_i32 = arith.constant 0 : i32
    %c0_i32_0 = arith.constant 0 : i32
    %c0_i32_1 = arith.constant 0 : i32
    %c0_i32_2 = arith.constant 0 : i32
    %c0_i32_3 = arith.constant 0 : i32
    return %c0_i32, %c0_i32_0, %c0_i32_1, %c0_i32_2 : i32, i32, i32, i32
  }
  func.func @transform_4(%arg0: i32, %arg1: i32) -> (i32, i32) {
    %c0_i32 = arith.constant 0 : i32
    %c0_i32_0 = arith.constant 0 : i32
    %c0_i32_1 = arith.constant 0 : i32
    return %c0_i32, %c0_i32_0 : i32, i32
  }
  func.func @transform_5(%arg0: i32, %arg1: i32) -> (i32, i32, i32, i32) {
    %c0_i32 = arith.constant 0 : i32
    %c0_i32_0 = arith.constant 0 : i32
    %c0_i32_1 = arith.constant 0 : i32
    return %arg0, %arg1, %c0_i32, %c0_i32_0 : i32, i32, i32, i32
  }
  func.func @transform_6(%arg0: i32, %arg1: i32) -> (i32, i32, i32, i32) {
    %c0_i32 = arith.constant 0 : i32
    %c0_i32_0 = arith.constant 0 : i32
    %c0_i32_1 = arith.constant 0 : i32
    return %arg0, %arg1, %c0_i32, %c0_i32_0 : i32, i32, i32, i32
  }
}

</mosaic_0001>

<llo_original>
// kernel: key_value_forward.1
$region0: #{key_value_forward.1}
  #allocation0 [shape = 'u32[]', space=smem, size = 0x4, offset = 0x4, fixed_abs, tag = 'smem constant byte address 0x4 - core index']
  #allocation1 [shape = 'u32[144,128]{1,0:T(1,128)}', space=vmem, size = 0x12000, scoped, tag = 'internal scratch']
  #allocation2 [shape = 'bf16[198,8]{1,0:T(8,128)(2,1)}', space=vmem, size = 0xc800, scoped, tag = 'scratch operand']
  %s0 = inlined_call_operand.vmem [shape: f32[2,16,16,8], index: 0, kind: input, shape index: {}, may-alias: {0,1,2}]
  %s1 = inlined_call_operand.vmem [shape: f32[2,16,16,8], index: 1, kind: input, shape index: {}, may-alias: {0,1,2}]
  %s2 = inlined_call_operand.vmem [shape: f32[2,16,16,8], index: 2, kind: input, shape index: {}, may-alias: {0,1,2}]
  %s3 = inlined_call_operand.vmem [shape: bf16[3,3,8,12], index: 3, kind: input, shape index: {}]
  %s4 = inlined_call_operand.vmem [shape: f32[1,12], index: 4, kind: input, shape index: {}]
  %s5 = inlined_call_operand.vmem [shape: f32[2,16,16,4], index: 5, kind: output, shape index: {0}]
  %s6 = inlined_call_operand.vmem [shape: f32[2,16,16,8], index: 6, kind: output, shape index: {1}]
  %7 = xla_tuple %s5, %s6
  %s8 = sld [smem:[#allocation0]]
  $region69: #{key_value_forward.1} parent=0
    _
  %s10 = ssub.s32 1, %s8
  %s11 = scalar_select 0, %s10, %s8
  loop: start=0, step=1, limit=6
  $region2: #{key_value_forward.1} parent=0 // loop_pre_header
    _
  $region3: #{key_value_forward.1} parent=0 // loop_header
    %s13 = sphi 0, %s17
    %p14 = scmp.ge.s32.totalorder %s13, 6
    %s20 = sphi 0, %s32
    %s21 = sphi 0, %s28
    %s22 = sphi 0, %s20
    %s23 = sphi 0, %s21
    %s24 = sphi 0, %s22
    %s25 = sphi 0, %s23
    %s37 = sphi 0, %s39
    %s40 = sphi 0, %s37
    %s41 = sphi 0, %s40
    %s57 = sphi 0, %s41
    %s73 = sphi 0, %s75
    %s76 = sphi 0, %s73
    %s77 = sphi 0, %s76
    %s93 = sphi 0, %s77
    %s109 = sphi 0, %s111
    %s112 = sphi 0, %s109
    %s113 = sphi 0, %s112
    %s129 = sphi 0, %s113
    %s133 = sphi 0, %s133
    %s135 = sphi 0, %s133
    %s136 = sphi 0, %s135
    %s150 = sphi 0, %s136
    %s154 = sphi 0, %s154
    %s156 = sphi 0, %s154
    %s157 = sphi 0, %s156
    %s171 = sphi 0, %s157
    %s179 = sphi 0, %s181
    %s182 = sphi 0, %s179
    %s183 = sphi 0, %s182
    %s199 = sphi 0, %s183
    %s207 = sphi 0, %s209
    %s210 = sphi 0, %s207
    %s211 = sphi 0, %s210
    %s227 = sphi 0, %s211
  $region4: #{key_value_forward.1} parent=0 // loop_header_branch
    %16 = sbr.rel (%p14) target = $region8
  $region5: #{key_value_forward.1} parent=0 // loop_body
    %s18 = ssub.s32 %s13, 1
    %s19 = ssub.s32 %s13, 2
    %s26 = sadd.s32 1, %s21
    %p27 = scmp.ge.s32.totalorder %s26, 2
    %s28 = scalar_select %p27, 0, %s26
    %s29 = sadd.s32 1, %s20
    %s30 = scalar_select %p27, %s29, %s20
    %p31 = scmp.ge.s32.totalorder %s30, 2
    %s32 = scalar_select %p31, 0, %s30
    %s33 = ssub.s32 %s20, %s32
    %s34 = ssub.s32 %s21, %s28
    %s35 = sor.u32 %s33, %s34
    %p36 = scmp.eq.s32.totalorder %s35, 0
    %s38 = sadd.s32 %s37, 1
    %s39 = scalar_select %p36, %s37, %s38
    %p42 = pneg %p36
    %p43 = scmp.eq.s32.totalorder %s13, 3
    %p44 = por %p42, %p43
    %p45 = scmp.ne.s32.totalorder %s37, %s40
    %p46 = scmp.eq.s32.totalorder %s13, 0
    %p47 = por %p45, %p46
    %p48 = scmp.ne.s32.totalorder %s37, %s40
    %p49 = scmp.eq.s32.totalorder %s18, 3
    %p50 = por %p48, %p49
    %p51 = scmp.ne.s32.totalorder %s40, %s41
    %p52 = scmp.eq.s32.totalorder %s18, 0
    %p53 = por %p51, %p52
    %p54 = scmp.ne.s32.totalorder %s40, %s41
    %p55 = scmp.eq.s32.totalorder %s19, 3
    %p56 = por %p54, %p55
    %p58 = scmp.ne.s32.totalorder %s41, %s57
    %p59 = scmp.eq.s32.totalorder %s19, 0
    %p60 = por %p58, %p59
    %s61 = smul.u32 %s21, 8
    %s62 = ssub.s32 %s61, 1
    %p63 = scmp.gt.s32.totalorder %s62, 0
    %s64 = scalar_select %p63, %s62, 0
    %s65 = smul.u32 %s28, 8
    %s66 = ssub.s32 %s65, 1
    %p67 = scmp.gt.s32.totalorder %s66, 0
    %s68 = scalar_select %p67, %s66, 0
    %s69 = ssub.s32 %s20, %s32
    %s70 = ssub.s32 %s64, %s68
    %s71 = sor.u32 %s69, %s70
    %p72 = scmp.eq.s32.totalorder %s71, 0
    %s74 = sadd.s32 %s73, 1
    %s75 = scalar_select %p72, %s73, %s74
    %p78 = pneg %p72
    %p79 = scmp.eq.s32.totalorder %s13, 3
    %p80 = por %p78, %p79
    %p81 = scmp.ne.s32.totalorder %s73, %s76
    %p82 = scmp.eq.s32.totalorder %s13, 0
    %p83 = por %p81, %p82
    %p84 = scmp.ne.s32.totalorder %s73, %s76
    %p85 = scmp.eq.s32.totalorder %s18, 3
    %p86 = por %p84, %p85
    %p87 = scmp.ne.s32.totalorder %s76, %s77
    %p88 = scmp.eq.s32.totalorder %s18, 0
    %p89 = por %p87, %p88
    %p90 = scmp.ne.s32.totalorder %s76, %s77
    %p91 = scmp.eq.s32.totalorder %s19, 3
    %p92 = por %p90, %p91
    %p94 = scmp.ne.s32.totalorder %s77, %s93
    %p95 = scmp.eq.s32.totalorder %s19, 0
    %p96 = por %p94, %p95
    %s97 = smul.u32 %s21, 8
    %s98 = sadd.s32 %s97, 8
    %p99 = scmp.lt.s32.totalorder %s98, 15
    %s100 = scalar_select %p99, %s98, 15
    %s101 = smul.u32 %s28, 8
    %s102 = sadd.s32 %s101, 8
    %p103 = scmp.lt.s32.totalorder %s102, 15
    %s104 = scalar_select %p103, %s102, 15
    %s105 = ssub.s32 %s20, %s32
    %s106 = ssub.s32 %s100, %s104
    %s107 = sor.u32 %s105, %s106
    %p108 = scmp.eq.s32.totalorder %s107, 0
    %s110 = sadd.s32 %s109, 1
    %s111 = scalar_select %p108, %s109, %s110
    %p114 = pneg %p108
    %p115 = scmp.eq.s32.totalorder %s13, 3
    %p116 = por %p114, %p115
    %p117 = scmp.ne.s32.totalorder %s109, %s112
    %p118 = scmp.eq.s32.totalorder %s13, 0
    %p119 = por %p117, %p118
    %p120 = scmp.ne.s32.totalorder %s109, %s112
    %p121 = scmp.eq.s32.totalorder %s18, 3
    %p122 = por %p120, %p121
    %p123 = scmp.ne.s32.totalorder %s112, %s113
    %p124 = scmp.eq.s32.totalorder %s18, 0
    %p125 = por %p123, %p124
    %p126 = scmp.ne.s32.totalorder %s112, %s113
    %p127 = scmp.eq.s32.totalorder %s19, 3
    %p128 = por %p126, %p127
    %p130 = scmp.ne.s32.totalorder %s113, %s129
    %p131 = scmp.eq.s32.totalorder %s19, 0
    %p132 = por %p130, %p131
    %s134 = sadd.s32 %s133, 1
    %p137 = scmp.eq.s32.totalorder %s13, 3
    %p138 = scmp.ne.s32.totalorder %s133, %s135
    %p139 = scmp.eq.s32.totalorder %s13, 0
    %p140 = por %p138, %p139
    %p141 = scmp.ne.s32.totalorder %s133, %s135
    %p142 = scmp.eq.s32.totalorder %s18, 3
    %p143 = por %p141, %p142
    %p144 = scmp.ne.s32.totalorder %s135, %s136
    %p145 = scmp.eq.s32.totalorder %s18, 0
    %p146 = por %p144, %p145
    %p147 = scmp.ne.s32.totalorder %s135, %s136
    %p148 = scmp.eq.s32.totalorder %s19, 3
    %p149 = por %p147, %p148
    %p151 = scmp.ne.s32.totalorder %s136, %s150
    %p152 = scmp.eq.s32.totalorder %s19, 0
    %p153 = por %p151, %p152
    %s155 = sadd.s32 %s154, 1
    %p158 = scmp.eq.s32.totalorder %s13, 3
    %p159 = scmp.ne.s32.totalorder %s154, %s156
    %p160 = scmp.eq.s32.totalorder %s13, 0
    %p161 = por %p159, %p160
    %p162 = scmp.ne.s32.totalorder %s154, %s156
    %p163 = scmp.eq.s32.totalorder %s18, 3
    %p164 = por %p162, %p163
    %p165 = scmp.ne.s32.totalorder %s156, %s157
    %p166 = scmp.eq.s32.totalorder %s18, 0
    %p167 = por %p165, %p166
    %p168 = scmp.ne.s32.totalorder %s156, %s157
    %p169 = scmp.eq.s32.totalorder %s19, 3
    %p170 = por %p168, %p169
    %p172 = scmp.ne.s32.totalorder %s157, %s171
    %p173 = scmp.eq.s32.totalorder %s19, 0
    %p174 = por %p172, %p173
    %s175 = ssub.s32 %s20, %s32
    %s176 = ssub.s32 %s21, %s28
    %s177 = sor.u32 %s175, %s176
    %p178 = scmp.eq.s32.totalorder %s177, 0
    %s180 = sadd.s32 %s179, 1
    %s181 = scalar_select %p178, %s179, %s180
    %p184 = pneg %p178
    %p185 = scmp.eq.s32.totalorder %s13, 3
    %p186 = por %p184, %p185
    %p187 = scmp.ne.s32.totalorder %s179, %s182
    %p188 = scmp.eq.s32.totalorder %s13, 0
    %p189 = por %p187, %p188
    %p190 = scmp.ne.s32.totalorder %s179, %s182
    %p191 = scmp.eq.s32.totalorder %s18, 3
    %p192 = por %p190, %p191
    %p193 = scmp.ne.s32.totalorder %s182, %s183
    %p194 = scmp.eq.s32.totalorder %s18, 0
    %p195 = por %p193, %p194
    %p196 = scmp.ne.s32.totalorder %s182, %s183
    %p197 = scmp.eq.s32.totalorder %s19, 3
    %p198 = por %p196, %p197
    %p200 = scmp.ne.s32.totalorder %s183, %s199
    %p201 = scmp.eq.s32.totalorder %s19, 0
    %p202 = por %p200, %p201
    %s203 = ssub.s32 %s20, %s32
    %s204 = ssub.s32 %s21, %s28
    %s205 = sor.u32 %s203, %s204
    %p206 = scmp.eq.s32.totalorder %s205, 0
    %s208 = sadd.s32 %s207, 1
    %s209 = scalar_select %p206, %s207, %s208
    %p212 = pneg %p206
    %p213 = scmp.eq.s32.totalorder %s13, 3
    %p214 = por %p212, %p213
    %p215 = scmp.ne.s32.totalorder %s207, %s210
    %p216 = scmp.eq.s32.totalorder %s13, 0
    %p217 = por %p215, %p216
    %p218 = scmp.ne.s32.totalorder %s207, %s210
    %p219 = scmp.eq.s32.totalorder %s18, 3
    %p220 = por %p218, %p219
    %p221 = scmp.ne.s32.totalorder %s210, %s211
    %p222 = scmp.eq.s32.totalorder %s18, 0
    %p223 = por %p221, %p222
    %p224 = scmp.ne.s32.totalorder %s210, %s211
    %p225 = scmp.eq.s32.totalorder %s19, 3
    %p226 = por %p224, %p225
    %p228 = scmp.ne.s32.totalorder %s211, %s227
    %p229 = scmp.eq.s32.totalorder %s19, 0
    %p230 = por %p228, %p229
    %p231 = scmp.le.s32.totalorder 1, %s13
    %p232 = scmp.lt.s32.totalorder %s13, 5
    %p233 = pnand %p231, %p232
    %p234 = pneg %p233
    // Predicated region
    $region9: #{key_value_forward.1} parent=5 // pred_check
      _
    $region10: #{key_value_forward.1} parent=5 // pred_check_branch
      %236 = sbr.rel (%p233) target = $region12
    $region11: #{key_value_forward.1} parent=5 // pred_region
      %s237 = ssub.s32 %s13, 1
      // Predicated region
      $region13: #{key_value_forward.1} parent=11 // pred_check
        %p238 = pneg %p146
      $region14: #{key_value_forward.1} parent=11 // pred_check_branch
        %240 = sbr.rel (%p238) target = $region16
      $region15: #{key_value_forward.1} parent=11 // pred_region
        _
      $region16: #{key_value_forward.1} parent=11 // pred_fallthru
        _
      // Predicated region
      $region17: #{key_value_forward.1} parent=11 // pred_check
        %p241 = pneg %p167
      $region18: #{key_value_forward.1} parent=11 // pred_check_branch
        %243 = sbr.rel (%p241) target = $region20
      $region19: #{key_value_forward.1} parent=11 // pred_region
        _
      $region20: #{key_value_forward.1} parent=11 // pred_fallthru
        _
    $region12: #{key_value_forward.1} parent=5 // pred_fallthru
      _
    %p244 = scmp.lt.s32.totalorder %s13, 4
    // Predicated region
    $region21: #{key_value_forward.1} parent=5 // pred_check
      %p245 = pneg %p244
    $region22: #{key_value_forward.1} parent=5 // pred_check_branch
      %247 = sbr.rel (%p245) target = $region24
    $region23: #{key_value_forward.1} parent=5 // pred_region
      // Predicated region
      $region25: #{key_value_forward.1} parent=23 // pred_check
        %p248 = pneg %p47
      $region26: #{key_value_forward.1} parent=23 // pred_check_branch
        %250 = sbr.rel (%p248) target = $region28
      $region27: #{key_value_forward.1} parent=23 // pred_region
        %s251 = smul.u32 8, %s21
        %p252 = scmp.lt.s32.totalorder %s20, 1
        %s253 = scalar_select %p252, %s20, 1
        %p254 = scmp.lt.s32.totalorder %s251, 15
        %s255 = scalar_select %p254, %s251, 15
        %s256 = smul.addr %s255, 2
        %s257 = smul.addr %s253, 32
        %s258 = sadd.s32 %s256, %s257
        %s259 = smul.addr %s258, 8
        %s260 = scalar_lea.vmem %s0, %s259
        %s261 = smul.u32 8, %s21
      $region28: #{key_value_forward.1} parent=23 // pred_fallthru
        _
      // Predicated region
      $region29: #{key_value_forward.1} parent=23 // pred_check
        %p262 = pneg %p83
      $region30: #{key_value_forward.1} parent=23 // pred_check_branch
        %264 = sbr.rel (%p262) target = $region32
      $region31: #{key_value_forward.1} parent=23 // pred_region
        %s265 = smul.u32 %s21, 8
        %s266 = ssub.s32 %s265, 1
        %p267 = scmp.gt.s32.totalorder %s266, 0
        %s268 = scalar_select %p267, %s266, 0
        %p269 = scmp.lt.s32.totalorder %s20, 1
        %s270 = scalar_select %p269, %s20, 1
        %p271 = scmp.lt.s32.totalorder %s268, 15
        %s272 = scalar_select %p271, %s268, 15
        %s273 = smul.addr %s272, 2
        %s274 = smul.addr %s270, 32
        %s275 = sadd.s32 %s273, %s274
        %s276 = smul.addr %s275, 8
        %s277 = scalar_lea.vmem %s1, %s276
        %s278 = smul.u32 %s21, 8
        %s279 = ssub.s32 %s278, 1
        %p280 = scmp.gt.s32.totalorder %s279, 0
        %s281 = scalar_select %p280, %s279, 0
      $region32: #{key_value_forward.1} parent=23 // pred_fallthru
        _
      // Predicated region
      $region33: #{key_value_forward.1} parent=23 // pred_check
        %p282 = pneg %p119
      $region34: #{key_value_forward.1} parent=23 // pred_check_branch
        %284 = sbr.rel (%p282) target = $region36
      $region35: #{key_value_forward.1} parent=23 // pred_region
        %s285 = smul.u32 %s21, 8
        %s286 = sadd.s32 %s285, 8
        %p287 = scmp.lt.s32.totalorder %s286, 15
        %s288 = scalar_select %p287, %s286, 15
        %p289 = scmp.lt.s32.totalorder %s20, 1
        %s290 = scalar_select %p289, %s20, 1
        %p291 = scmp.lt.s32.totalorder %s288, 15
        %s292 = scalar_select %p291, %s288, 15
        %s293 = smul.addr %s292, 2
        %s294 = smul.addr %s290, 32
        %s295 = sadd.s32 %s293, %s294
        %s296 = smul.addr %s295, 8
        %s297 = scalar_lea.vmem %s2, %s296
        %s298 = smul.u32 %s21, 8
        %s299 = sadd.s32 %s298, 8
        %p300 = scmp.lt.s32.totalorder %s299, 15
        %s301 = scalar_select %p300, %s299, 15
      $region36: #{key_value_forward.1} parent=23 // pred_fallthru
        _
    $region24: #{key_value_forward.1} parent=5 // pred_fallthru
      _
    %p302 = scmp.le.s32.totalorder 1, %s13
    %p303 = scmp.lt.s32.totalorder %s13, 5
    %p304 = pnand %p302, %p303
    %p305 = pneg %p304
    // Predicated region
    $region37: #{key_value_forward.1} parent=5 // pred_check
      _
    $region38: #{key_value_forward.1} parent=5 // pred_check_branch
      %307 = sbr.rel (%p304) target = $region40
    $region39: #{key_value_forward.1} parent=5 // pred_region
      %s308 = ssub.s32 %s13, 1
      %s309 = smul.u32 8, %s23
      %p310 = scmp.lt.s32.totalorder %s22, 1
      %s311 = scalar_select %p310, %s22, 1
      %p312 = scmp.lt.s32.totalorder %s309, 15
      %s313 = scalar_select %p312, %s309, 15
      %s314 = smul.addr %s313, 2
      %s315 = smul.addr %s311, 32
      %s316 = sadd.s32 %s314, %s315
      %s317 = smul.addr %s316, 8
      %s318 = scalar_lea.vmem %s0, %s317
      %p319 = pneg %p53
      %p320 = pneg %p50
      %s321 = smul.u32 %s23, 8
      %s322 = ssub.s32 %s321, 1
      %p323 = scmp.gt.s32.totalorder %s322, 0
      %s324 = scalar_select %p323, %s322, 0
      %p325 = scmp.lt.s32.totalorder %s22, 1
      %s326 = scalar_select %p325, %s22, 1
      %p327 = scmp.lt.s32.totalorder %s324, 15
      %s328 = scalar_select %p327, %s324, 15
      %s329 = smul.addr %s328, 2
      %s330 = smul.addr %s326, 32
      %s331 = sadd.s32 %s329, %s330
      %s332 = smul.addr %s331, 8
      %s333 = scalar_lea.vmem %s1, %s332
      %p334 = pneg %p89
      %p335 = pneg %p86
      %s336 = smul.u32 %s23, 8
      %s337 = sadd.s32 %s336, 8
      %p338 = scmp.lt.s32.totalorder %s337, 15
      %s339 = scalar_select %p338, %s337, 15
      %p340 = scmp.lt.s32.totalorder %s22, 1
      %s341 = scalar_select %p340, %s22, 1
      %p342 = scmp.lt.s32.totalorder %s339, 15
      %s343 = scalar_select %p342, %s339, 15
      %s344 = smul.addr %s343, 2
      %s345 = smul.addr %s341, 32
      %s346 = sadd.s32 %s344, %s345
      %s347 = smul.addr %s346, 8
      %s348 = scalar_lea.vmem %s2, %s347
      %p349 = pneg %p125
      %p350 = pneg %p122
      %p351 = pneg %p146
      %p352 = pneg %p143
      %p353 = pneg %p167
      %p354 = pneg %p164
      %p355 = pneg %p195
      %p356 = pneg %p192
      %s357 = smul.u32 8, %s23
      %p358 = scmp.lt.s32.totalorder %s22, 1
      %s359 = scalar_select %p358, %s22, 1
      %p360 = scmp.lt.s32.totalorder %s357, 15
      %s361 = scalar_select %p360, %s357, 15
      %s362 = smul.addr %s361, 2
      %s363 = smul.addr %s359, 32
      %s364 = sadd.s32 %s362, %s363
      %s365 = smul.addr %s364, 8
      %s366 = scalar_lea.vmem %s5, %s365
      %p367 = pneg %p223
      %p368 = pneg %p220
      %s369 = smul.u32 8, %s23
      %p370 = scmp.lt.s32.totalorder %s22, 1
      %s371 = scalar_select %p370, %s22, 1
      %p372 = scmp.lt.s32.totalorder %s369, 15
      %s373 = scalar_select %p372, %s369, 15
      %s374 = smul.addr %s373, 2
      %s375 = smul.addr %s371, 32
      %s376 = sadd.s32 %s374, %s375
      %s377 = smul.addr %s376, 8
      %s378 = scalar_lea.vmem %s6, %s377
      %s379 = smul.u32 8, %s23
      %p380 = scmp.lt.s32.totalorder %s22, 1
      %s381 = scalar_select %p380, %s22, 1
      %p382 = scmp.lt.s32.totalorder %s379, 15
      %s383 = scalar_select %p382, %s379, 15
      %s384 = smul.addr %s383, 2
      %s385 = smul.addr %s381, 32
      %s386 = sadd.s32 %s384, %s385
      %s387 = smul.addr %s386, 8
      %s388 = scalar_lea.vmem %s0, %s387
      %s389 = smul.u32 8, %s23
      %s390 = smul.u32 %s23, 8
      %s391 = ssub.s32 %s390, 1
      %p392 = scmp.gt.s32.totalorder %s391, 0
      %s393 = scalar_select %p392, %s391, 0
      %p394 = scmp.lt.s32.totalorder %s22, 1
      %s395 = scalar_select %p394, %s22, 1
      %p396 = scmp.lt.s32.totalorder %s393, 15
      %s397 = scalar_select %p396, %s393, 15
      %s398 = smul.addr %s397, 2
      %s399 = smul.addr %s395, 32
      %s400 = sadd.s32 %s398, %s399
      %s401 = smul.addr %s400, 8
      %s402 = scalar_lea.vmem %s1, %s401
      %s403 = smul.u32 %s23, 8
      %s404 = ssub.s32 %s403, 1
      %p405 = scmp.gt.s32.totalorder %s404, 0
      %s406 = scalar_select %p405, %s404, 0
      %s407 = smul.u32 %s23, 8
      %s408 = sadd.s32 %s407, 8
      %p409 = scmp.lt.s32.totalorder %s408, 15
      %s410 = scalar_select %p409, %s408, 15
      %p411 = scmp.lt.s32.totalorder %s22, 1
      %s412 = scalar_select %p411, %s22, 1
      %p413 = scmp.lt.s32.totalorder %s410, 15
      %s414 = scalar_select %p413, %s410, 15
      %s415 = smul.addr %s414, 2
      %s416 = smul.addr %s412, 32
      %s417 = sadd.s32 %s415, %s416
      %s418 = smul.addr %s417, 8
      %s419 = scalar_lea.vmem %s2, %s418
      %s420 = smul.u32 %s23, 8
      %s421 = sadd.s32 %s420, 8
      %p422 = scmp.lt.s32.totalorder %s421, 15
      %s423 = scalar_select %p422, %s421, 15
      %s424 = smul.u32 8, %s23
      %p425 = scmp.lt.s32.totalorder %s22, 1
      %s426 = scalar_select %p425, %s22, 1
      %p427 = scmp.lt.s32.totalorder %s424, 15
      %s428 = scalar_select %p427, %s424, 15
      %s429 = smul.addr %s428, 2
      %s430 = smul.addr %s426, 32
      %s431 = sadd.s32 %s429, %s430
      %s432 = smul.addr %s431, 8
      %s433 = scalar_lea.vmem %s5, %s432
      %s434 = smul.u32 8, %s23
      %s435 = smul.u32 8, %s23
      %p436 = scmp.lt.s32.totalorder %s22, 1
      %s437 = scalar_select %p436, %s22, 1
      %p438 = scmp.lt.s32.totalorder %s435, 15
      %s439 = scalar_select %p438, %s435, 15
      %s440 = smul.addr %s439, 2
      %s441 = smul.addr %s437, 32
      %s442 = sadd.s32 %s440, %s441
      %s443 = smul.addr %s442, 8
      %s444 = scalar_lea.vmem %s6, %s443
      %s445 = smul.u32 8, %s23
      %vm447 = vcmask 60416
      %448 = vst.msk [vmem:[#allocation2] sm:$0xf] %vm447, 0
      %449 = vst.msk [vmem:[#allocation2 + $0x4] sm:$0xf] %vm447, 0
      %450 = vst.msk [vmem:[#allocation2 + $0x8] sm:$0xf] %vm447, 0
      %451 = vst.msk [vmem:[#allocation2 + $0xc] sm:$0xf] %vm447, 0
      %452 = vst.msk [vmem:[#allocation2 + $0x10] sm:$0xf] %vm447, 0
      %453 = vst.msk [vmem:[#allocation2 + $0x14] sm:$0xf] %vm447, 0
      %454 = vst.msk [vmem:[#allocation2 + $0x18] sm:$0xf] %vm447, 0
      %455 = vst.msk [vmem:[#allocation2 + $0x1c] sm:$0xf] %vm447, 0
      %456 = vst.msk [vmem:[#allocation2 + $0x20] sm:$0xf] %vm447, 0
      %457 = vst.msk [vmem:[#allocation2 + $0x24] sm:$0xf] %vm447, 0
      %458 = vst.msk [vmem:[#allocation2 + $0x28] sm:$0xf] %vm447, 0
      %459 = vst.msk [vmem:[#allocation2 + $0x2c] sm:$0xf] %vm447, 0
      %460 = vst.msk [vmem:[#allocation2 + $0x30] sm:$0xf] %vm447, 0
      %461 = vst.msk [vmem:[#allocation2 + $0x34] sm:$0xf] %vm447, 0
      %462 = vst.msk [vmem:[#allocation2 + $0x38] sm:$0xf] %vm447, 0
      %463 = vst.msk [vmem:[#allocation2 + $0x3c] sm:$0xf] %vm447, 0
      %464 = vst.msk [vmem:[#allocation2 + $0x40] sm:$0xf] %vm447, 0
      %465 = vst.msk [vmem:[#allocation2 + $0x44] sm:$0xf] %vm447, 0
      %466 = vst.msk [vmem:[#allocation2 + $0x48] sm:$0xf] %vm447, 0
      %467 = vst.msk [vmem:[#allocation2 + $0x4c] sm:$0xf] %vm447, 0
      %468 = vst.msk [vmem:[#allocation2 + $0x50] sm:$0xf] %vm447, 0
      %469 = vst.msk [vmem:[#allocation2 + $0x54] sm:$0xf] %vm447, 0
      %470 = vst.msk [vmem:[#allocation2 + $0x58] sm:$0xf] %vm447, 0
      %471 = vst.msk [vmem:[#allocation2 + $0x5c] sm:$0xf] %vm447, 0
      %vm472 = vcmask 59392
      %473 = vst.msk [vmem:[#allocation2 + $0x60] sm:$0x7] %vm472, 0
      %v474 = vld [vmem:[%s388] sm:$0xff]
      %v475 = vld [vmem:[%s388 + $0x8] sm:$0xff]
      %v476 = vld [vmem:[%s388 + $0x10] sm:$0xff]
      %v477 = vld [vmem:[%s388 + $0x18] sm:$0xff]
      %v478 = vld [vmem:[%s388 + $0x20] sm:$0xff]
      %v479 = vld [vmem:[%s388 + $0x28] sm:$0xff]
      %v480 = vld [vmem:[%s388 + $0x30] sm:$0xff]
      %v481 = vld [vmem:[%s388 + $0x38] sm:$0xff]
      %v482 = vld [vmem:[%s388 + $0x40] sm:$0xff]
      %v483 = vld [vmem:[%s388 + $0x48] sm:$0xff]
      %v484 = vld [vmem:[%s388 + $0x50] sm:$0xff]
      %v485 = vld [vmem:[%s388 + $0x58] sm:$0xff]
      %v486 = vld [vmem:[%s388 + $0x60] sm:$0xff]
      %v487 = vld [vmem:[%s388 + $0x68] sm:$0xff]
      %v488 = vld [vmem:[%s388 + $0x70] sm:$0xff]
      %v489 = vld [vmem:[%s388 + $0x78] sm:$0xff]
      %v490 = vpack.c.bf16 %v475, %v474
      %v491 = vpack.c.bf16 %v477, %v476
      %v492 = vpack.c.bf16 %v479, %v478
      %v493 = vpack.c.bf16 %v481, %v480
      %v494 = vpack.c.bf16 %v483, %v482
      %v495 = vpack.c.bf16 %v485, %v484
      %v496 = vpack.c.bf16 %v487, %v486
      %v497 = vpack.c.bf16 %v489, %v488
      %v499 = vunpack.c.l.b16 %v490
      %v500 = vunpack.c.h.b16 %v490
      %v501 = vpack.c.b16 %v499, %v499
      %v502 = vpack.c.b16 %v500, %v500
      %vm503 = vsmask.f32 1280
      %vm504 = vsmask.f32 5392
      %vm505 = vmor %vm503, %vm504
      %v507 = vshrl.u32 %v501, 16
      %v509 = vrot.slane %v507, 6
      %v510 = vshll.u32 %v501, 16
      %v512 = vrot.slane %v510, 7
      %v513 = vor.u32 %v509, %v512
      %v514 = vrot.slane %v513, 4
      %v516 = vshrl.u32 %v502, 16
      %v518 = vrot.slane %v516, 6
      %v519 = vshll.u32 %v502, 16
      %v521 = vrot.slane %v519, 7
      %v522 = vor.u32 %v518, %v521
      %v523 = vsel %vm505, %v514, %v522
      %v524 = vrot.slane %v522, 4
      %vm528 = vcmask 60417
      %vm529 = vsmask.f32 7942
      %vm530 = vmand %vm528, %vm529
      %v531 = vld [vmem:[#allocation2 + $0x8] sm:$0xe]
      %v532 = vsel %vm530, %v513, %v531
      %533 = vst [vmem:[#allocation2 + $0x8] sm:$0xe] %v532
      %534 = vst.msk [vmem:[#allocation2 + $0xc] sm:$0xf] %vm447, %v523
      %vm535 = vcmask 58368
      %vm536 = vmand %vm535, %vm503
      %v537 = vld [vmem:[#allocation2 + $0x10] sm:$0x3]
      %v538 = vsel %vm536, %v524, %v537
      %539 = vst [vmem:[#allocation2 + $0x10] sm:$0x3] %v538
      %v541 = vunpack.c.l.b16 %v491
      %v542 = vunpack.c.h.b16 %v491
      %v543 = vpack.c.b16 %v541, %v541
      %v544 = vpack.c.b16 %v542, %v542
      %vm545 = vsmask.f32 2304
      %vm546 = vsmask.f32 6416
      %vm547 = vmor %vm545, %vm546
      %v549 = vshrl.u32 %v543, 16
      %v551 = vrot.slane %v549, 5
      %v552 = vshll.u32 %v543, 16
      %v554 = vrot.slane %v552, 6
      %v555 = vor.u32 %v551, %v554
      %v556 = vrot.slane %v555, 4
      %v558 = vshrl.u32 %v544, 16
      %v560 = vrot.slane %v558, 5
      %v561 = vshll.u32 %v544, 16
      %v563 = vrot.slane %v561, 6
      %v564 = vor.u32 %v560, %v563
      %v565 = vsel %vm547, %v556, %v564
      %v566 = vrot.slane %v564, 4
      %vm570 = vcmask 60418
      %vm571 = vsmask.f32 7946
      %vm572 = vmand %vm570, %vm571
      %v573 = vld [vmem:[#allocation2 + $0x10] sm:$0xc]
      %v574 = vsel %vm572, %v555, %v573
      %575 = vst [vmem:[#allocation2 + $0x10] sm:$0xc] %v574
      %576 = vst.msk [vmem:[#allocation2 + $0x14] sm:$0xf] %vm447, %v565
      %vm577 = vcmask 59392
      %vm578 = vmand %vm577, %vm545
      %v579 = vld [vmem:[#allocation2 + $0x18] sm:$0x7]
      %v580 = vsel %vm578, %v566, %v579
      %581 = vst [vmem:[#allocation2 + $0x18] sm:$0x7] %v580
      %v583 = vunpack.c.l.b16 %v492
      %v584 = vunpack.c.h.b16 %v492
      %v585 = vpack.c.b16 %v583, %v583
      %v586 = vpack.c.b16 %v584, %v584
      %vm587 = vsmask.f32 3328
      %vm588 = vsmask.f32 7440
      %vm589 = vmor %vm587, %vm588
      %v591 = vshll.u32 %v585, 16
      %v593 = vrot.slane %v591, 5
      %v594 = vshrl.u32 %v585, 16
      %v596 = vrot.slane %v594, 4
      %v597 = vor.u32 %v596, %v593
      %v598 = vrot.slane %v597, 4
      %v600 = vshll.u32 %v586, 16
      %v602 = vrot.slane %v600, 5
      %v603 = vsel %vm589, %v598, %v602
      %v604 = vshrl.u32 %v586, 16
      %v606 = vrot.slane %v604, 4
      %v607 = vor.u32 %v606, %v602
      %v608 = vrot.slane %v607, 4
      %vm612 = vcmask 60419
      %vm613 = vsmask.f32 7950
      %vm614 = vmand %vm612, %vm613
      %v615 = vld [vmem:[#allocation2 + $0x18] sm:$0x8]
      %v616 = vsel %vm614, %v593, %v615
      %617 = vst [vmem:[#allocation2 + $0x18] sm:$0x8] %v616
      %618 = vst.msk [vmem:[#allocation2 + $0x1c] sm:$0xf] %vm447, %v603
      %vm619 = vcmask 60416
      %vm620 = vmand %vm619, %vm587
      %v621 = vld [vmem:[#allocation2 + $0x20] sm:$0xf]
      %v622 = vsel %vm620, %v608, %v621
      %623 = vst [vmem:[#allocation2 + $0x20] sm:$0xf] %v622
      %v625 = vunpack.c.l.b16 %v493
      %v626 = vunpack.c.h.b16 %v493
      %v627 = vpack.c.b16 %v625, %v625
      %v628 = vpack.c.b16 %v626, %v626
      %vm629 = vsmask.f32 256
      %vm630 = vsmask.f32 4368
      %vm631 = vmor %vm629, %vm630
      %v633 = vshrl.u32 %v627, 16
      %v635 = vrot.slane %v633, 7
      %v636 = vshll.u32 %v627, 16
      %v638 = vor.u32 %v635, %v636
      %v639 = vrot.slane %v635, 4
      %v641 = vshrl.u32 %v628, 16
      %v643 = vrot.slane %v641, 7
      %v644 = vshll.u32 %v628, 16
      %v646 = vor.u32 %v643, %v644
      %v647 = vsel %vm631, %v639, %v646
      %v648 = vrot.slane %v643, 4
      %vm652 = vsmask.f32 7938
      %vm653 = vmand %vm619, %vm652
      %v654 = vld [vmem:[#allocation2 + $0x24] sm:$0xf]
      %v655 = vsel %vm653, %v638, %v654
      %656 = vst [vmem:[#allocation2 + $0x24] sm:$0xf] %v655
      %657 = vst.msk [vmem:[#allocation2 + $0x28] sm:$0xf] %vm447, %v647
      %vm658 = vcmask 57344
      %vm659 = vmand %vm658, %vm629
      %v660 = vld [vmem:[#allocation2 + $0x2c] sm:$0x1]
      %v661 = vsel %vm659, %v648, %v660
      %662 = vst [vmem:[#allocation2 + $0x2c] sm:$0x1] %v661
      %v664 = vunpack.c.l.b16 %v494
      %v665 = vunpack.c.h.b16 %v494
      %v666 = vpack.c.b16 %v664, %v664
      %v667 = vpack.c.b16 %v665, %v665
      %v669 = vshrl.u32 %v666, 16
      %v671 = vrot.slane %v669, 6
      %v672 = vshll.u32 %v666, 16
      %v674 = vrot.slane %v672, 7
      %v675 = vor.u32 %v671, %v674
      %v676 = vrot.slane %v675, 4
      %v678 = vshrl.u32 %v667, 16
      %v680 = vrot.slane %v678, 6
      %v681 = vshll.u32 %v667, 16
      %v683 = vrot.slane %v681, 7
      %v684 = vor.u32 %v680, %v683
      %v685 = vsel %vm505, %v676, %v684
      %v686 = vrot.slane %v684, 4
      %v690 = vld [vmem:[#allocation2 + $0x2c] sm:$0xe]
      %v691 = vsel %vm530, %v675, %v690
      %692 = vst [vmem:[#allocation2 + $0x2c] sm:$0xe] %v691
      %693 = vst.msk [vmem:[#allocation2 + $0x30] sm:$0xf] %vm447, %v685
      %v694 = vld [vmem:[#allocation2 + $0x34] sm:$0x3]
      %v695 = vsel %vm536, %v686, %v694
      %696 = vst [vmem:[#allocation2 + $0x34] sm:$0x3] %v695
      %v698 = vunpack.c.l.b16 %v495
      %v699 = vunpack.c.h.b16 %v495
      %v700 = vpack.c.b16 %v698, %v698
      %v701 = vpack.c.b16 %v699, %v699
      %v703 = vshrl.u32 %v700, 16
      %v705 = vrot.slane %v703, 5
      %v706 = vshll.u32 %v700, 16
      %v708 = vrot.slane %v706, 6
      %v709 = vor.u32 %v705, %v708
      %v710 = vrot.slane %v709, 4
      %v712 = vshrl.u32 %v701, 16
      %v714 = vrot.slane %v712, 5
      %v715 = vshll.u32 %v701, 16
      %v717 = vrot.slane %v715, 6
      %v718 = vor.u32 %v714, %v717
      %v719 = vsel %vm547, %v710, %v718
      %v720 = vrot.slane %v718, 4
      %v724 = vld [vmem:[#allocation2 + $0x34] sm:$0xc]
      %v725 = vsel %vm572, %v709, %v724
      %726 = vst [vmem:[#allocation2 + $0x34] sm:$0xc] %v725
      %727 = vst.msk [vmem:[#allocation2 + $0x38] sm:$0xf] %vm447, %v719
      %v728 = vld [vmem:[#allocation2 + $0x3c] sm:$0x7]
      %v729 = vsel %vm578, %v720, %v728
      %730 = vst [vmem:[#allocation2 + $0x3c] sm:$0x7] %v729
      %v732 = vunpack.c.l.b16 %v496
      %v733 = vunpack.c.h.b16 %v496
      %v734 = vpack.c.b16 %v732, %v732
      %v735 = vpack.c.b16 %v733, %v733
      %v737 = vshll.u32 %v734, 16
      %v739 = vrot.slane %v737, 5
      %v740 = vshrl.u32 %v734, 16
      %v742 = vrot.slane %v740, 4
      %v743 = vor.u32 %v742, %v739
      %v744 = vrot.slane %v743, 4
      %v746 = vshll.u32 %v735, 16
      %v748 = vrot.slane %v746, 5
      %v749 = vsel %vm589, %v744, %v748
      %v750 = vshrl.u32 %v735, 16
      %v752 = vrot.slane %v750, 4
      %v753 = vor.u32 %v752, %v748
      %v754 = vrot.slane %v753, 4
      %v758 = vld [vmem:[#allocation2 + $0x3c] sm:$0x8]
      %v759 = vsel %vm614, %v739, %v758
      %760 = vst [vmem:[#allocation2 + $0x3c] sm:$0x8] %v759
      %761 = vst.msk [vmem:[#allocation2 + $0x40] sm:$0xf] %vm447, %v749
      %v762 = vld [vmem:[#allocation2 + $0x44] sm:$0xf]
      %v763 = vsel %vm620, %v754, %v762
      %764 = vst [vmem:[#allocation2 + $0x44] sm:$0xf] %v763
      %v766 = vunpack.c.l.b16 %v497
      %v767 = vunpack.c.h.b16 %v497
      %v768 = vpack.c.b16 %v766, %v766
      %v769 = vpack.c.b16 %v767, %v767
      %v771 = vshrl.u32 %v768, 16
      %v773 = vrot.slane %v771, 7
      %v774 = vshll.u32 %v768, 16
      %v776 = vor.u32 %v773, %v774
      %v777 = vrot.slane %v773, 4
      %v779 = vshrl.u32 %v769, 16
      %v781 = vrot.slane %v779, 7
      %v782 = vshll.u32 %v769, 16
      %v784 = vor.u32 %v781, %v782
      %v785 = vsel %vm631, %v777, %v784
      %v786 = vrot.slane %v781, 4
      %v790 = vld [vmem:[#allocation2 + $0x48] sm:$0xf]
      %v791 = vsel %vm653, %v776, %v790
      %792 = vst [vmem:[#allocation2 + $0x48] sm:$0xf] %v791
      %793 = vst.msk [vmem:[#allocation2 + $0x4c] sm:$0xf] %vm447, %v785
      %v794 = vld [vmem:[#allocation2 + $0x50] sm:$0x1]
      %v795 = vsel %vm659, %v786, %v794
      %796 = vst [vmem:[#allocation2 + $0x50] sm:$0x1] %v795
      %p797 = scmp.gt.s32.totalorder %s23, 0
      // Predicated region
      $region41: #{key_value_forward.1} parent=39 // pred_check
        %p798 = pneg %p797
      $region42: #{key_value_forward.1} parent=39 // pred_check_branch
        %800 = sbr.rel (%p798) target = $region44
      $region43: #{key_value_forward.1} parent=39 // pred_region
        %v801 = vld [vmem:[%s402] sm:$0xff]
        %v802 = vld [vmem:[%s402 + $0x8] sm:$0xff]
        %v803 = vpack.c.bf16 %v802, %v801
        %v805 = vunpack.c.l.b16 %v803
        %v806 = vunpack.c.h.b16 %v803
        %v807 = vpack.c.b16 %v805, %v805
        %v808 = vpack.c.b16 %v806, %v806
        %v810 = vshrl.u32 %v807, 16
        %v812 = vrot.slane %v810, 7
        %v813 = vshll.u32 %v807, 16
        %v815 = vor.u32 %v812, %v813
        %v816 = vrot.slane %v812, 4
        %v818 = vshrl.u32 %v808, 16
        %v820 = vrot.slane %v818, 7
        %v821 = vshll.u32 %v808, 16
        %v823 = vor.u32 %v820, %v821
        %v824 = vsel %vm631, %v816, %v823
        %v825 = vrot.slane %v820, 4
        %v829 = vld [vmem:[#allocation2] sm:$0xf]
        %v830 = vsel %vm653, %v815, %v829
        %831 = vst [vmem:[#allocation2] sm:$0xf] %v830
        %832 = vst.msk [vmem:[#allocation2 + $0x4] sm:$0xf] %vm447, %v824
        %v833 = vld [vmem:[#allocation2 + $0x8] sm:$0x1]
        %v834 = vsel %vm659, %v825, %v833
        %835 = vst [vmem:[#allocation2 + $0x8] sm:$0x1] %v834
      $region44: #{key_value_forward.1} parent=39 // pred_fallthru
        _
      %p836 = scmp.lt.s32.totalorder %s23, 1
      // Predicated region
      $region45: #{key_value_forward.1} parent=39 // pred_check
        %p837 = pneg %p836
      $region46: #{key_value_forward.1} parent=39 // pred_check_branch
        %839 = sbr.rel (%p837) target = $region48
      $region47: #{key_value_forward.1} parent=39 // pred_region
        %v840 = vld [vmem:[%s419] sm:$0xff]
        %v841 = vld [vmem:[%s419 + $0x8] sm:$0xff]
        %v842 = vpack.c.bf16 %v841, %v840
        %v844 = vunpack.c.l.b16 %v842
        %v845 = vunpack.c.h.b16 %v842
        %v846 = vpack.c.b16 %v844, %v844
        %v847 = vpack.c.b16 %v845, %v845
        %v849 = vshrl.u32 %v846, 16
        %v851 = vrot.slane %v849, 6
        %v852 = vshll.u32 %v846, 16
        %v854 = vrot.slane %v852, 7
        %v855 = vor.u32 %v851, %v854
        %v856 = vrot.slane %v855, 4
        %v858 = vshrl.u32 %v847, 16
        %v860 = vrot.slane %v858, 6
        %v861 = vshll.u32 %v847, 16
        %v863 = vrot.slane %v861, 7
        %v864 = vor.u32 %v860, %v863
        %v865 = vsel %vm505, %v856, %v864
        %v866 = vrot.slane %v864, 4
        %v870 = vld [vmem:[#allocation2 + $0x50] sm:$0xe]
        %v871 = vsel %vm530, %v855, %v870
        %872 = vst [vmem:[#allocation2 + $0x50] sm:$0xe] %v871
        %873 = vst.msk [vmem:[#allocation2 + $0x54] sm:$0xf] %vm447, %v865
        %v874 = vld [vmem:[#allocation2 + $0x58] sm:$0x3]
        %v875 = vsel %vm536, %v866, %v874
        %876 = vst [vmem:[#allocation2 + $0x58] sm:$0x3] %v875
      $region48: #{key_value_forward.1} parent=39 // pred_fallthru
        _
      %v877 = vld [vmem:[#allocation2] sm:$0xf]
      %v878 = vld [vmem:[#allocation2 + $0x4] sm:$0xf]
      %v879 = vld [vmem:[#allocation2 + $0x8] sm:$0xf]
      %v880 = vld [vmem:[#allocation2 + $0xc] sm:$0xf]
      %v881 = vld [vmem:[#allocation2 + $0x10] sm:$0xf]
      %v882 = vld [vmem:[#allocation2 + $0x14] sm:$0xf]
      %v883 = vld [vmem:[#allocation2 + $0x18] sm:$0xf]
      %v884 = vld [vmem:[#allocation2 + $0x1c] sm:$0xf]
      %v885 = vld [vmem:[#allocation2 + $0x20] sm:$0xf]
      %v886 = vld [vmem:[#allocation2 + $0x24] sm:$0xf]
      %v887 = vld [vmem:[#allocation2 + $0x28] sm:$0xf]
      %v888 = vld [vmem:[#allocation2 + $0x2c] sm:$0xf]
      %v889 = vld [vmem:[#allocation2 + $0x30] sm:$0xf]
      %v890 = vld [vmem:[#allocation2 + $0x34] sm:$0xf]
      %v891 = vld [vmem:[#allocation2 + $0x38] sm:$0xf]
      %v892 = vld [vmem:[#allocation2 + $0x3c] sm:$0xf]
      %v893 = vld [vmem:[#allocation2 + $0x40] sm:$0xf]
      %v894 = vld [vmem:[#allocation2 + $0x44] sm:$0xf]
      %v895 = vld [vmem:[%s3] sm:$0xf]
      %v896 = vld [vmem:[#allocation2 + $0x48] sm:$0x1]
      %s897 = scalar_lea.vmem %s3, 4
      %v898 = vld [vmem:[%s897] sm:$0xf]
      %v918 = vunpack.c.l.b16 %v877
      %v919 = vunpack.c.l.b16 %v878
      %v920 = vunpack.c.l.b16 %v879
      %v921 = vunpack.c.l.b16 %v880
      %v922 = vunpack.c.l.b16 %v881
      %v923 = vunpack.c.l.b16 %v882
      %v924 = vunpack.c.l.b16 %v883
      %v925 = vunpack.c.l.b16 %v884
      %v926 = vunpack.c.l.b16 %v885
      %v927 = vunpack.c.l.b16 %v886
      %v928 = vunpack.c.l.b16 %v887
      %v929 = vunpack.c.l.b16 %v888
      %v930 = vunpack.c.l.b16 %v889
      %v931 = vunpack.c.l.b16 %v890
      %v932 = vunpack.c.l.b16 %v891
      %v933 = vunpack.c.l.b16 %v892
      %v934 = vunpack.c.l.b16 %v893
      %v935 = vunpack.c.l.b16 %v894
      %v936 = vunpack.c.l.b16 %v896
      %v937 = vpack.c.b16 %v919, %v918
      %v938 = vpack.c.b16 %v921, %v920
      %v939 = vpack.c.b16 %v923, %v922
      %v940 = vpack.c.b16 %v925, %v924
      %v941 = vpack.c.b16 %v927, %v926
      %v942 = vpack.c.b16 %v929, %v928
      %v943 = vpack.c.b16 %v931, %v930
      %v944 = vpack.c.b16 %v933, %v932
      %v945 = vpack.c.b16 %v935, %v934
      %v946 = vpack.c.b16 %v936, %v936
      %vm947 = vsmask.f32 7424
      %v949 = vshrl.u32 %v937, 16
      %v951 = vshll.u32 %v937, 16
      %v953 = vrot.slane %v951, 1
      %v954 = vor.u32 %v949, %v953
      %v956 = vshll.u32 %v938, 16
      %v958 = vrot.slane %v956, 1
      %v959 = vsel %vm947, %v954, %v958
      %v960 = vshrl.u32 %v938, 16
      %v962 = vor.u32 %v960, %v958
      %v964 = vshll.u32 %v939, 16
      %v966 = vrot.slane %v964, 1
      %v967 = vsel %vm947, %v962, %v966
      %v968 = vshrl.u32 %v939, 16
      %v970 = vor.u32 %v968, %v966
      %v972 = vshll.u32 %v940, 16
      %v974 = vrot.slane %v972, 1
      %v975 = vsel %vm947, %v970, %v974
      %v976 = vshrl.u32 %v940, 16
      %v978 = vor.u32 %v976, %v974
      %v980 = vshll.u32 %v941, 16
      %v982 = vrot.slane %v980, 1
      %v983 = vsel %vm947, %v978, %v982
      %v984 = vshrl.u32 %v941, 16
      %v986 = vor.u32 %v984, %v982
      %v988 = vshll.u32 %v942, 16
      %v990 = vrot.slane %v988, 1
      %v991 = vsel %vm947, %v986, %v990
      %v992 = vshrl.u32 %v942, 16
      %v994 = vor.u32 %v992, %v990
      %v996 = vshll.u32 %v943, 16
      %v998 = vrot.slane %v996, 1
      %v999 = vsel %vm947, %v994, %v998
      %v1000 = vshrl.u32 %v943, 16
      %v1002 = vor.u32 %v1000, %v998
      %v1004 = vshll.u32 %v944, 16
      %v1006 = vrot.slane %v1004, 1
      %v1007 = vsel %vm947, %v1002, %v1006
      %v1008 = vshrl.u32 %v944, 16
      %v1010 = vor.u32 %v1008, %v1006
      %v1012 = vshll.u32 %v945, 16
      %v1014 = vrot.slane %v1012, 1
      %v1015 = vsel %vm947, %v1010, %v1014
      %v1016 = vshrl.u32 %v945, 16
      %v1018 = vor.u32 %v1016, %v1014
      %v1020 = vshll.u32 %v946, 16
      %v1022 = vrot.slane %v1020, 1
      %v1023 = vsel %vm947, %v1018, %v1022
      %vm1024 = vcmask 64512
      %v1026 = vsel %vm1024, %v959, 0
      %v1029 = vsel %vm1024, %v967, 0
      %v1032 = vsel %vm1024, %v975, 0
      %v1035 = vsel %vm1024, %v983, 0
      %v1038 = vsel %vm1024, %v991, 0
      %v1041 = vsel %vm1024, %v999, 0
      %v1044 = vsel %vm1024, %v1007, 0
      %v1047 = vsel %vm1024, %v1015, 0
      %v1050 = vsel %vm1024, %v1023, 0
      %vm1052 = vcmask 1043456
      %v1054 = vsel %vm1052, %v898, 0
      %1056 = vmatprep.subr.bf16.mxu0 0
      %1057 = vmatpush1.bf16.msra.mxu0 %v1054
      %1058 = vmatprep.subr.bf16.mxu0 0
      %1059 = vmatpush1.bf16.msra.mxu0 0
      %1060 = vmatprep.subr.bf16.mxu0 0
      %1061 = vmatpush1.bf16.msra.mxu0 0
      %1062 = vmatprep.subr.bf16.mxu0 0
      %1063 = vmatpush1.bf16.msra.mxu0 0
      %1064 = vmatprep.subr.bf16.mxu0 0
      %1065 = vmatpush1.bf16.msra.mxu0 0
      %1066 = vmatprep.subr.bf16.mxu0 0
      %1067 = vmatpush1.bf16.msra.mxu0 0
      %1068 = vmatprep.subr.bf16.mxu0 0
      %1069 = vmatpush1.bf16.msra.mxu0 0
      %1070 = vmatprep.subr.bf16.mxu0 0
      %1071 = vmatpush1.bf16.msra.mxu0 0
      %1072 = vmatprep.subr.bf16.mxu0 0
      %1073 = vmatpush1.bf16.msra.mxu0 0
      %1074 = vmatprep.subr.bf16.mxu0 0
      %1075 = vmatpush1.bf16.msra.mxu0 0
      %1076 = vmatprep.subr.bf16.mxu0 0
      %1077 = vmatpush1.bf16.msra.mxu0 0
      %1078 = vmatprep.subr.bf16.mxu0 0
      %1079 = vmatpush1.bf16.msra.mxu0 0
      %1080 = vmatprep.subr.bf16.mxu0 0
      %1081 = vmatpush1.bf16.msra.mxu0 0
      %1082 = vmatprep.subr.bf16.mxu0 0
      %1083 = vmatpush1.bf16.msra.mxu0 0
      %1084 = vmatprep.subr.bf16.mxu0 0
      %1085 = vmatpush1.bf16.msra.mxu0 0
      %1086 = vmatprep.subr.bf16.mxu0 0
      %1087 = vmatpush1.bf16.msra.mxu0 0
      %1088 = vmatprep.mubr.bf16.mxu0 0
      %1089 = vmatmul.mubr.bf16.gmra.mrb[0].mxu0 %v1026
      %v1090 = vpop.f32.mrb[0].mxu0
      %v1091 = vadd.f32 0.0, %v1090
      %v1092 = vpop.f32.mrb[0].mxu0
      %v1093 = vpop.f32.mrb[0].mxu0
      %v1094 = vadd.f32 0.0, %v1093
      %v1095 = vpop.f32.mrb[0].mxu0
      %1096 = vmatprep.mubr.bf16.mxu0 0
      %1097 = vmatmul.mubr.bf16.gmra.mrb[0].mxu0 %v1029
      %v1098 = vpop.f32.mrb[0].mxu0
      %v1099 = vadd.f32 0.0, %v1098
      %v1100 = vpop.f32.mrb[0].mxu0
      %v1101 = vpop.f32.mrb[0].mxu0
      %v1102 = vadd.f32 0.0, %v1101
      %v1103 = vpop.f32.mrb[0].mxu0
      %1104 = vmatprep.mubr.bf16.mxu0 0
      %1105 = vmatmul.mubr.bf16.gmra.mrb[0].mxu0 %v1032
      %v1106 = vpop.f32.mrb[0].mxu0
      %v1107 = vadd.f32 0.0, %v1106
      %v1108 = vpop.f32.mrb[0].mxu0
      %v1109 = vpop.f32.mrb[0].mxu0
      %v1110 = vadd.f32 0.0, %v1109
      %v1111 = vpop.f32.mrb[0].mxu0
      %1112 = vmatprep.mubr.bf16.mxu0 0
      %1113 = vmatmul.mubr.bf16.gmra.mrb[0].mxu0 %v1035
      %v1114 = vpop.f32.mrb[0].mxu0
      %v1115 = vadd.f32 0.0, %v1114
      %v1116 = vpop.f32.mrb[0].mxu0
      %v1117 = vpop.f32.mrb[0].mxu0
      %v1118 = vadd.f32 0.0, %v1117
      %v1119 = vpop.f32.mrb[0].mxu0
      %1120 = vmatprep.mubr.bf16.mxu0 0
      %1121 = vmatmul.mubr.bf16.gmra.mrb[0].mxu0 %v1038
      %v1122 = vpop.f32.mrb[0].mxu0
      %v1123 = vadd.f32 0.0, %v1122
      %v1124 = vpop.f32.mrb[0].mxu0
      %v1125 = vpop.f32.mrb[0].mxu0
      %v1126 = vadd.f32 0.0, %v1125
      %v1127 = vpop.f32.mrb[0].mxu0
      %1128 = vmatprep.mubr.bf16.mxu0 0
      %1129 = vmatmul.mubr.bf16.gmra.mrb[0].mxu0 %v1041
      %v1130 = vpop.f32.mrb[0].mxu0
      %v1131 = vadd.f32 0.0, %v1130
      %v1132 = vpop.f32.mrb[0].mxu0
      %v1133 = vpop.f32.mrb[0].mxu0
      %v1134 = vadd.f32 0.0, %v1133
      %v1135 = vpop.f32.mrb[0].mxu0
      %1136 = vmatprep.mubr.bf16.mxu0 0
      %1137 = vmatmul.mubr.bf16.gmra.mrb[0].mxu0 %v1044
      %v1138 = vpop.f32.mrb[0].mxu0
      %v1139 = vadd.f32 0.0, %v1138
      %v1140 = vpop.f32.mrb[0].mxu0
      %v1141 = vpop.f32.mrb[0].mxu0
      %v1142 = vadd.f32 0.0, %v1141
      %v1143 = vpop.f32.mrb[0].mxu0
      %1144 = vmatprep.mubr.bf16.mxu0 0
      %1145 = vmatmul.mubr.bf16.gmra.mrb[0].mxu0 %v1047
      %v1146 = vpop.f32.mrb[0].mxu0
      %v1147 = vadd.f32 0.0, %v1146
      %v1148 = vpop.f32.mrb[0].mxu0
      %v1149 = vpop.f32.mrb[0].mxu0
      %v1150 = vadd.f32 0.0, %v1149
      %v1151 = vpop.f32.mrb[0].mxu0
      %1152 = vmatprep.mubr.bf16.mxu0 0
      %1153 = vmatmul.mubr.bf16.gmra.mrb[0].mxu0 %v1050
      %v1154 = vpop.f32.mrb[0].mxu0
      %v1155 = vadd.f32 0.0, %v1154
      %v1156 = vpop.f32.mrb[0].mxu0
      %v1157 = vpop.f32.mrb[0].mxu0
      %v1158 = vadd.f32 0.0, %v1157
      %v1159 = vpop.f32.mrb[0].mxu0
      %1160 = vdwg.mxu0
      %v1161 = vsel %vm1024, %v937, 0
      %v1163 = vsel %vm1024, %v938, 0
      %v1165 = vsel %vm1024, %v939, 0
      %v1167 = vsel %vm1024, %v940, 0
      %v1169 = vsel %vm1024, %v941, 0
      %v1171 = vsel %vm1024, %v942, 0
      %v1173 = vsel %vm1024, %v943, 0
      %v1175 = vsel %vm1024, %v944, 0
      %v1177 = vsel %vm1024, %v945, 0
      %v1180 = vsel %vm1052, %v895, 0
      %1182 = vmatprep.subr.bf16.mxu0 0
      %1183 = vmatpush1.bf16.msra.mxu0 %v1180
      %1184 = vmatprep.subr.bf16.mxu0 0
      %1185 = vmatpush1.bf16.msra.mxu0 0
      %1186 = vmatprep.subr.bf16.mxu0 0
      %1187 = vmatpush1.bf16.msra.mxu0 0
      %1188 = vmatprep.subr.bf16.mxu0 0
      %1189 = vmatpush1.bf16.msra.mxu0 0
      %1190 = vmatprep.subr.bf16.mxu0 0
      %1191 = vmatpush1.bf16.msra.mxu0 0
      %1192 = vmatprep.subr.bf16.mxu0 0
      %1193 = vmatpush1.bf16.msra.mxu0 0
      %1194 = vmatprep.subr.bf16.mxu0 0
      %1195 = vmatpush1.bf16.msra.mxu0 0
      %1196 = vmatprep.subr.bf16.mxu0 0
      %1197 = vmatpush1.bf16.msra.mxu0 0
      %1198 = vmatprep.subr.bf16.mxu0 0
      %1199 = vmatpush1.bf16.msra.mxu0 0
      %1200 = vmatprep.subr.bf16.mxu0 0
      %1201 = vmatpush1.bf16.msra.mxu0 0
      %1202 = vmatprep.subr.bf16.mxu0 0
      %1203 = vmatpush1.bf16.msra.mxu0 0
      %1204 = vmatprep.subr.bf16.mxu0 0
      %1205 = vmatpush1.bf16.msra.mxu0 0
      %1206 = vmatprep.subr.bf16.mxu0 0
      %1207 = vmatpush1.bf16.msra.mxu0 0
      %1208 = vmatprep.subr.bf16.mxu0 0
      %1209 = vmatpush1.bf16.msra.mxu0 0
      %1210 = vmatprep.subr.bf16.mxu0 0
      %1211 = vmatpush1.bf16.msra.mxu0 0
      %1212 = vmatprep.subr.bf16.mxu0 0
      %1213 = vmatpush1.bf16.msra.mxu0 0
      %1214 = vmatprep.mubr.bf16.mxu0 0
      %1215 = vmatmul.mubr.bf16.gmra.mrb[0].mxu0 %v1161
      %v1216 = vpop.f32.mrb[0].mxu0
      %v1217 = vadd.f32 %v1091, %v1216
      %v1218 = vpop.f32.mrb[0].mxu0
      %v1219 = vpop.f32.mrb[0].mxu0
      %v1220 = vadd.f32 %v1094, %v1219
      %v1221 = vpop.f32.mrb[0].mxu0
      %1222 = vmatprep.mubr.bf16.mxu0 0
      %1223 = vmatmul.mubr.bf16.gmra.mrb[0].mxu0 %v1163
      %v1224 = vpop.f32.mrb[0].mxu0
      %v1225 = vadd.f32 %v1099, %v1224
      %v1226 = vpop.f32.mrb[0].mxu0
      %v1227 = vpop.f32.mrb[0].mxu0
      %v1228 = vadd.f32 %v1102, %v1227
      %v1229 = vpop.f32.mrb[0].mxu0
      %1230 = vmatprep.mubr.bf16.mxu0 0
      %1231 = vmatmul.mubr.bf16.gmra.mrb[0].mxu0 %v1165
      %v1232 = vpop.f32.mrb[0].mxu0
      %v1233 = vadd.f32 %v1107, %v1232
      %v1234 = vpop.f32.mrb[0].mxu0
      %v1235 = vpop.f32.mrb[0].mxu0
      %v1236 = vadd.f32 %v1110, %v1235
      %v1237 = vpop.f32.mrb[0].mxu0
      %1238 = vmatprep.mubr.bf16.mxu0 0
      %1239 = vmatmul.mubr.bf16.gmra.mrb[0].mxu0 %v1167
      %v1240 = vpop.f32.mrb[0].mxu0
      %v1241 = vadd.f32 %v1115, %v1240
      %v1242 = vpop.f32.mrb[0].mxu0
      %v1243 = vpop.f32.mrb[0].mxu0
      %v1244 = vadd.f32 %v1118, %v1243
      %v1245 = vpop.f32.mrb[0].mxu0
      %1246 = vmatprep.mubr.bf16.mxu0 0
      %1247 = vmatmul.mubr.bf16.gmra.mrb[0].mxu0 %v1169
      %v1248 = vpop.f32.mrb[0].mxu0
      %v1249 = vadd.f32 %v1123, %v1248
      %v1250 = vpop.f32.mrb[0].mxu0
      %v1251 = vpop.f32.mrb[0].mxu0
      %v1252 = vadd.f32 %v1126, %v1251
      %v1253 = vpop.f32.mrb[0].mxu0
      %1254 = vmatprep.mubr.bf16.mxu0 0
      %1255 = vmatmul.mubr.bf16.gmra.mrb[0].mxu0 %v1171
      %v1256 = vpop.f32.mrb[0].mxu0
      %v1257 = vadd.f32 %v1131, %v1256
      %v1258 = vpop.f32.mrb[0].mxu0
      %v1259 = vpop.f32.mrb[0].mxu0
      %v1260 = vadd.f32 %v1134, %v1259
      %v1261 = vpop.f32.mrb[0].mxu0
      %1262 = vmatprep.mubr.bf16.mxu0 0
      %1263 = vmatmul.mubr.bf16.gmra.mrb[0].mxu0 %v1173
      %v1264 = vpop.f32.mrb[0].mxu0
      %v1265 = vadd.f32 %v1139, %v1264
      %v1266 = vpop.f32.mrb[0].mxu0
      %v1267 = vpop.f32.mrb[0].mxu0
      %v1268 = vadd.f32 %v1142, %v1267
      %v1269 = vpop.f32.mrb[0].mxu0
      %1270 = vmatprep.mubr.bf16.mxu0 0
      %1271 = vmatmul.mubr.bf16.gmra.mrb[0].mxu0 %v1175
      %v1272 = vpop.f32.mrb[0].mxu0
      %v1273 = vadd.f32 %v1147, %v1272
      %v1274 = vpop.f32.mrb[0].mxu0
      %v1275 = vpop.f32.mrb[0].mxu0
      %v1276 = vadd.f32 %v1150, %v1275
      %v1277 = vpop.f32.mrb[0].mxu0
      %1278 = vmatprep.mubr.bf16.mxu0 0
      %1279 = vmatmul.mubr.bf16.gmra.mrb[0].mxu0 %v1177
      %v1280 = vpop.f32.mrb[0].mxu0
      %v1281 = vadd.f32 %v1155, %v1280
      %v1282 = vpop.f32.mrb[0].mxu0
      %v1283 = vpop.f32.mrb[0].mxu0
      %v1284 = vadd.f32 %v1158, %v1283
      %v1285 = vpop.f32.mrb[0].mxu0
      %1286 = vdwg.mxu0
      %v1287 = vld [vmem:[#allocation2] sm:$0xe]
      %s1288 = scalar_lea.vmem %s3, 8
      %v1289 = vld [vmem:[%s1288] sm:$0xf]
      %v1291 = vunpack.c.l.b16 %v1287
      %v1292 = vpack.c.b16 %v919, %v1291
      %vm1293 = vcmask 1046528
      %v1294 = vrot.slane %v1292, 1
      %v1295 = vrot.slane %v938, 1
      %v1296 = vsel %vm1293, %v1294, %v1295
      %v1297 = vrot.slane %v939, 1
      %v1298 = vsel %vm1293, %v1295, %v1297
      %v1299 = vrot.slane %v940, 1
      %v1300 = vsel %vm1293, %v1297, %v1299
      %v1301 = vrot.slane %v941, 1
      %v1302 = vsel %vm1293, %v1299, %v1301
      %v1303 = vrot.slane %v942, 1
      %v1304 = vsel %vm1293, %v1301, %v1303
      %v1305 = vrot.slane %v943, 1
      %v1306 = vsel %vm1293, %v1303, %v1305
      %v1307 = vrot.slane %v944, 1
      %v1308 = vsel %vm1293, %v1305, %v1307
      %v1309 = vrot.slane %v945, 1
      %v1310 = vsel %vm1293, %v1307, %v1309
      %v1311 = vrot.slane %v946, 1
      %v1312 = vsel %vm1293, %v1309, %v1311
      %v1314 = vsel %vm1024, %v1296, 0
      %v1317 = vsel %vm1024, %v1298, 0
      %v1320 = vsel %vm1024, %v1300, 0
      %v1323 = vsel %vm1024, %v1302, 0
      %v1326 = vsel %vm1024, %v1304, 0
      %v1329 = vsel %vm1024, %v1306, 0
      %v1332 = vsel %vm1024, %v1308, 0
      %v1335 = vsel %vm1024, %v1310, 0
      %v1338 = vsel %vm1024, %v1312, 0
      %v1341 = vsel %vm1052, %v1289, 0
      %1343 = vmatprep.subr.bf16.mxu0 0
      %1344 = vmatpush1.bf16.msra.mxu0 %v1341
      %1345 = vmatprep.subr.bf16.mxu0 0
      %1346 = vmatpush1.bf16.msra.mxu0 0
      %1347 = vmatprep.subr.bf16.mxu0 0
      %1348 = vmatpush1.bf16.msra.mxu0 0
      %1349 = vmatprep.subr.bf16.mxu0 0
      %1350 = vmatpush1.bf16.msra.mxu0 0
      %1351 = vmatprep.subr.bf16.mxu0 0
      %1352 = vmatpush1.bf16.msra.mxu0 0
      %1353 = vmatprep.subr.bf16.mxu0 0
      %1354 = vmatpush1.bf16.msra.mxu0 0
      %1355 = vmatprep.subr.bf16.mxu0 0
      %1356 = vmatpush1.bf16.msra.mxu0 0
      %1357 = vmatprep.subr.bf16.mxu0 0
      %1358 = vmatpush1.bf16.msra.mxu0 0
      %1359 = vmatprep.subr.bf16.mxu0 0
      %1360 = vmatpush1.bf16.msra.mxu0 0
      %1361 = vmatprep.subr.bf16.mxu0 0
      %1362 = vmatpush1.bf16.msra.mxu0 0
      %1363 = vmatprep.subr.bf16.mxu0 0
      %1364 = vmatpush1.bf16.msra.mxu0 0
      %1365 = vmatprep.subr.bf16.mxu0 0
      %1366 = vmatpush1.bf16.msra.mxu0 0
      %1367 = vmatprep.subr.bf16.mxu0 0
      %1368 = vmatpush1.bf16.msra.mxu0 0
      %1369 = vmatprep.subr.bf16.mxu0 0
      %1370 = vmatpush1.bf16.msra.mxu0 0
      %1371 = vmatprep.subr.bf16.mxu0 0
      %1372 = vmatpush1.bf16.msra.mxu0 0
      %1373 = vmatprep.subr.bf16.mxu0 0
      %1374 = vmatpush1.bf16.msra.mxu0 0
      %1375 = vmatprep.mubr.bf16.mxu0 0
      %1376 = vmatmul.mubr.bf16.gmra.mrb[0].mxu0 %v1314
      %v1377 = vpop.f32.mrb[0].mxu0
      %v1378 = vadd.f32 0.0, %v1377
      %v1379 = vpop.f32.mrb[0].mxu0
      %v1380 = vpop.f32.mrb[0].mxu0
      %v1381 = vadd.f32 0.0, %v1380
      %v1382 = vpop.f32.mrb[0].mxu0
      %1383 = vmatprep.mubr.bf16.mxu0 0
      %1384 = vmatmul.mubr.bf16.gmra.mrb[0].mxu0 %v1317
      %v1385 = vpop.f32.mrb[0].mxu0
      %v1386 = vadd.f32 0.0, %v1385
      %v1387 = vpop.f32.mrb[0].mxu0
      %v1388 = vpop.f32.mrb[0].mxu0
      %v1389 = vadd.f32 0.0, %v1388
      %v1390 = vpop.f32.mrb[0].mxu0
      %1391 = vmatprep.mubr.bf16.mxu0 0
      %1392 = vmatmul.mubr.bf16.gmra.mrb[0].mxu0 %v1320
      %v1393 = vpop.f32.mrb[0].mxu0
      %v1394 = vadd.f32 0.0, %v1393
      %v1395 = vpop.f32.mrb[0].mxu0
      %v1396 = vpop.f32.mrb[0].mxu0
      %v1397 = vadd.f32 0.0, %v1396
      %v1398 = vpop.f32.mrb[0].mxu0
      %1399 = vmatprep.mubr.bf16.mxu0 0
      %1400 = vmatmul.mubr.bf16.gmra.mrb[0].mxu0 %v1323
      %v1401 = vpop.f32.mrb[0].mxu0
      %v1402 = vadd.f32 0.0, %v1401
      %v1403 = vpop.f32.mrb[0].mxu0
      %v1404 = vpop.f32.mrb[0].mxu0
      %v1405 = vadd.f32 0.0, %v1404
      %v1406 = vpop.f32.mrb[0].mxu0
      %1407 = vmatprep.mubr.bf16.mxu0 0
      %1408 = vmatmul.mubr.bf16.gmra.mrb[0].mxu0 %v1326
      %v1409 = vpop.f32.mrb[0].mxu0
      %v1410 = vadd.f32 0.0, %v1409
      %v1411 = vpop.f32.mrb[0].mxu0
      %v1412 = vpop.f32.mrb[0].mxu0
      %v1413 = vadd.f32 0.0, %v1412
      %v1414 = vpop.f32.mrb[0].mxu0
      %1415 = vmatprep.mubr.bf16.mxu0 0
      %1416 = vmatmul.mubr.bf16.gmra.mrb[0].mxu0 %v1329
      %v1417 = vpop.f32.mrb[0].mxu0
      %v1418 = vadd.f32 0.0, %v1417
      %v1419 = vpop.f32.mrb[0].mxu0
      %v1420 = vpop.f32.mrb[0].mxu0
      %v1421 = vadd.f32 0.0, %v1420
      %v1422 = vpop.f32.mrb[0].mxu0
      %1423 = vmatprep.mubr.bf16.mxu0 0
      %1424 = vmatmul.mubr.bf16.gmra.mrb[0].mxu0 %v1332
      %v1425 = vpop.f32.mrb[0].mxu0
      %v1426 = vadd.f32 0.0, %v1425
      %v1427 = vpop.f32.mrb[0].mxu0
      %v1428 = vpop.f32.mrb[0].mxu0
      %v1429 = vadd.f32 0.0, %v1428
      %v1430 = vpop.f32.mrb[0].mxu0
      %1431 = vmatprep.mubr.bf16.mxu0 0
      %1432 = vmatmul.mubr.bf16.gmra.mrb[0].mxu0 %v1335
      %v1433 = vpop.f32.mrb[0].mxu0
      %v1434 = vadd.f32 0.0, %v1433
      %v1435 = vpop.f32.mrb[0].mxu0
      %v1436 = vpop.f32.mrb[0].mxu0
      %v1437 = vadd.f32 0.0, %v1436
      %v1438 = vpop.f32.mrb[0].mxu0
      %1439 = vmatprep.mubr.bf16.mxu0 0
      %1440 = vmatmul.mubr.bf16.gmra.mrb[0].mxu0 %v1338
      %v1441 = vpop.f32.mrb[0].mxu0
      %v1442 = vadd.f32 0.0, %v1441
      %v1443 = vpop.f32.mrb[0].mxu0
      %v1444 = vpop.f32.mrb[0].mxu0
      %v1445 = vadd.f32 0.0, %v1444
      %v1446 = vpop.f32.mrb[0].mxu0
      %1447 = vdwg.mxu0
      %v1448 = vadd.f32 %v1217, %v1378
      %v1449 = vadd.f32 %v1220, %v1381
      %v1450 = vadd.f32 %v1225, %v1386
      %v1451 = vadd.f32 %v1228, %v1389
      %v1452 = vadd.f32 %v1233, %v1394
      %v1453 = vadd.f32 %v1236, %v1397
      %v1454 = vadd.f32 %v1241, %v1402
      %v1455 = vadd.f32 %v1244, %v1405
      %v1456 = vadd.f32 %v1249, %v1410
      %v1457 = vadd.f32 %v1252, %v1413
      %v1458 = vadd.f32 %v1257, %v1418
      %v1459 = vadd.f32 %v1260, %v1421
      %v1460 = vadd.f32 %v1265, %v1426
      %v1461 = vadd.f32 %v1268, %v1429
      %v1462 = vadd.f32 %v1273, %v1434
      %v1463 = vadd.f32 %v1276, %v1437
      %v1464 = vadd.f32 %v1281, %v1442
      %v1465 = vadd.f32 %v1284, %v1445
      %v1466 = vld [vmem:[#allocation2 + $0x8] sm:$0xe]
      %v1467 = vld [vmem:[#allocation2 + $0xc] sm:$0xf]
      %v1468 = vld [vmem:[#allocation2 + $0x10] sm:$0xf]
      %v1469 = vld [vmem:[#allocation2 + $0x14] sm:$0xf]
      %v1470 = vld [vmem:[#allocation2 + $0x18] sm:$0xf]
      %v1471 = vld [vmem:[#allocation2 + $0x1c] sm:$0xf]
      %v1472 = vld [vmem:[#allocation2 + $0x20] sm:$0xf]
      %v1473 = vld [vmem:[#allocation2 + $0x24] sm:$0xf]
      %v1474 = vld [vmem:[#allocation2 + $0x28] sm:$0xf]
      %v1475 = vld [vmem:[#allocation2 + $0x2c] sm:$0xf]
      %v1476 = vld [vmem:[#allocation2 + $0x30] sm:$0xf]
      %v1477 = vld [vmem:[#allocation2 + $0x34] sm:$0xf]
      %v1478 = vld [vmem:[#allocation2 + $0x38] sm:$0xf]
      %v1479 = vld [vmem:[#allocation2 + $0x3c] sm:$0xf]
      %v1480 = vld [vmem:[#allocation2 + $0x40] sm:$0xf]
      %v1481 = vld [vmem:[#allocation2 + $0x44] sm:$0xf]
      %v1482 = vld [vmem:[#allocation2 + $0x48] sm:$0xf]
      %v1483 = vld [vmem:[#allocation2 + $0x4c] sm:$0xf]
      %v1484 = vld [vmem:[#allocation2 + $0x50] sm:$0x1]
      %s1485 = scalar_lea.vmem %s3, 12
      %v1486 = vld [vmem:[%s1485] sm:$0xf]
      %v1506 = vunpack.c.l.b16 %v1466
      %v1507 = vunpack.c.l.b16 %v1467
      %v1508 = vunpack.c.l.b16 %v1468
      %v1509 = vunpack.c.l.b16 %v1469
      %v1510 = vunpack.c.l.b16 %v1470
      %v1511 = vunpack.c.l.b16 %v1471
      %v1512 = vunpack.c.l.b16 %v1472
      %v1513 = vunpack.c.l.b16 %v1473
      %v1514 = vunpack.c.l.b16 %v1474
      %v1515 = vunpack.c.l.b16 %v1475
      %v1516 = vunpack.c.l.b16 %v1476
      %v1517 = vunpack.c.l.b16 %v1477
      %v1518 = vunpack.c.l.b16 %v1478
      %v1519 = vunpack.c.l.b16 %v1479
      %v1520 = vunpack.c.l.b16 %v1480
      %v1521 = vunpack.c.l.b16 %v1481
      %v1522 = vunpack.c.l.b16 %v1482
      %v1523 = vunpack.c.l.b16 %v1483
      %v1524 = vunpack.c.l.b16 %v1484
      %v1525 = vpack.c.b16 %v1507, %v1506
      %v1526 = vpack.c.b16 %v1509, %v1508
      %v1527 = vpack.c.b16 %v1511, %v1510
      %v1528 = vpack.c.b16 %v1513, %v1512
      %v1529 = vpack.c.b16 %v1515, %v1514
      %v1530 = vpack.c.b16 %v1517, %v1516
      %v1531 = vpack.c.b16 %v1519, %v1518
      %v1532 = vpack.c.b16 %v1521, %v1520
      %v1533 = vpack.c.b16 %v1523, %v1522
      %v1534 = vpack.c.b16 %v1524, %v1524
      %v1535 = vrot.slane %v1525, 1
      %v1536 = vrot.slane %v1526, 1
      %v1537 = vsel %vm1293, %v1535, %v1536
      %v1538 = vrot.slane %v1527, 1
      %v1539 = vsel %vm1293, %v1536, %v1538
      %v1540 = vrot.slane %v1528, 1
      %v1541 = vsel %vm1293, %v1538, %v1540
      %v1542 = vrot.slane %v1529, 1
      %v1543 = vsel %vm1293, %v1540, %v1542
      %v1544 = vrot.slane %v1530, 1
      %v1545 = vsel %vm1293, %v1542, %v1544
      %v1546 = vrot.slane %v1531, 1
      %v1547 = vsel %vm1293, %v1544, %v1546
      %v1548 = vrot.slane %v1532, 1
      %v1549 = vsel %vm1293, %v1546, %v1548
      %v1550 = vrot.slane %v1533, 1
      %v1551 = vsel %vm1293, %v1548, %v1550
      %v1552 = vrot.slane %v1534, 1
      %v1553 = vsel %vm1293, %v1550, %v1552
      %v1555 = vsel %vm1024, %v1537, 0
      %v1558 = vsel %vm1024, %v1539, 0
      %v1561 = vsel %vm1024, %v1541, 0
      %v1564 = vsel %vm1024, %v1543, 0
      %v1567 = vsel %vm1024, %v1545, 0
      %v1570 = vsel %vm1024, %v1547, 0
      %v1573 = vsel %vm1024, %v1549, 0
      %v1576 = vsel %vm1024, %v1551, 0
      %v1579 = vsel %vm1024, %v1553, 0
      %v1582 = vsel %vm1052, %v1486, 0
      %1584 = vmatprep.subr.bf16.mxu0 0
      %1585 = vmatpush1.bf16.msra.mxu0 %v1582
      %1586 = vmatprep.subr.bf16.mxu0 0
      %1587 = vmatpush1.bf16.msra.mxu0 0
      %1588 = vmatprep.subr.bf16.mxu0 0
      %1589 = vmatpush1.bf16.msra.mxu0 0
      %1590 = vmatprep.subr.bf16.mxu0 0
      %1591 = vmatpush1.bf16.msra.mxu0 0
      %1592 = vmatprep.subr.bf16.mxu0 0
      %1593 = vmatpush1.bf16.msra.mxu0 0
      %1594 = vmatprep.subr.bf16.mxu0 0
      %1595 = vmatpush1.bf16.msra.mxu0 0
      %1596 = vmatprep.subr.bf16.mxu0 0
      %1597 = vmatpush1.bf16.msra.mxu0 0
      %1598 = vmatprep.subr.bf16.mxu0 0
      %1599 = vmatpush1.bf16.msra.mxu0 0
      %1600 = vmatprep.subr.bf16.mxu0 0
      %1601 = vmatpush1.bf16.msra.mxu0 0
      %1602 = vmatprep.subr.bf16.mxu0 0
      %1603 = vmatpush1.bf16.msra.mxu0 0
      %1604 = vmatprep.subr.bf16.mxu0 0
      %1605 = vmatpush1.bf16.msra.mxu0 0
      %1606 = vmatprep.subr.bf16.mxu0 0
      %1607 = vmatpush1.bf16.msra.mxu0 0
      %1608 = vmatprep.subr.bf16.mxu0 0
      %1609 = vmatpush1.bf16.msra.mxu0 0
      %1610 = vmatprep.subr.bf16.mxu0 0
      %1611 = vmatpush1.bf16.msra.mxu0 0
      %1612 = vmatprep.subr.bf16.mxu0 0
      %1613 = vmatpush1.bf16.msra.mxu0 0
      %1614 = vmatprep.subr.bf16.mxu0 0
      %1615 = vmatpush1.bf16.msra.mxu0 0
      %1616 = vmatprep.mubr.bf16.mxu0 0
      %1617 = vmatmul.mubr.bf16.gmra.mrb[0].mxu0 %v1555
      %v1618 = vpop.f32.mrb[0].mxu0
      %v1619 = vadd.f32 0.0, %v1618
      %v1620 = vpop.f32.mrb[0].mxu0
      %v1621 = vpop.f32.mrb[0].mxu0
      %v1622 = vadd.f32 0.0, %v1621
      %v1623 = vpop.f32.mrb[0].mxu0
      %1624 = vmatprep.mubr.bf16.mxu0 0
      %1625 = vmatmul.mubr.bf16.gmra.mrb[0].mxu0 %v1558
      %v1626 = vpop.f32.mrb[0].mxu0
      %v1627 = vadd.f32 0.0, %v1626
      %v1628 = vpop.f32.mrb[0].mxu0
      %v1629 = vpop.f32.mrb[0].mxu0
      %v1630 = vadd.f32 0.0, %v1629
      %v1631 = vpop.f32.mrb[0].mxu0
      %1632 = vmatprep.mubr.bf16.mxu0 0
      %1633 = vmatmul.mubr.bf16.gmra.mrb[0].mxu0 %v1561
      %v1634 = vpop.f32.mrb[0].mxu0
      %v1635 = vadd.f32 0.0, %v1634
      %v1636 = vpop.f32.mrb[0].mxu0
      %v1637 = vpop.f32.mrb[0].mxu0
      %v1638 = vadd.f32 0.0, %v1637
      %v1639 = vpop.f32.mrb[0].mxu0
      %1640 = vmatprep.mubr.bf16.mxu0 0
      %1641 = vmatmul.mubr.bf16.gmra.mrb[0].mxu0 %v1564
      %v1642 = vpop.f32.mrb[0].mxu0
      %v1643 = vadd.f32 0.0, %v1642
      %v1644 = vpop.f32.mrb[0].mxu0
      %v1645 = vpop.f32.mrb[0].mxu0
      %v1646 = vadd.f32 0.0, %v1645
      %v1647 = vpop.f32.mrb[0].mxu0
      %1648 = vmatprep.mubr.bf16.mxu0 0
      %1649 = vmatmul.mubr.bf16.gmra.mrb[0].mxu0 %v1567
      %v1650 = vpop.f32.mrb[0].mxu0
      %v1651 = vadd.f32 0.0, %v1650
      %v1652 = vpop.f32.mrb[0].mxu0
      %v1653 = vpop.f32.mrb[0].mxu0
      %v1654 = vadd.f32 0.0, %v1653
      %v1655 = vpop.f32.mrb[0].mxu0
      %1656 = vmatprep.mubr.bf16.mxu0 0
      %1657 = vmatmul.mubr.bf16.gmra.mrb[0].mxu0 %v1570
      %v1658 = vpop.f32.mrb[0].mxu0
      %v1659 = vadd.f32 0.0, %v1658
      %v1660 = vpop.f32.mrb[0].mxu0
      %v1661 = vpop.f32.mrb[0].mxu0
      %v1662 = vadd.f32 0.0, %v1661
      %v1663 = vpop.f32.mrb[0].mxu0
      %1664 = vmatprep.mubr.bf16.mxu0 0
      %1665 = vmatmul.mubr.bf16.gmra.mrb[0].mxu0 %v1573
      %v1666 = vpop.f32.mrb[0].mxu0
      %v1667 = vadd.f32 0.0, %v1666
      %v1668 = vpop.f32.mrb[0].mxu0
      %v1669 = vpop.f32.mrb[0].mxu0
      %v1670 = vadd.f32 0.0, %v1669
      %v1671 = vpop.f32.mrb[0].mxu0
      %1672 = vmatprep.mubr.bf16.mxu0 0
      %1673 = vmatmul.mubr.bf16.gmra.mrb[0].mxu0 %v1576
      %v1674 = vpop.f32.mrb[0].mxu0
      %v1675 = vadd.f32 0.0, %v1674
      %v1676 = vpop.f32.mrb[0].mxu0
      %v1677 = vpop.f32.mrb[0].mxu0
      %v1678 = vadd.f32 0.0, %v1677
      %v1679 = vpop.f32.mrb[0].mxu0
      %1680 = vmatprep.mubr.bf16.mxu0 0
      %1681 = vmatmul.mubr.bf16.gmra.mrb[0].mxu0 %v1579
      %v1682 = vpop.f32.mrb[0].mxu0
      %v1683 = vadd.f32 0.0, %v1682
      %v1684 = vpop.f32.mrb[0].mxu0
      %v1685 = vpop.f32.mrb[0].mxu0
      %v1686 = vadd.f32 0.0, %v1685
      %v1687 = vpop.f32.mrb[0].mxu0
      %1688 = vdwg.mxu0
      %v1689 = vadd.f32 %v1448, %v1619
      %v1690 = vadd.f32 %v1449, %v1622
      %v1691 = vadd.f32 %v1450, %v1627
      %v1692 = vadd.f32 %v1451, %v1630
      %v1693 = vadd.f32 %v1452, %v1635
      %v1694 = vadd.f32 %v1453, %v1638
      %v1695 = vadd.f32 %v1454, %v1643
      %v1696 = vadd.f32 %v1455, %v1646
      %v1697 = vadd.f32 %v1456, %v1651
      %v1698 = vadd.f32 %v1457, %v1654
      %v1699 = vadd.f32 %v1458, %v1659
      %v1700 = vadd.f32 %v1459, %v1662
      %v1701 = vadd.f32 %v1460, %v1667
      %v1702 = vadd.f32 %v1461, %v1670
      %v1703 = vadd.f32 %v1462, %v1675
      %v1704 = vadd.f32 %v1463, %v1678
      %v1705 = vadd.f32 %v1464, %v1683
      %v1706 = vadd.f32 %v1465, %v1686
      %v1707 = vld [vmem:[#allocation2 + $0x50] sm:$0x3]
      %s1708 = scalar_lea.vmem %s3, 16
      %v1709 = vld [vmem:[%s1708] sm:$0xf]
      %v1711 = vunpack.c.l.b16 %v1707
      %v1712 = vpack.c.b16 %v1711, %v1711
      %vm1713 = vsmask.f32 6400
      %v1715 = vshrl.u32 %v1525, 16
      %v1717 = vrot.slane %v1715, 1
      %v1718 = vshll.u32 %v1525, 16
      %v1720 = vrot.slane %v1718, 2
      %v1721 = vor.u32 %v1717, %v1720
      %v1723 = vshrl.u32 %v1526, 16
      %v1725 = vrot.slane %v1723, 1
      %v1726 = vshll.u32 %v1526, 16
      %v1728 = vrot.slane %v1726, 2
      %v1729 = vor.u32 %v1725, %v1728
      %v1730 = vsel %vm1713, %v1721, %v1729
      %v1732 = vshrl.u32 %v1527, 16
      %v1734 = vrot.slane %v1732, 1
      %v1735 = vshll.u32 %v1527, 16
      %v1737 = vrot.slane %v1735, 2
      %v1738 = vor.u32 %v1734, %v1737
      %v1739 = vsel %vm1713, %v1729, %v1738
      %v1741 = vshrl.u32 %v1528, 16
      %v1743 = vrot.slane %v1741, 1
      %v1744 = vshll.u32 %v1528, 16
      %v1746 = vrot.slane %v1744, 2
      %v1747 = vor.u32 %v1743, %v1746
      %v1748 = vsel %vm1713, %v1738, %v1747
      %v1750 = vshrl.u32 %v1529, 16
      %v1752 = vrot.slane %v1750, 1
      %v1753 = vshll.u32 %v1529, 16
      %v1755 = vrot.slane %v1753, 2
      %v1756 = vor.u32 %v1752, %v1755
      %v1757 = vsel %vm1713, %v1747, %v1756
      %v1759 = vshrl.u32 %v1530, 16
      %v1761 = vrot.slane %v1759, 1
      %v1762 = vshll.u32 %v1530, 16
      %v1764 = vrot.slane %v1762, 2
      %v1765 = vor.u32 %v1761, %v1764
      %v1766 = vsel %vm1713, %v1756, %v1765
      %v1768 = vshrl.u32 %v1531, 16
      %v1770 = vrot.slane %v1768, 1
      %v1771 = vshll.u32 %v1531, 16
      %v1773 = vrot.slane %v1771, 2
      %v1774 = vor.u32 %v1770, %v1773
      %v1775 = vsel %vm1713, %v1765, %v1774
      %v1777 = vshrl.u32 %v1532, 16
      %v1779 = vrot.slane %v1777, 1
      %v1780 = vshll.u32 %v1532, 16
      %v1782 = vrot.slane %v1780, 2
      %v1783 = vor.u32 %v1779, %v1782
      %v1784 = vsel %vm1713, %v1774, %v1783
      %v1786 = vshrl.u32 %v1533, 16
      %v1788 = vrot.slane %v1786, 1
      %v1789 = vshll.u32 %v1533, 16
      %v1791 = vrot.slane %v1789, 2
      %v1792 = vor.u32 %v1788, %v1791
      %v1793 = vsel %vm1713, %v1783, %v1792
      %v1795 = vshrl.u32 %v1712, 16
      %v1797 = vrot.slane %v1795, 1
      %v1798 = vshll.u32 %v1712, 16
      %v1800 = vrot.slane %v1798, 2
      %v1801 = vor.u32 %v1797, %v1800
      %v1802 = vsel %vm1713, %v1792, %v1801
      %v1804 = vsel %vm1024, %v1730, 0
      %v1807 = vsel %vm1024, %v1739, 0
      %v1810 = vsel %vm1024, %v1748, 0
      %v1813 = vsel %vm1024, %v1757, 0
      %v1816 = vsel %vm1024, %v1766, 0
      %v1819 = vsel %vm1024, %v1775, 0
      %v1822 = vsel %vm1024, %v1784, 0
      %v1825 = vsel %vm1024, %v1793, 0
      %v1828 = vsel %vm1024, %v1802, 0
      %v1831 = vsel %vm1052, %v1709, 0
      %1833 = vmatprep.subr.bf16.mxu0 0
      %1834 = vmatpush1.bf16.msra.mxu0 %v1831
      %1835 = vmatprep.subr.bf16.mxu0 0
      %1836 = vmatpush1.bf16.msra.mxu0 0
      %1837 = vmatprep.subr.bf16.mxu0 0
      %1838 = vmatpush1.bf16.msra.mxu0 0
      %1839 = vmatprep.subr.bf16.mxu0 0
      %1840 = vmatpush1.bf16.msra.mxu0 0
      %1841 = vmatprep.subr.bf16.mxu0 0
      %1842 = vmatpush1.bf16.msra.mxu0 0
      %1843 = vmatprep.subr.bf16.mxu0 0
      %1844 = vmatpush1.bf16.msra.mxu0 0
      %1845 = vmatprep.subr.bf16.mxu0 0
      %1846 = vmatpush1.bf16.msra.mxu0 0
      %1847 = vmatprep.subr.bf16.mxu0 0
      %1848 = vmatpush1.bf16.msra.mxu0 0
      %1849 = vmatprep.subr.bf16.mxu0 0
      %1850 = vmatpush1.bf16.msra.mxu0 0
      %1851 = vmatprep.subr.bf16.mxu0 0
      %1852 = vmatpush1.bf16.msra.mxu0 0
      %1853 = vmatprep.subr.bf16.mxu0 0
      %1854 = vmatpush1.bf16.msra.mxu0 0
      %1855 = vmatprep.subr.bf16.mxu0 0
      %1856 = vmatpush1.bf16.msra.mxu0 0
      %1857 = vmatprep.subr.bf16.mxu0 0
      %1858 = vmatpush1.bf16.msra.mxu0 0
      %1859 = vmatprep.subr.bf16.mxu0 0
      %1860 = vmatpush1.bf16.msra.mxu0 0
      %1861 = vmatprep.subr.bf16.mxu0 0
      %1862 = vmatpush1.bf16.msra.mxu0 0
      %1863 = vmatprep.subr.bf16.mxu0 0
      %1864 = vmatpush1.bf16.msra.mxu0 0
      %1865 = vmatprep.mubr.bf16.mxu0 0
      %1866 = vmatmul.mubr.bf16.gmra.mrb[0].mxu0 %v1804
      %v1867 = vpop.f32.mrb[0].mxu0
      %v1868 = vadd.f32 0.0, %v1867
      %v1869 = vpop.f32.mrb[0].mxu0
      %v1870 = vpop.f32.mrb[0].mxu0
      %v1871 = vadd.f32 0.0, %v1870
      %v1872 = vpop.f32.mrb[0].mxu0
      %1873 = vmatprep.mubr.bf16.mxu0 0
      %1874 = vmatmul.mubr.bf16.gmra.mrb[0].mxu0 %v1807
      %v1875 = vpop.f32.mrb[0].mxu0
      %v1876 = vadd.f32 0.0, %v1875
      %v1877 = vpop.f32.mrb[0].mxu0
      %v1878 = vpop.f32.mrb[0].mxu0
      %v1879 = vadd.f32 0.0, %v1878
      %v1880 = vpop.f32.mrb[0].mxu0
      %1881 = vmatprep.mubr.bf16.mxu0 0
      %1882 = vmatmul.mubr.bf16.gmra.mrb[0].mxu0 %v1810
      %v1883 = vpop.f32.mrb[0].mxu0
      %v1884 = vadd.f32 0.0, %v1883
      %v1885 = vpop.f32.mrb[0].mxu0
      %v1886 = vpop.f32.mrb[0].mxu0
      %v1887 = vadd.f32 0.0, %v1886
      %v1888 = vpop.f32.mrb[0].mxu0
      %1889 = vmatprep.mubr.bf16.mxu0 0
      %1890 = vmatmul.mubr.bf16.gmra.mrb[0].mxu0 %v1813
      %v1891 = vpop.f32.mrb[0].mxu0
      %v1892 = vadd.f32 0.0, %v1891
      %v1893 = vpop.f32.mrb[0].mxu0
      %v1894 = vpop.f32.mrb[0].mxu0
      %v1895 = vadd.f32 0.0, %v1894
      %v1896 = vpop.f32.mrb[0].mxu0
      %1897 = vmatprep.mubr.bf16.mxu0 0
      %1898 = vmatmul.mubr.bf16.gmra.mrb[0].mxu0 %v1816
      %v1899 = vpop.f32.mrb[0].mxu0
      %v1900 = vadd.f32 0.0, %v1899
      %v1901 = vpop.f32.mrb[0].mxu0
      %v1902 = vpop.f32.mrb[0].mxu0
      %v1903 = vadd.f32 0.0, %v1902
      %v1904 = vpop.f32.mrb[0].mxu0
      %1905 = vmatprep.mubr.bf16.mxu0 0
      %1906 = vmatmul.mubr.bf16.gmra.mrb[0].mxu0 %v1819
      %v1907 = vpop.f32.mrb[0].mxu0
      %v1908 = vadd.f32 0.0, %v1907
      %v1909 = vpop.f32.mrb[0].mxu0
      %v1910 = vpop.f32.mrb[0].mxu0
      %v1911 = vadd.f32 0.0, %v1910
      %v1912 = vpop.f32.mrb[0].mxu0
      %1913 = vmatprep.mubr.bf16.mxu0 0
      %1914 = vmatmul.mubr.bf16.gmra.mrb[0].mxu0 %v1822
      %v1915 = vpop.f32.mrb[0].mxu0
      %v1916 = vadd.f32 0.0, %v1915
      %v1917 = vpop.f32.mrb[0].mxu0
      %v1918 = vpop.f32.mrb[0].mxu0
      %v1919 = vadd.f32 0.0, %v1918
      %v1920 = vpop.f32.mrb[0].mxu0
      %1921 = vmatprep.mubr.bf16.mxu0 0
      %1922 = vmatmul.mubr.bf16.gmra.mrb[0].mxu0 %v1825
      %v1923 = vpop.f32.mrb[0].mxu0
      %v1924 = vadd.f32 0.0, %v1923
      %v1925 = vpop.f32.mrb[0].mxu0
      %v1926 = vpop.f32.mrb[0].mxu0
      %v1927 = vadd.f32 0.0, %v1926
      %v1928 = vpop.f32.mrb[0].mxu0
      %1929 = vmatprep.mubr.bf16.mxu0 0
      %1930 = vmatmul.mubr.bf16.gmra.mrb[0].mxu0 %v1828
      %v1931 = vpop.f32.mrb[0].mxu0
      %v1932 = vadd.f32 0.0, %v1931
      %v1933 = vpop.f32.mrb[0].mxu0
      %v1934 = vpop.f32.mrb[0].mxu0
      %v1935 = vadd.f32 0.0, %v1934
      %v1936 = vpop.f32.mrb[0].mxu0
      %1937 = vdwg.mxu0
      %v1938 = vadd.f32 %v1689, %v1868
      %v1939 = vadd.f32 %v1690, %v1871
      %v1940 = vadd.f32 %v1691, %v1876
      %v1941 = vadd.f32 %v1692, %v1879
      %v1942 = vadd.f32 %v1693, %v1884
      %v1943 = vadd.f32 %v1694, %v1887
      %v1944 = vadd.f32 %v1695, %v1892
      %v1945 = vadd.f32 %v1696, %v1895
      %v1946 = vadd.f32 %v1697, %v1900
      %v1947 = vadd.f32 %v1698, %v1903
      %v1948 = vadd.f32 %v1699, %v1908
      %v1949 = vadd.f32 %v1700, %v1911
      %v1950 = vadd.f32 %v1701, %v1916
      %v1951 = vadd.f32 %v1702, %v1919
      %v1952 = vadd.f32 %v1703, %v1924
      %v1953 = vadd.f32 %v1704, %v1927
      %v1954 = vadd.f32 %v1705, %v1932
      %v1955 = vadd.f32 %v1706, %v1935
      %v1956 = vld [vmem:[#allocation2 + $0x8] sm:$0xc]
      %s1957 = scalar_lea.vmem %s3, 20
      %v1958 = vld [vmem:[%s1957] sm:$0xf]
      %v1960 = vunpack.c.l.b16 %v1956
      %v1961 = vpack.c.b16 %v1507, %v1960
      %vm1962 = vcmask 1045504
      %v1963 = vrot.slane %v1961, 2
      %v1964 = vrot.slane %v1526, 2
      %v1965 = vsel %vm1962, %v1963, %v1964
      %v1966 = vrot.slane %v1527, 2
      %v1967 = vsel %vm1962, %v1964, %v1966
      %v1968 = vrot.slane %v1528, 2
      %v1969 = vsel %vm1962, %v1966, %v1968
      %v1970 = vrot.slane %v1529, 2
      %v1971 = vsel %vm1962, %v1968, %v1970
      %v1972 = vrot.slane %v1530, 2
      %v1973 = vsel %vm1962, %v1970, %v1972
      %v1974 = vrot.slane %v1531, 2
      %v1975 = vsel %vm1962, %v1972, %v1974
      %v1976 = vrot.slane %v1532, 2
      %v1977 = vsel %vm1962, %v1974, %v1976
      %v1978 = vrot.slane %v1533, 2
      %v1979 = vsel %vm1962, %v1976, %v1978
      %v1980 = vrot.slane %v1712, 2
      %v1981 = vsel %vm1962, %v1978, %v1980
      %v1983 = vsel %vm1024, %v1965, 0
      %v1986 = vsel %vm1024, %v1967, 0
      %v1989 = vsel %vm1024, %v1969, 0
      %v1992 = vsel %vm1024, %v1971, 0
      %v1995 = vsel %vm1024, %v1973, 0
      %v1998 = vsel %vm1024, %v1975, 0
      %v2001 = vsel %vm1024, %v1977, 0
      %v2004 = vsel %vm1024, %v1979, 0
      %v2007 = vsel %vm1024, %v1981, 0
      %v2010 = vsel %vm1052, %v1958, 0
      %2012 = vmatprep.subr.bf16.mxu0 0
      %2013 = vmatpush1.bf16.msra.mxu0 %v2010
      %2014 = vmatprep.subr.bf16.mxu0 0
      %2015 = vmatpush1.bf16.msra.mxu0 0
      %2016 = vmatprep.subr.bf16.mxu0 0
      %2017 = vmatpush1.bf16.msra.mxu0 0
      %2018 = vmatprep.subr.bf16.mxu0 0
      %2019 = vmatpush1.bf16.msra.mxu0 0
      %2020 = vmatprep.subr.bf16.mxu0 0
      %2021 = vmatpush1.bf16.msra.mxu0 0
      %2022 = vmatprep.subr.bf16.mxu0 0
      %2023 = vmatpush1.bf16.msra.mxu0 0
      %2024 = vmatprep.subr.bf16.mxu0 0
      %2025 = vmatpush1.bf16.msra.mxu0 0
      %2026 = vmatprep.subr.bf16.mxu0 0
      %2027 = vmatpush1.bf16.msra.mxu0 0
      %2028 = vmatprep.subr.bf16.mxu0 0
      %2029 = vmatpush1.bf16.msra.mxu0 0
      %2030 = vmatprep.subr.bf16.mxu0 0
      %2031 = vmatpush1.bf16.msra.mxu0 0
      %2032 = vmatprep.subr.bf16.mxu0 0
      %2033 = vmatpush1.bf16.msra.mxu0 0
      %2034 = vmatprep.subr.bf16.mxu0 0
      %2035 = vmatpush1.bf16.msra.mxu0 0
      %2036 = vmatprep.subr.bf16.mxu0 0
      %2037 = vmatpush1.bf16.msra.mxu0 0
      %2038 = vmatprep.subr.bf16.mxu0 0
      %2039 = vmatpush1.bf16.msra.mxu0 0
      %2040 = vmatprep.subr.bf16.mxu0 0
      %2041 = vmatpush1.bf16.msra.mxu0 0
      %2042 = vmatprep.subr.bf16.mxu0 0
      %2043 = vmatpush1.bf16.msra.mxu0 0
      %2044 = vmatprep.mubr.bf16.mxu0 0
      %2045 = vmatmul.mubr.bf16.gmra.mrb[0].mxu0 %v1983
      %v2046 = vpop.f32.mrb[0].mxu0
      %v2047 = vadd.f32 0.0, %v2046
      %v2048 = vpop.f32.mrb[0].mxu0
      %v2049 = vpop.f32.mrb[0].mxu0
      %v2050 = vadd.f32 0.0, %v2049
      %v2051 = vpop.f32.mrb[0].mxu0
      %2052 = vmatprep.mubr.bf16.mxu0 0
      %2053 = vmatmul.mubr.bf16.gmra.mrb[0].mxu0 %v1986
      %v2054 = vpop.f32.mrb[0].mxu0
      %v2055 = vadd.f32 0.0, %v2054
      %v2056 = vpop.f32.mrb[0].mxu0
      %v2057 = vpop.f32.mrb[0].mxu0
      %v2058 = vadd.f32 0.0, %v2057
      %v2059 = vpop.f32.mrb[0].mxu0
      %2060 = vmatprep.mubr.bf16.mxu0 0
      %2061 = vmatmul.mubr.bf16.gmra.mrb[0].mxu0 %v1989
      %v2062 = vpop.f32.mrb[0].mxu0
      %v2063 = vadd.f32 0.0, %v2062
      %v2064 = vpop.f32.mrb[0].mxu0
      %v2065 = vpop.f32.mrb[0].mxu0
      %v2066 = vadd.f32 0.0, %v2065
      %v2067 = vpop.f32.mrb[0].mxu0
      %2068 = vmatprep.mubr.bf16.mxu0 0
      %2069 = vmatmul.mubr.bf16.gmra.mrb[0].mxu0 %v1992
      %v2070 = vpop.f32.mrb[0].mxu0
      %v2071 = vadd.f32 0.0, %v2070
      %v2072 = vpop.f32.mrb[0].mxu0
      %v2073 = vpop.f32.mrb[0].mxu0
      %v2074 = vadd.f32 0.0, %v2073
      %v2075 = vpop.f32.mrb[0].mxu0
      %2076 = vmatprep.mubr.bf16.mxu0 0
      %2077 = vmatmul.mubr.bf16.gmra.mrb[0].mxu0 %v1995
      %v2078 = vpop.f32.mrb[0].mxu0
      %v2079 = vadd.f32 0.0, %v2078
      %v2080 = vpop.f32.mrb[0].mxu0
      %v2081 = vpop.f32.mrb[0].mxu0
      %v2082 = vadd.f32 0.0, %v2081
      %v2083 = vpop.f32.mrb[0].mxu0
      %2084 = vmatprep.mubr.bf16.mxu0 0
      %2085 = vmatmul.mubr.bf16.gmra.mrb[0].mxu0 %v1998
      %v2086 = vpop.f32.mrb[0].mxu0
      %v2087 = vadd.f32 0.0, %v2086
      %v2088 = vpop.f32.mrb[0].mxu0
      %v2089 = vpop.f32.mrb[0].mxu0
      %v2090 = vadd.f32 0.0, %v2089
      %v2091 = vpop.f32.mrb[0].mxu0
      %2092 = vmatprep.mubr.bf16.mxu0 0
      %2093 = vmatmul.mubr.bf16.gmra.mrb[0].mxu0 %v2001
      %v2094 = vpop.f32.mrb[0].mxu0
      %v2095 = vadd.f32 0.0, %v2094
      %v2096 = vpop.f32.mrb[0].mxu0
      %v2097 = vpop.f32.mrb[0].mxu0
      %v2098 = vadd.f32 0.0, %v2097
      %v2099 = vpop.f32.mrb[0].mxu0
      %2100 = vmatprep.mubr.bf16.mxu0 0
      %2101 = vmatmul.mubr.bf16.gmra.mrb[0].mxu0 %v2004
      %v2102 = vpop.f32.mrb[0].mxu0
      %v2103 = vadd.f32 0.0, %v2102
      %v2104 = vpop.f32.mrb[0].mxu0
      %v2105 = vpop.f32.mrb[0].mxu0
      %v2106 = vadd.f32 0.0, %v2105
      %v2107 = vpop.f32.mrb[0].mxu0
      %2108 = vmatprep.mubr.bf16.mxu0 0
      %2109 = vmatmul.mubr.bf16.gmra.mrb[0].mxu0 %v2007
      %v2110 = vpop.f32.mrb[0].mxu0
      %v2111 = vadd.f32 0.0, %v2110
      %v2112 = vpop.f32.mrb[0].mxu0
      %v2113 = vpop.f32.mrb[0].mxu0
      %v2114 = vadd.f32 0.0, %v2113
      %v2115 = vpop.f32.mrb[0].mxu0
      %2116 = vdwg.mxu0
      %v2117 = vadd.f32 %v1938, %v2047
      %v2118 = vadd.f32 %v1939, %v2050
      %v2119 = vadd.f32 %v1940, %v2055
      %v2120 = vadd.f32 %v1941, %v2058
      %v2121 = vadd.f32 %v1942, %v2063
      %v2122 = vadd.f32 %v1943, %v2066
      %v2123 = vadd.f32 %v1944, %v2071
      %v2124 = vadd.f32 %v1945, %v2074
      %v2125 = vadd.f32 %v1946, %v2079
      %v2126 = vadd.f32 %v1947, %v2082
      %v2127 = vadd.f32 %v1948, %v2087
      %v2128 = vadd.f32 %v1949, %v2090
      %v2129 = vadd.f32 %v1950, %v2095
      %v2130 = vadd.f32 %v1951, %v2098
      %v2131 = vadd.f32 %v1952, %v2103
      %v2132 = vadd.f32 %v1953, %v2106
      %v2133 = vadd.f32 %v1954, %v2111
      %v2134 = vadd.f32 %v1955, %v2114
      %v2135 = vld [vmem:[#allocation2 + $0x10] sm:$0xc]
      %v2136 = vld [vmem:[#allocation2 + $0x14] sm:$0xf]
      %v2137 = vld [vmem:[#allocation2 + $0x18] sm:$0xf]
      %v2138 = vld [vmem:[#allocation2 + $0x1c] sm:$0xf]
      %v2139 = vld [vmem:[#allocation2 + $0x20] sm:$0xf]
      %v2140 = vld [vmem:[#allocation2 + $0x24] sm:$0xf]
      %v2141 = vld [vmem:[#allocation2 + $0x28] sm:$0xf]
      %v2142 = vld [vmem:[#allocation2 + $0x2c] sm:$0xf]
      %v2143 = vld [vmem:[#allocation2 + $0x30] sm:$0xf]
      %v2144 = vld [vmem:[#allocation2 + $0x34] sm:$0xf]
      %v2145 = vld [vmem:[#allocation2 + $0x38] sm:$0xf]
      %v2146 = vld [vmem:[#allocation2 + $0x3c] sm:$0xf]
      %v2147 = vld [vmem:[#allocation2 + $0x40] sm:$0xf]
      %v2148 = vld [vmem:[#allocation2 + $0x44] sm:$0xf]
      %v2149 = vld [vmem:[#allocation2 + $0x48] sm:$0xf]
      %v2150 = vld [vmem:[#allocation2 + $0x4c] sm:$0xf]
      %v2151 = vld [vmem:[#allocation2 + $0x50] sm:$0xf]
      %v2152 = vld [vmem:[#allocation2 + $0x54] sm:$0xf]
      %v2153 = vld [vmem:[#allocation2 + $0x58] sm:$0x3]
      %s2154 = scalar_lea.vmem %s3, 24
      %v2155 = vld [vmem:[%s2154] sm:$0xf]
      %v2175 = vunpack.c.l.b16 %v2135
      %v2176 = vunpack.c.l.b16 %v2136
      %v2177 = vunpack.c.l.b16 %v2137
      %v2178 = vunpack.c.l.b16 %v2138
      %v2179 = vunpack.c.l.b16 %v2139
      %v2180 = vunpack.c.l.b16 %v2140
      %v2181 = vunpack.c.l.b16 %v2141
      %v2182 = vunpack.c.l.b16 %v2142
      %v2183 = vunpack.c.l.b16 %v2143
      %v2184 = vunpack.c.l.b16 %v2144
      %v2185 = vunpack.c.l.b16 %v2145
      %v2186 = vunpack.c.l.b16 %v2146
      %v2187 = vunpack.c.l.b16 %v2147
      %v2188 = vunpack.c.l.b16 %v2148
      %v2189 = vunpack.c.l.b16 %v2149
      %v2190 = vunpack.c.l.b16 %v2150
      %v2191 = vunpack.c.l.b16 %v2151
      %v2192 = vunpack.c.l.b16 %v2152
      %v2193 = vunpack.c.l.b16 %v2153
      %v2194 = vpack.c.b16 %v2176, %v2175
      %v2195 = vpack.c.b16 %v2178, %v2177
      %v2196 = vpack.c.b16 %v2180, %v2179
      %v2197 = vpack.c.b16 %v2182, %v2181
      %v2198 = vpack.c.b16 %v2184, %v2183
      %v2199 = vpack.c.b16 %v2186, %v2185
      %v2200 = vpack.c.b16 %v2188, %v2187
      %v2201 = vpack.c.b16 %v2190, %v2189
      %v2202 = vpack.c.b16 %v2192, %v2191
      %v2203 = vpack.c.b16 %v2193, %v2193
      %v2204 = vrot.slane %v2194, 2
      %v2205 = vrot.slane %v2195, 2
      %v2206 = vsel %vm1962, %v2204, %v2205
      %v2207 = vrot.slane %v2196, 2
      %v2208 = vsel %vm1962, %v2205, %v2207
      %v2209 = vrot.slane %v2197, 2
      %v2210 = vsel %vm1962, %v2207, %v2209
      %v2211 = vrot.slane %v2198, 2
      %v2212 = vsel %vm1962, %v2209, %v2211
      %v2213 = vrot.slane %v2199, 2
      %v2214 = vsel %vm1962, %v2211, %v2213
      %v2215 = vrot.slane %v2200, 2
      %v2216 = vsel %vm1962, %v2213, %v2215
      %v2217 = vrot.slane %v2201, 2
      %v2218 = vsel %vm1962, %v2215, %v2217
      %v2219 = vrot.slane %v2202, 2
      %v2220 = vsel %vm1962, %v2217, %v2219
      %v2221 = vrot.slane %v2203, 2
      %v2222 = vsel %vm1962, %v2219, %v2221
      %v2224 = vsel %vm1024, %v2206, 0
      %v2227 = vsel %vm1024, %v2208, 0
      %v2230 = vsel %vm1024, %v2210, 0
      %v2233 = vsel %vm1024, %v2212, 0
      %v2236 = vsel %vm1024, %v2214, 0
      %v2239 = vsel %vm1024, %v2216, 0
      %v2242 = vsel %vm1024, %v2218, 0
      %v2245 = vsel %vm1024, %v2220, 0
      %v2248 = vsel %vm1024, %v2222, 0
      %v2251 = vsel %vm1052, %v2155, 0
      %2253 = vmatprep.subr.bf16.mxu0 0
      %2254 = vmatpush1.bf16.msra.mxu0 %v2251
      %2255 = vmatprep.subr.bf16.mxu0 0
      %2256 = vmatpush1.bf16.msra.mxu0 0
      %2257 = vmatprep.subr.bf16.mxu0 0
      %2258 = vmatpush1.bf16.msra.mxu0 0
      %2259 = vmatprep.subr.bf16.mxu0 0
      %2260 = vmatpush1.bf16.msra.mxu0 0
      %2261 = vmatprep.subr.bf16.mxu0 0
      %2262 = vmatpush1.bf16.msra.mxu0 0
      %2263 = vmatprep.subr.bf16.mxu0 0
      %2264 = vmatpush1.bf16.msra.mxu0 0
      %2265 = vmatprep.subr.bf16.mxu0 0
      %2266 = vmatpush1.bf16.msra.mxu0 0
      %2267 = vmatprep.subr.bf16.mxu0 0
      %2268 = vmatpush1.bf16.msra.mxu0 0
      %2269 = vmatprep.subr.bf16.mxu0 0
      %2270 = vmatpush1.bf16.msra.mxu0 0
      %2271 = vmatprep.subr.bf16.mxu0 0
      %2272 = vmatpush1.bf16.msra.mxu0 0
      %2273 = vmatprep.subr.bf16.mxu0 0
      %2274 = vmatpush1.bf16.msra.mxu0 0
      %2275 = vmatprep.subr.bf16.mxu0 0
      %2276 = vmatpush1.bf16.msra.mxu0 0
      %2277 = vmatprep.subr.bf16.mxu0 0
      %2278 = vmatpush1.bf16.msra.mxu0 0
      %2279 = vmatprep.subr.bf16.mxu0 0
      %2280 = vmatpush1.bf16.msra.mxu0 0
      %2281 = vmatprep.subr.bf16.mxu0 0
      %2282 = vmatpush1.bf16.msra.mxu0 0
      %2283 = vmatprep.subr.bf16.mxu0 0
      %2284 = vmatpush1.bf16.msra.mxu0 0
      %2285 = vmatprep.mubr.bf16.mxu0 0
      %2286 = vmatmul.mubr.bf16.gmra.mrb[0].mxu0 %v2224
      %v2287 = vpop.f32.mrb[0].mxu0
      %v2288 = vadd.f32 0.0, %v2287
      %v2289 = vpop.f32.mrb[0].mxu0
      %v2290 = vpop.f32.mrb[0].mxu0
      %v2291 = vadd.f32 0.0, %v2290
      %v2292 = vpop.f32.mrb[0].mxu0
      %2293 = vmatprep.mubr.bf16.mxu0 0
      %2294 = vmatmul.mubr.bf16.gmra.mrb[0].mxu0 %v2227
      %v2295 = vpop.f32.mrb[0].mxu0
      %v2296 = vadd.f32 0.0, %v2295
      %v2297 = vpop.f32.mrb[0].mxu0
      %v2298 = vpop.f32.mrb[0].mxu0
      %v2299 = vadd.f32 0.0, %v2298
      %v2300 = vpop.f32.mrb[0].mxu0
      %2301 = vmatprep.mubr.bf16.mxu0 0
      %2302 = vmatmul.mubr.bf16.gmra.mrb[0].mxu0 %v2230
      %v2303 = vpop.f32.mrb[0].mxu0
      %v2304 = vadd.f32 0.0, %v2303
      %v2305 = vpop.f32.mrb[0].mxu0
      %v2306 = vpop.f32.mrb[0].mxu0
      %v2307 = vadd.f32 0.0, %v2306
      %v2308 = vpop.f32.mrb[0].mxu0
      %2309 = vmatprep.mubr.bf16.mxu0 0
      %2310 = vmatmul.mubr.bf16.gmra.mrb[0].mxu0 %v2233
      %v2311 = vpop.f32.mrb[0].mxu0
      %v2312 = vadd.f32 0.0, %v2311
      %v2313 = vpop.f32.mrb[0].mxu0
      %v2314 = vpop.f32.mrb[0].mxu0
      %v2315 = vadd.f32 0.0, %v2314
      %v2316 = vpop.f32.mrb[0].mxu0
      %2317 = vmatprep.mubr.bf16.mxu0 0
      %2318 = vmatmul.mubr.bf16.gmra.mrb[0].mxu0 %v2236
      %v2319 = vpop.f32.mrb[0].mxu0
      %v2320 = vadd.f32 0.0, %v2319
      %v2321 = vpop.f32.mrb[0].mxu0
      %v2322 = vpop.f32.mrb[0].mxu0
      %v2323 = vadd.f32 0.0, %v2322
      %v2324 = vpop.f32.mrb[0].mxu0
      %2325 = vmatprep.mubr.bf16.mxu0 0
      %2326 = vmatmul.mubr.bf16.gmra.mrb[0].mxu0 %v2239
      %v2327 = vpop.f32.mrb[0].mxu0
      %v2328 = vadd.f32 0.0, %v2327
      %v2329 = vpop.f32.mrb[0].mxu0
      %v2330 = vpop.f32.mrb[0].mxu0
      %v2331 = vadd.f32 0.0, %v2330
      %v2332 = vpop.f32.mrb[0].mxu0
      %2333 = vmatprep.mubr.bf16.mxu0 0
      %2334 = vmatmul.mubr.bf16.gmra.mrb[0].mxu0 %v2242
      %v2335 = vpop.f32.mrb[0].mxu0
      %v2336 = vadd.f32 0.0, %v2335
      %v2337 = vpop.f32.mrb[0].mxu0
      %v2338 = vpop.f32.mrb[0].mxu0
      %v2339 = vadd.f32 0.0, %v2338
      %v2340 = vpop.f32.mrb[0].mxu0
      %2341 = vmatprep.mubr.bf16.mxu0 0
      %2342 = vmatmul.mubr.bf16.gmra.mrb[0].mxu0 %v2245
      %v2343 = vpop.f32.mrb[0].mxu0
      %v2344 = vadd.f32 0.0, %v2343
      %v2345 = vpop.f32.mrb[0].mxu0
      %v2346 = vpop.f32.mrb[0].mxu0
      %v2347 = vadd.f32 0.0, %v2346
      %v2348 = vpop.f32.mrb[0].mxu0
      %2349 = vmatprep.mubr.bf16.mxu0 0
      %2350 = vmatmul.mubr.bf16.gmra.mrb[0].mxu0 %v2248
      %v2351 = vpop.f32.mrb[0].mxu0
      %v2352 = vadd.f32 0.0, %v2351
      %v2353 = vpop.f32.mrb[0].mxu0
      %v2354 = vpop.f32.mrb[0].mxu0
      %v2355 = vadd.f32 0.0, %v2354
      %v2356 = vpop.f32.mrb[0].mxu0
      %2357 = vdwg.mxu0
      %v2358 = vadd.f32 %v2117, %v2288
      %v2359 = vadd.f32 %v2118, %v2291
      %v2360 = vadd.f32 %v2119, %v2296
      %v2361 = vadd.f32 %v2120, %v2299
      %v2362 = vadd.f32 %v2121, %v2304
      %v2363 = vadd.f32 %v2122, %v2307
      %v2364 = vadd.f32 %v2123, %v2312
      %v2365 = vadd.f32 %v2124, %v2315
      %v2366 = vadd.f32 %v2125, %v2320
      %v2367 = vadd.f32 %v2126, %v2323
      %v2368 = vadd.f32 %v2127, %v2328
      %v2369 = vadd.f32 %v2128, %v2331
      %v2370 = vadd.f32 %v2129, %v2336
      %v2371 = vadd.f32 %v2130, %v2339
      %v2372 = vadd.f32 %v2131, %v2344
      %v2373 = vadd.f32 %v2132, %v2347
      %v2374 = vadd.f32 %v2133, %v2352
      %v2375 = vadd.f32 %v2134, %v2355
      %v2376 = vld [vmem:[#allocation2 + $0x58] sm:$0x7]
      %s2377 = scalar_lea.vmem %s3, 28
      %v2378 = vld [vmem:[%s2377] sm:$0xf]
      %v2380 = vunpack.c.l.b16 %v2376
      %v2381 = vpack.c.b16 %v2380, %v2380
      %vm2382 = vsmask.f32 5376
      %v2384 = vshrl.u32 %v2194, 16
      %v2386 = vrot.slane %v2384, 2
      %v2387 = vshll.u32 %v2194, 16
      %v2389 = vrot.slane %v2387, 3
      %v2390 = vor.u32 %v2386, %v2389
      %v2392 = vshrl.u32 %v2195, 16
      %v2394 = vrot.slane %v2392, 2
      %v2395 = vshll.u32 %v2195, 16
      %v2397 = vrot.slane %v2395, 3
      %v2398 = vor.u32 %v2394, %v2397
      %v2399 = vsel %vm2382, %v2390, %v2398
      %v2401 = vshrl.u32 %v2196, 16
      %v2403 = vrot.slane %v2401, 2
      %v2404 = vshll.u32 %v2196, 16
      %v2406 = vrot.slane %v2404, 3
      %v2407 = vor.u32 %v2403, %v2406
      %v2408 = vsel %vm2382, %v2398, %v2407
      %v2410 = vshrl.u32 %v2197, 16
      %v2412 = vrot.slane %v2410, 2
      %v2413 = vshll.u32 %v2197, 16
      %v2415 = vrot.slane %v2413, 3
      %v2416 = vor.u32 %v2412, %v2415
      %v2417 = vsel %vm2382, %v2407, %v2416
      %v2419 = vshrl.u32 %v2198, 16
      %v2421 = vrot.slane %v2419, 2
      %v2422 = vshll.u32 %v2198, 16
      %v2424 = vrot.slane %v2422, 3
      %v2425 = vor.u32 %v2421, %v2424
      %v2426 = vsel %vm2382, %v2416, %v2425
      %v2428 = vshrl.u32 %v2199, 16
      %v2430 = vrot.slane %v2428, 2
      %v2431 = vshll.u32 %v2199, 16
      %v2433 = vrot.slane %v2431, 3
      %v2434 = vor.u32 %v2430, %v2433
      %v2435 = vsel %vm2382, %v2425, %v2434
      %v2437 = vshrl.u32 %v2200, 16
      %v2439 = vrot.slane %v2437, 2
      %v2440 = vshll.u32 %v2200, 16
      %v2442 = vrot.slane %v2440, 3
      %v2443 = vor.u32 %v2439, %v2442
      %v2444 = vsel %vm2382, %v2434, %v2443
      %v2446 = vshrl.u32 %v2201, 16
      %v2448 = vrot.slane %v2446, 2
      %v2449 = vshll.u32 %v2201, 16
      %v2451 = vrot.slane %v2449, 3
      %v2452 = vor.u32 %v2448, %v2451
      %v2453 = vsel %vm2382, %v2443, %v2452
      %v2455 = vshrl.u32 %v2202, 16
      %v2457 = vrot.slane %v2455, 2
      %v2458 = vshll.u32 %v2202, 16
      %v2460 = vrot.slane %v2458, 3
      %v2461 = vor.u32 %v2457, %v2460
      %v2462 = vsel %vm2382, %v2452, %v2461
      %v2464 = vshrl.u32 %v2381, 16
      %v2466 = vrot.slane %v2464, 2
      %v2467 = vshll.u32 %v2381, 16
      %v2469 = vrot.slane %v2467, 3
      %v2470 = vor.u32 %v2466, %v2469
      %v2471 = vsel %vm2382, %v2461, %v2470
      %v2473 = vsel %vm1024, %v2399, 0
      %v2476 = vsel %vm1024, %v2408, 0
      %v2479 = vsel %vm1024, %v2417, 0
      %v2482 = vsel %vm1024, %v2426, 0
      %v2485 = vsel %vm1024, %v2435, 0
      %v2488 = vsel %vm1024, %v2444, 0
      %v2491 = vsel %vm1024, %v2453, 0
      %v2494 = vsel %vm1024, %v2462, 0
      %v2497 = vsel %vm1024, %v2471, 0
      %v2500 = vsel %vm1052, %v2378, 0
      %2502 = vmatprep.subr.bf16.mxu0 0
      %2503 = vmatpush1.bf16.msra.mxu0 %v2500
      %2504 = vmatprep.subr.bf16.mxu0 0
      %2505 = vmatpush1.bf16.msra.mxu0 0
      %2506 = vmatprep.subr.bf16.mxu0 0
      %2507 = vmatpush1.bf16.msra.mxu0 0
      %2508 = vmatprep.subr.bf16.mxu0 0
      %2509 = vmatpush1.bf16.msra.mxu0 0
      %2510 = vmatprep.subr.bf16.mxu0 0
      %2511 = vmatpush1.bf16.msra.mxu0 0
      %2512 = vmatprep.subr.bf16.mxu0 0
      %2513 = vmatpush1.bf16.msra.mxu0 0
      %2514 = vmatprep.subr.bf16.mxu0 0
      %2515 = vmatpush1.bf16.msra.mxu0 0
      %2516 = vmatprep.subr.bf16.mxu0 0
      %2517 = vmatpush1.bf16.msra.mxu0 0
      %2518 = vmatprep.subr.bf16.mxu0 0
      %2519 = vmatpush1.bf16.msra.mxu0 0
      %2520 = vmatprep.subr.bf16.mxu0 0
      %2521 = vmatpush1.bf16.msra.mxu0 0
      %2522 = vmatprep.subr.bf16.mxu0 0
      %2523 = vmatpush1.bf16.msra.mxu0 0
      %2524 = vmatprep.subr.bf16.mxu0 0
      %2525 = vmatpush1.bf16.msra.mxu0 0
      %2526 = vmatprep.subr.bf16.mxu0 0
      %2527 = vmatpush1.bf16.msra.mxu0 0
      %2528 = vmatprep.subr.bf16.mxu0 0
      %2529 = vmatpush1.bf16.msra.mxu0 0
      %2530 = vmatprep.subr.bf16.mxu0 0
      %2531 = vmatpush1.bf16.msra.mxu0 0
      %2532 = vmatprep.subr.bf16.mxu0 0
      %2533 = vmatpush1.bf16.msra.mxu0 0
      %2534 = vmatprep.mubr.bf16.mxu0 0
      %2535 = vmatmul.mubr.bf16.gmra.mrb[0].mxu0 %v2473
      %v2536 = vpop.f32.mrb[0].mxu0
      %v2537 = vadd.f32 0.0, %v2536
      %v2538 = vpop.f32.mrb[0].mxu0
      %v2539 = vpop.f32.mrb[0].mxu0
      %v2540 = vadd.f32 0.0, %v2539
      %v2541 = vpop.f32.mrb[0].mxu0
      %2542 = vmatprep.mubr.bf16.mxu0 0
      %2543 = vmatmul.mubr.bf16.gmra.mrb[0].mxu0 %v2476
      %v2544 = vpop.f32.mrb[0].mxu0
      %v2545 = vadd.f32 0.0, %v2544
      %v2546 = vpop.f32.mrb[0].mxu0
      %v2547 = vpop.f32.mrb[0].mxu0
      %v2548 = vadd.f32 0.0, %v2547
      %v2549 = vpop.f32.mrb[0].mxu0
      %2550 = vmatprep.mubr.bf16.mxu0 0
      %2551 = vmatmul.mubr.bf16.gmra.mrb[0].mxu0 %v2479
      %v2552 = vpop.f32.mrb[0].mxu0
      %v2553 = vadd.f32 0.0, %v2552
      %v2554 = vpop.f32.mrb[0].mxu0
      %v2555 = vpop.f32.mrb[0].mxu0
      %v2556 = vadd.f32 0.0, %v2555
      %v2557 = vpop.f32.mrb[0].mxu0
      %2558 = vmatprep.mubr.bf16.mxu0 0
      %2559 = vmatmul.mubr.bf16.gmra.mrb[0].mxu0 %v2482
      %v2560 = vpop.f32.mrb[0].mxu0
      %v2561 = vadd.f32 0.0, %v2560
      %v2562 = vpop.f32.mrb[0].mxu0
      %v2563 = vpop.f32.mrb[0].mxu0
      %v2564 = vadd.f32 0.0, %v2563
      %v2565 = vpop.f32.mrb[0].mxu0
      %2566 = vmatprep.mubr.bf16.mxu0 0
      %2567 = vmatmul.mubr.bf16.gmra.mrb[0].mxu0 %v2485
      %v2568 = vpop.f32.mrb[0].mxu0
      %v2569 = vadd.f32 0.0, %v2568
      %v2570 = vpop.f32.mrb[0].mxu0
      %v2571 = vpop.f32.mrb[0].mxu0
      %v2572 = vadd.f32 0.0, %v2571
      %v2573 = vpop.f32.mrb[0].mxu0
      %2574 = vmatprep.mubr.bf16.mxu0 0
      %2575 = vmatmul.mubr.bf16.gmra.mrb[0].mxu0 %v2488
      %v2576 = vpop.f32.mrb[0].mxu0
      %v2577 = vadd.f32 0.0, %v2576
      %v2578 = vpop.f32.mrb[0].mxu0
      %v2579 = vpop.f32.mrb[0].mxu0
      %v2580 = vadd.f32 0.0, %v2579
      %v2581 = vpop.f32.mrb[0].mxu0
      %2582 = vmatprep.mubr.bf16.mxu0 0
      %2583 = vmatmul.mubr.bf16.gmra.mrb[0].mxu0 %v2491
      %v2584 = vpop.f32.mrb[0].mxu0
      %v2585 = vadd.f32 0.0, %v2584
      %v2586 = vpop.f32.mrb[0].mxu0
      %v2587 = vpop.f32.mrb[0].mxu0
      %v2588 = vadd.f32 0.0, %v2587
      %v2589 = vpop.f32.mrb[0].mxu0
      %2590 = vmatprep.mubr.bf16.mxu0 0
      %2591 = vmatmul.mubr.bf16.gmra.mrb[0].mxu0 %v2494
      %v2592 = vpop.f32.mrb[0].mxu0
      %v2593 = vadd.f32 0.0, %v2592
      %v2594 = vpop.f32.mrb[0].mxu0
      %v2595 = vpop.f32.mrb[0].mxu0
      %v2596 = vadd.f32 0.0, %v2595
      %v2597 = vpop.f32.mrb[0].mxu0
      %2598 = vmatprep.mubr.bf16.mxu0 0
      %2599 = vmatmul.mubr.bf16.gmra.mrb[0].mxu0 %v2497
      %v2600 = vpop.f32.mrb[0].mxu0
      %v2601 = vadd.f32 0.0, %v2600
      %v2602 = vpop.f32.mrb[0].mxu0
      %v2603 = vpop.f32.mrb[0].mxu0
      %v2604 = vadd.f32 0.0, %v2603
      %v2605 = vpop.f32.mrb[0].mxu0
      %2606 = vdwg.mxu0
      %v2607 = vadd.f32 %v2358, %v2537
      %v2608 = vadd.f32 %v2359, %v2540
      %v2609 = vadd.f32 %v2360, %v2545
      %v2610 = vadd.f32 %v2361, %v2548
      %v2611 = vadd.f32 %v2362, %v2553
      %v2612 = vadd.f32 %v2363, %v2556
      %v2613 = vadd.f32 %v2364, %v2561
      %v2614 = vadd.f32 %v2365, %v2564
      %v2615 = vadd.f32 %v2366, %v2569
      %v2616 = vadd.f32 %v2367, %v2572
      %v2617 = vadd.f32 %v2368, %v2577
      %v2618 = vadd.f32 %v2369, %v2580
      %v2619 = vadd.f32 %v2370, %v2585
      %v2620 = vadd.f32 %v2371, %v2588
      %v2621 = vadd.f32 %v2372, %v2593
      %v2622 = vadd.f32 %v2373, %v2596
      %v2623 = vadd.f32 %v2374, %v2601
      %v2624 = vadd.f32 %v2375, %v2604
      %v2625 = vld [vmem:[#allocation2 + $0x10] sm:$0x8]
      %s2626 = scalar_lea.vmem %s3, 32
      %v2627 = vld [vmem:[%s2626] sm:$0xf]
      %v2629 = vunpack.c.l.b16 %v2625
      %v2630 = vpack.c.b16 %v2176, %v2629
      %vm2631 = vcmask 1044480
      %v2632 = vrot.slane %v2630, 3
      %v2633 = vrot.slane %v2195, 3
      %v2634 = vsel %vm2631, %v2632, %v2633
      %v2635 = vrot.slane %v2196, 3
      %v2636 = vsel %vm2631, %v2633, %v2635
      %v2637 = vrot.slane %v2197, 3
      %v2638 = vsel %vm2631, %v2635, %v2637
      %v2639 = vrot.slane %v2198, 3
      %v2640 = vsel %vm2631, %v2637, %v2639
      %v2641 = vrot.slane %v2199, 3
      %v2642 = vsel %vm2631, %v2639, %v2641
      %v2643 = vrot.slane %v2200, 3
      %v2644 = vsel %vm2631, %v2641, %v2643
      %v2645 = vrot.slane %v2201, 3
      %v2646 = vsel %vm2631, %v2643, %v2645
      %v2647 = vrot.slane %v2202, 3
      %v2648 = vsel %vm2631, %v2645, %v2647
      %v2649 = vrot.slane %v2381, 3
      %v2650 = vsel %vm2631, %v2647, %v2649
      %v2652 = vsel %vm1024, %v2634, 0
      %v2655 = vsel %vm1024, %v2636, 0
      %v2658 = vsel %vm1024, %v2638, 0
      %v2661 = vsel %vm1024, %v2640, 0
      %v2664 = vsel %vm1024, %v2642, 0
      %v2667 = vsel %vm1024, %v2644, 0
      %v2670 = vsel %vm1024, %v2646, 0
      %v2673 = vsel %vm1024, %v2648, 0
      %v2676 = vsel %vm1024, %v2650, 0
      %v2679 = vsel %vm1052, %v2627, 0
      %2681 = vmatprep.subr.bf16.mxu0 0
      %2682 = vmatpush1.bf16.msra.mxu0 %v2679
      %2683 = vmatprep.subr.bf16.mxu0 0
      %2684 = vmatpush1.bf16.msra.mxu0 0
      %2685 = vmatprep.subr.bf16.mxu0 0
      %2686 = vmatpush1.bf16.msra.mxu0 0
      %2687 = vmatprep.subr.bf16.mxu0 0
      %2688 = vmatpush1.bf16.msra.mxu0 0
      %2689 = vmatprep.subr.bf16.mxu0 0
      %2690 = vmatpush1.bf16.msra.mxu0 0
      %2691 = vmatprep.subr.bf16.mxu0 0
      %2692 = vmatpush1.bf16.msra.mxu0 0
      %2693 = vmatprep.subr.bf16.mxu0 0
      %2694 = vmatpush1.bf16.msra.mxu0 0
      %2695 = vmatprep.subr.bf16.mxu0 0
      %2696 = vmatpush1.bf16.msra.mxu0 0
      %2697 = vmatprep.subr.bf16.mxu0 0
      %2698 = vmatpush1.bf16.msra.mxu0 0
      %2699 = vmatprep.subr.bf16.mxu0 0
      %2700 = vmatpush1.bf16.msra.mxu0 0
      %2701 = vmatprep.subr.bf16.mxu0 0
      %2702 = vmatpush1.bf16.msra.mxu0 0
      %2703 = vmatprep.subr.bf16.mxu0 0
      %2704 = vmatpush1.bf16.msra.mxu0 0
      %2705 = vmatprep.subr.bf16.mxu0 0
      %2706 = vmatpush1.bf16.msra.mxu0 0
      %2707 = vmatprep.subr.bf16.mxu0 0
      %2708 = vmatpush1.bf16.msra.mxu0 0
      %2709 = vmatprep.subr.bf16.mxu0 0
      %2710 = vmatpush1.bf16.msra.mxu0 0
      %2711 = vmatprep.subr.bf16.mxu0 0
      %2712 = vmatpush1.bf16.msra.mxu0 0
      %2713 = vmatprep.mubr.bf16.mxu0 0
      %2714 = vmatmul.mubr.bf16.gmra.mrb[0].mxu0 %v2652
      %v2715 = vpop.f32.mrb[0].mxu0
      %v2716 = vadd.f32 0.0, %v2715
      %v2717 = vpop.f32.mrb[0].mxu0
      %v2718 = vpop.f32.mrb[0].mxu0
      %v2719 = vadd.f32 0.0, %v2718
      %v2720 = vpop.f32.mrb[0].mxu0
      %2721 = vmatprep.mubr.bf16.mxu0 0
      %2722 = vmatmul.mubr.bf16.gmra.mrb[0].mxu0 %v2655
      %v2723 = vpop.f32.mrb[0].mxu0
      %v2724 = vadd.f32 0.0, %v2723
      %v2725 = vpop.f32.mrb[0].mxu0
      %v2726 = vpop.f32.mrb[0].mxu0
      %v2727 = vadd.f32 0.0, %v2726
      %v2728 = vpop.f32.mrb[0].mxu0
      %2729 = vmatprep.mubr.bf16.mxu0 0
      %2730 = vmatmul.mubr.bf16.gmra.mrb[0].mxu0 %v2658
      %v2731 = vpop.f32.mrb[0].mxu0
      %v2732 = vadd.f32 0.0, %v2731
      %v2733 = vpop.f32.mrb[0].mxu0
      %v2734 = vpop.f32.mrb[0].mxu0
      %v2735 = vadd.f32 0.0, %v2734
      %v2736 = vpop.f32.mrb[0].mxu0
      %2737 = vmatprep.mubr.bf16.mxu0 0
      %2738 = vmatmul.mubr.bf16.gmra.mrb[0].mxu0 %v2661
      %v2739 = vpop.f32.mrb[0].mxu0
      %v2740 = vadd.f32 0.0, %v2739
      %v2741 = vpop.f32.mrb[0].mxu0
      %v2742 = vpop.f32.mrb[0].mxu0
      %v2743 = vadd.f32 0.0, %v2742
      %v2744 = vpop.f32.mrb[0].mxu0
      %2745 = vmatprep.mubr.bf16.mxu0 0
      %2746 = vmatmul.mubr.bf16.gmra.mrb[0].mxu0 %v2664
      %v2747 = vpop.f32.mrb[0].mxu0
      %v2748 = vadd.f32 0.0, %v2747
      %v2749 = vpop.f32.mrb[0].mxu0
      %v2750 = vpop.f32.mrb[0].mxu0
      %v2751 = vadd.f32 0.0, %v2750
      %v2752 = vpop.f32.mrb[0].mxu0
      %2753 = vmatprep.mubr.bf16.mxu0 0
      %2754 = vmatmul.mubr.bf16.gmra.mrb[0].mxu0 %v2667
      %v2755 = vpop.f32.mrb[0].mxu0
      %v2756 = vadd.f32 0.0, %v2755
      %v2757 = vpop.f32.mrb[0].mxu0
      %v2758 = vpop.f32.mrb[0].mxu0
      %v2759 = vadd.f32 0.0, %v2758
      %v2760 = vpop.f32.mrb[0].mxu0
      %2761 = vmatprep.mubr.bf16.mxu0 0
      %2762 = vmatmul.mubr.bf16.gmra.mrb[0].mxu0 %v2670
      %v2763 = vpop.f32.mrb[0].mxu0
      %v2764 = vadd.f32 0.0, %v2763
      %v2765 = vpop.f32.mrb[0].mxu0
      %v2766 = vpop.f32.mrb[0].mxu0
      %v2767 = vadd.f32 0.0, %v2766
      %v2768 = vpop.f32.mrb[0].mxu0
      %2769 = vmatprep.mubr.bf16.mxu0 0
      %2770 = vmatmul.mubr.bf16.gmra.mrb[0].mxu0 %v2673
      %v2771 = vpop.f32.mrb[0].mxu0
      %v2772 = vadd.f32 0.0, %v2771
      %v2773 = vpop.f32.mrb[0].mxu0
      %v2774 = vpop.f32.mrb[0].mxu0
      %v2775 = vadd.f32 0.0, %v2774
      %v2776 = vpop.f32.mrb[0].mxu0
      %2777 = vmatprep.mubr.bf16.mxu0 0
      %2778 = vmatmul.mubr.bf16.gmra.mrb[0].mxu0 %v2676
      %v2779 = vpop.f32.mrb[0].mxu0
      %v2780 = vadd.f32 0.0, %v2779
      %v2781 = vpop.f32.mrb[0].mxu0
      %v2782 = vpop.f32.mrb[0].mxu0
      %v2783 = vadd.f32 0.0, %v2782
      %v2784 = vpop.f32.mrb[0].mxu0
      %2785 = vdwg.mxu0
      %v2786 = vadd.f32 %v2607, %v2716
      %v2787 = vadd.f32 %v2608, %v2719
      %v2788 = vadd.f32 %v2609, %v2724
      %v2789 = vadd.f32 %v2610, %v2727
      %v2790 = vadd.f32 %v2611, %v2732
      %v2791 = vadd.f32 %v2612, %v2735
      %v2792 = vadd.f32 %v2613, %v2740
      %v2793 = vadd.f32 %v2614, %v2743
      %v2794 = vadd.f32 %v2615, %v2748
      %v2795 = vadd.f32 %v2616, %v2751
      %v2796 = vadd.f32 %v2617, %v2756
      %v2797 = vadd.f32 %v2618, %v2759
      %v2798 = vadd.f32 %v2619, %v2764
      %v2799 = vadd.f32 %v2620, %v2767
      %v2800 = vadd.f32 %v2621, %v2772
      %v2801 = vadd.f32 %v2622, %v2775
      %v2802 = vadd.f32 %v2623, %v2780
      %v2803 = vadd.f32 %v2624, %v2783
      %v2804 = vld [vmem:[%s4] sm:$0x1]
      %v2806 = vlaneseq
      %v2807 = vshrl.u32 %v2806, 7
      %v2808 = vsub.s32 0, %v2807
      %v2809 = vrot.slane %v2804, %v2808
      %v2811 = vadd.f32 %v2786, %v2809
      %v2812 = vadd.f32 %v2787, %v2809
      %v2813 = vadd.f32 %v2788, %v2809
      %v2814 = vadd.f32 %v2789, %v2809
      %v2815 = vadd.f32 %v2790, %v2809
      %v2816 = vadd.f32 %v2791, %v2809
      %v2817 = vadd.f32 %v2792, %v2809
      %v2818 = vadd.f32 %v2793, %v2809
      %v2819 = vadd.f32 %v2794, %v2809
      %v2820 = vadd.f32 %v2795, %v2809
      %v2821 = vadd.f32 %v2796, %v2809
      %v2822 = vadd.f32 %v2797, %v2809
      %v2823 = vadd.f32 %v2798, %v2809
      %v2824 = vadd.f32 %v2799, %v2809
      %v2825 = vadd.f32 %v2800, %v2809
      %v2826 = vadd.f32 %v2801, %v2809
      %v2827 = vadd.f32 %v2802, %v2809
      %v2828 = vadd.f32 %v2803, %v2809
      %v2847 = vcombine.high %v2811, %v2811
      %v2849 = vunpack.c.l.s4 1983009808
      %v2850 = vunpack.c.0.s8 %v2849
      %v2851 = vlaneseq
      %v2852 = vshrl.u32 %v2851, 7
      %v2853 = vsub.s32 %v2850, %v2852
      %v2854 = vrot.slane %v2811, %v2853
      %v2856 = vunpack.c.l.s4 1983009808
      %v2857 = vunpack.c.0.s8 %v2856
      %v2858 = vlaneseq
      %v2859 = vshrl.u32 %v2858, 7
      %v2860 = vsub.s32 %v2857, %v2859
      %v2861 = vrot.slane %v2847, %v2860
      %v2862 = vcombine.high %v2854, %v2854
      %v2863 = vcombine.high %v2861, %v2861
      %v2864 = vcombine.high %v2812, %v2812
      %v2866 = vunpack.c.l.s4 1983009808
      %v2867 = vunpack.c.0.s8 %v2866
      %v2868 = vlaneseq
      %v2869 = vshrl.u32 %v2868, 7
      %v2870 = vsub.s32 %v2867, %v2869
      %v2871 = vrot.slane %v2812, %v2870
      %v2873 = vunpack.c.l.s4 1983009808
      %v2874 = vunpack.c.0.s8 %v2873
      %v2875 = vlaneseq
      %v2876 = vshrl.u32 %v2875, 7
      %v2877 = vsub.s32 %v2874, %v2876
      %v2878 = vrot.slane %v2864, %v2877
      %v2879 = vcombine.high %v2871, %v2871
      %v2880 = vcombine.high %v2878, %v2878
      %v2881 = vcombine.high %v2813, %v2813
      %v2883 = vunpack.c.l.s4 1983009808
      %v2884 = vunpack.c.0.s8 %v2883
      %v2885 = vlaneseq
      %v2886 = vshrl.u32 %v2885, 7
      %v2887 = vsub.s32 %v2884, %v2886
      %v2888 = vrot.slane %v2813, %v2887
      %v2890 = vunpack.c.l.s4 1983009808
      %v2891 = vunpack.c.0.s8 %v2890
      %v2892 = vlaneseq
      %v2893 = vshrl.u32 %v2892, 7
      %v2894 = vsub.s32 %v2891, %v2893
      %v2895 = vrot.slane %v2881, %v2894
      %v2896 = vcombine.high %v2888, %v2888
      %v2897 = vcombine.high %v2895, %v2895
      %v2898 = vcombine.high %v2814, %v2814
      %v2900 = vunpack.c.l.s4 1983009808
      %v2901 = vunpack.c.0.s8 %v2900
      %v2902 = vlaneseq
      %v2903 = vshrl.u32 %v2902, 7
      %v2904 = vsub.s32 %v2901, %v2903
      %v2905 = vrot.slane %v2814, %v2904
      %v2907 = vunpack.c.l.s4 1983009808
      %v2908 = vunpack.c.0.s8 %v2907
      %v2909 = vlaneseq
      %v2910 = vshrl.u32 %v2909, 7
      %v2911 = vsub.s32 %v2908, %v2910
      %v2912 = vrot.slane %v2898, %v2911
      %v2913 = vcombine.high %v2905, %v2905
      %v2914 = vcombine.high %v2912, %v2912
      %v2915 = vcombine.high %v2815, %v2815
      %v2917 = vunpack.c.l.s4 1983009808
      %v2918 = vunpack.c.0.s8 %v2917
      %v2919 = vlaneseq
      %v2920 = vshrl.u32 %v2919, 7
      %v2921 = vsub.s32 %v2918, %v2920
      %v2922 = vrot.slane %v2815, %v2921
      %v2924 = vunpack.c.l.s4 1983009808
      %v2925 = vunpack.c.0.s8 %v2924
      %v2926 = vlaneseq
      %v2927 = vshrl.u32 %v2926, 7
      %v2928 = vsub.s32 %v2925, %v2927
      %v2929 = vrot.slane %v2915, %v2928
      %v2930 = vcombine.high %v2929, %v2929
      %v2931 = vcombine.high %v2816, %v2816
      %v2933 = vunpack.c.l.s4 1983009808
      %v2934 = vunpack.c.0.s8 %v2933
      %v2935 = vlaneseq
      %v2936 = vshrl.u32 %v2935, 7
      %v2937 = vsub.s32 %v2934, %v2936
      %v2938 = vrot.slane %v2816, %v2937
      %v2940 = vunpack.c.l.s4 1983009808
      %v2941 = vunpack.c.0.s8 %v2940
      %v2942 = vlaneseq
      %v2943 = vshrl.u32 %v2942, 7
      %v2944 = vsub.s32 %v2941, %v2943
      %v2945 = vrot.slane %v2931, %v2944
      %v2946 = vcombine.high %v2938, %v2938
      %v2947 = vcombine.high %v2945, %v2945
      %v2948 = vcombine.high %v2817, %v2817
      %v2950 = vunpack.c.l.s4 1983009808
      %v2951 = vunpack.c.0.s8 %v2950
      %v2952 = vlaneseq
      %v2953 = vshrl.u32 %v2952, 7
      %v2954 = vsub.s32 %v2951, %v2953
      %v2955 = vrot.slane %v2817, %v2954
      %v2957 = vunpack.c.l.s4 1983009808
      %v2958 = vunpack.c.0.s8 %v2957
      %v2959 = vlaneseq
      %v2960 = vshrl.u32 %v2959, 7
      %v2961 = vsub.s32 %v2958, %v2960
      %v2962 = vrot.slane %v2948, %v2961
      %v2963 = vcombine.high %v2955, %v2955
      %v2964 = vcombine.high %v2962, %v2962
      %v2965 = vcombine.high %v2818, %v2818
      %v2967 = vunpack.c.l.s4 1983009808
      %v2968 = vunpack.c.0.s8 %v2967
      %v2969 = vlaneseq
      %v2970 = vshrl.u32 %v2969, 7
      %v2971 = vsub.s32 %v2968, %v2970
      %v2972 = vrot.slane %v2818, %v2971
      %v2974 = vunpack.c.l.s4 1983009808
      %v2975 = vunpack.c.0.s8 %v2974
      %v2976 = vlaneseq
      %v2977 = vshrl.u32 %v2976, 7
      %v2978 = vsub.s32 %v2975, %v2977
      %v2979 = vrot.slane %v2965, %v2978
      %v2980 = vcombine.high %v2972, %v2972
      %v2981 = vcombine.high %v2979, %v2979
      %v2982 = vcombine.high %v2819, %v2819
      %v2984 = vunpack.c.l.s4 1983009808
      %v2985 = vunpack.c.0.s8 %v2984
      %v2986 = vlaneseq
      %v2987 = vshrl.u32 %v2986, 7
      %v2988 = vsub.s32 %v2985, %v2987
      %v2989 = vrot.slane %v2819, %v2988
      %v2991 = vunpack.c.l.s4 1983009808
      %v2992 = vunpack.c.0.s8 %v2991
      %v2993 = vlaneseq
      %v2994 = vshrl.u32 %v2993, 7
      %v2995 = vsub.s32 %v2992, %v2994
      %v2996 = vrot.slane %v2982, %v2995
      %v2997 = vcombine.high %v2989, %v2989
      %v2998 = vcombine.high %v2820, %v2820
      %v3000 = vunpack.c.l.s4 1983009808
      %v3001 = vunpack.c.0.s8 %v3000
      %v3002 = vlaneseq
      %v3003 = vshrl.u32 %v3002, 7
      %v3004 = vsub.s32 %v3001, %v3003
      %v3005 = vrot.slane %v2820, %v3004
      %v3007 = vunpack.c.l.s4 1983009808
      %v3008 = vunpack.c.0.s8 %v3007
      %v3009 = vlaneseq
      %v3010 = vshrl.u32 %v3009, 7
      %v3011 = vsub.s32 %v3008, %v3010
      %v3012 = vrot.slane %v2998, %v3011
      %v3013 = vcombine.high %v3005, %v3005
      %v3014 = vcombine.high %v3012, %v3012
      %v3015 = vcombine.high %v2821, %v2821
      %v3017 = vunpack.c.l.s4 1983009808
      %v3018 = vunpack.c.0.s8 %v3017
      %v3019 = vlaneseq
      %v3020 = vshrl.u32 %v3019, 7
      %v3021 = vsub.s32 %v3018, %v3020
      %v3022 = vrot.slane %v2821, %v3021
      %v3024 = vunpack.c.l.s4 1983009808
      %v3025 = vunpack.c.0.s8 %v3024
      %v3026 = vlaneseq
      %v3027 = vshrl.u32 %v3026, 7
      %v3028 = vsub.s32 %v3025, %v3027
      %v3029 = vrot.slane %v3015, %v3028
      %v3030 = vcombine.high %v3022, %v3022
      %v3031 = vcombine.high %v3029, %v3029
      %v3032 = vcombine.high %v2822, %v2822
      %v3034 = vunpack.c.l.s4 1983009808
      %v3035 = vunpack.c.0.s8 %v3034
      %v3036 = vlaneseq
      %v3037 = vshrl.u32 %v3036, 7
      %v3038 = vsub.s32 %v3035, %v3037
      %v3039 = vrot.slane %v2822, %v3038
      %v3041 = vunpack.c.l.s4 1983009808
      %v3042 = vunpack.c.0.s8 %v3041
      %v3043 = vlaneseq
      %v3044 = vshrl.u32 %v3043, 7
      %v3045 = vsub.s32 %v3042, %v3044
      %v3046 = vrot.slane %v3032, %v3045
      %v3047 = vcombine.high %v3039, %v3039
      %v3048 = vcombine.high %v3046, %v3046
      %v3049 = vcombine.high %v2823, %v2823
      %v3051 = vunpack.c.l.s4 1983009808
      %v3052 = vunpack.c.0.s8 %v3051
      %v3053 = vlaneseq
      %v3054 = vshrl.u32 %v3053, 7
      %v3055 = vsub.s32 %v3052, %v3054
      %v3056 = vrot.slane %v2823, %v3055
      %v3058 = vunpack.c.l.s4 1983009808
      %v3059 = vunpack.c.0.s8 %v3058
      %v3060 = vlaneseq
      %v3061 = vshrl.u32 %v3060, 7
      %v3062 = vsub.s32 %v3059, %v3061
      %v3063 = vrot.slane %v3049, %v3062
      %v3064 = vcombine.high %v3056, %v3056
      %v3065 = vcombine.high %v3063, %v3063
      %v3066 = vcombine.high %v2824, %v2824
      %v3068 = vunpack.c.l.s4 1983009808
      %v3069 = vunpack.c.0.s8 %v3068
      %v3070 = vlaneseq
      %v3071 = vshrl.u32 %v3070, 7
      %v3072 = vsub.s32 %v3069, %v3071
      %v3073 = vrot.slane %v2824, %v3072
      %v3075 = vunpack.c.l.s4 1983009808
      %v3076 = vunpack.c.0.s8 %v3075
      %v3077 = vlaneseq
      %v3078 = vshrl.u32 %v3077, 7
      %v3079 = vsub.s32 %v3076, %v3078
      %v3080 = vrot.slane %v3066, %v3079
      %v3081 = vcombine.high %v3080, %v3080
      %v3082 = vcombine.high %v2825, %v2825
      %v3084 = vunpack.c.l.s4 1983009808
      %v3085 = vunpack.c.0.s8 %v3084
      %v3086 = vlaneseq
      %v3087 = vshrl.u32 %v3086, 7
      %v3088 = vsub.s32 %v3085, %v3087
      %v3089 = vrot.slane %v2825, %v3088
      %v3091 = vunpack.c.l.s4 1983009808
      %v3092 = vunpack.c.0.s8 %v3091
      %v3093 = vlaneseq
      %v3094 = vshrl.u32 %v3093, 7
      %v3095 = vsub.s32 %v3092, %v3094
      %v3096 = vrot.slane %v3082, %v3095
      %v3097 = vcombine.high %v3089, %v3089
      %v3098 = vcombine.high %v3096, %v3096
      %v3099 = vcombine.high %v2826, %v2826
      %v3101 = vunpack.c.l.s4 1983009808
      %v3102 = vunpack.c.0.s8 %v3101
      %v3103 = vlaneseq
      %v3104 = vshrl.u32 %v3103, 7
      %v3105 = vsub.s32 %v3102, %v3104
      %v3106 = vrot.slane %v2826, %v3105
      %v3108 = vunpack.c.l.s4 1983009808
      %v3109 = vunpack.c.0.s8 %v3108
      %v3110 = vlaneseq
      %v3111 = vshrl.u32 %v3110, 7
      %v3112 = vsub.s32 %v3109, %v3111
      %v3113 = vrot.slane %v3099, %v3112
      %v3114 = vcombine.high %v3106, %v3106
      %v3115 = vcombine.high %v3113, %v3113
      %v3116 = vcombine.high %v2827, %v2827
      %v3118 = vunpack.c.l.s4 1983009808
      %v3119 = vunpack.c.0.s8 %v3118
      %v3120 = vlaneseq
      %v3121 = vshrl.u32 %v3120, 7
      %v3122 = vsub.s32 %v3119, %v3121
      %v3123 = vrot.slane %v2827, %v3122
      %v3125 = vunpack.c.l.s4 1983009808
      %v3126 = vunpack.c.0.s8 %v3125
      %v3127 = vlaneseq
      %v3128 = vshrl.u32 %v3127, 7
      %v3129 = vsub.s32 %v3126, %v3128
      %v3130 = vrot.slane %v3116, %v3129
      %v3131 = vcombine.high %v3123, %v3123
      %v3132 = vcombine.high %v3130, %v3130
      %v3133 = vcombine.high %v2828, %v2828
      %v3135 = vunpack.c.l.s4 1983009808
      %v3136 = vunpack.c.0.s8 %v3135
      %v3137 = vlaneseq
      %v3138 = vshrl.u32 %v3137, 7
      %v3139 = vsub.s32 %v3136, %v3138
      %v3140 = vrot.slane %v2828, %v3139
      %v3142 = vunpack.c.l.s4 1983009808
      %v3143 = vunpack.c.0.s8 %v3142
      %v3144 = vlaneseq
      %v3145 = vshrl.u32 %v3144, 7
      %v3146 = vsub.s32 %v3143, %v3145
      %v3147 = vrot.slane %v3133, %v3146
      %v3148 = vcombine.high %v3140, %v3140
      %v3149 = vcombine.low %v2854, %v2862
      %v3150 = vcombine.low %v2861, %v2863
      %v3152 = vunpack.c.l.s4 1983009808
      %v3153 = vunpack.c.0.s8 %v3152
      %v3154 = vlaneseq
      %v3155 = vshrl.u32 %v3154, 7
      %v3156 = vsub.s32 %v3153, %v3155
      %v3157 = vrot.slane %v3149, %v3156
      %v3159 = vunpack.c.l.s4 1983009808
      %v3160 = vunpack.c.0.s8 %v3159
      %v3161 = vlaneseq
      %v3162 = vshrl.u32 %v3161, 7
      %v3163 = vsub.s32 %v3160, %v3162
      %v3164 = vrot.slane %v3150, %v3163
      %v3165 = vcombine.low %v3157, %v3164
      %v3166 = vcombine.low %v2871, %v2879
      %v3167 = vcombine.low %v2878, %v2880
      %v3169 = vunpack.c.l.s4 1983009808
      %v3170 = vunpack.c.0.s8 %v3169
      %v3171 = vlaneseq
      %v3172 = vshrl.u32 %v3171, 7
      %v3173 = vsub.s32 %v3170, %v3172
      %v3174 = vrot.slane %v3166, %v3173
      %v3176 = vunpack.c.l.s4 1983009808
      %v3177 = vunpack.c.0.s8 %v3176
      %v3178 = vlaneseq
      %v3179 = vshrl.u32 %v3178, 7
      %v3180 = vsub.s32 %v3177, %v3179
      %v3181 = vrot.slane %v3167, %v3180
      %v3182 = vcombine.low %v3174, %v3181
      %v3183 = vcombine.low %v2896, %v2895
      %v3184 = vcombine.low %v2897, %v2905
      %v3186 = vunpack.c.l.s4 1983009808
      %v3187 = vunpack.c.0.s8 %v3186
      %v3188 = vlaneseq
      %v3189 = vshrl.u32 %v3188, 7
      %v3190 = vsub.s32 %v3187, %v3189
      %v3191 = vrot.slane %v3183, %v3190
      %v3193 = vunpack.c.l.s4 1983009808
      %v3194 = vunpack.c.0.s8 %v3193
      %v3195 = vlaneseq
      %v3196 = vshrl.u32 %v3195, 7
      %v3197 = vsub.s32 %v3194, %v3196
      %v3198 = vrot.slane %v3184, %v3197
      %v3199 = vcombine.low %v3191, %v3198
      %v3200 = vcombine.low %v2913, %v2912
      %v3201 = vcombine.low %v2914, %v2922
      %v3203 = vunpack.c.l.s4 1983009808
      %v3204 = vunpack.c.0.s8 %v3203
      %v3205 = vlaneseq
      %v3206 = vshrl.u32 %v3205, 7
      %v3207 = vsub.s32 %v3204, %v3206
      %v3208 = vrot.slane %v3200, %v3207
      %v3210 = vunpack.c.l.s4 1983009808
      %v3211 = vunpack.c.0.s8 %v3210
      %v3212 = vlaneseq
      %v3213 = vshrl.u32 %v3212, 7
      %v3214 = vsub.s32 %v3211, %v3213
      %v3215 = vrot.slane %v3201, %v3214
      %v3216 = vcombine.low %v3208, %v3215
      %v3217 = vcombine.low %v2929, %v2930
      %v3218 = vcombine.low %v2938, %v2946
      %v3220 = vunpack.c.l.s4 1983009808
      %v3221 = vunpack.c.0.s8 %v3220
      %v3222 = vlaneseq
      %v3223 = vshrl.u32 %v3222, 7
      %v3224 = vsub.s32 %v3221, %v3223
      %v3225 = vrot.slane %v3217, %v3224
      %v3227 = vunpack.c.l.s4 1983009808
      %v3228 = vunpack.c.0.s8 %v3227
      %v3229 = vlaneseq
      %v3230 = vshrl.u32 %v3229, 7
      %v3231 = vsub.s32 %v3228, %v3230
      %v3232 = vrot.slane %v3218, %v3231
      %v3233 = vcombine.low %v3225, %v3232
      %v3234 = vcombine.low %v2945, %v2947
      %v3235 = vcombine.low %v2955, %v2963
      %v3237 = vunpack.c.l.s4 1983009808
      %v3238 = vunpack.c.0.s8 %v3237
      %v3239 = vlaneseq
      %v3240 = vshrl.u32 %v3239, 7
      %v3241 = vsub.s32 %v3238, %v3240
      %v3242 = vrot.slane %v3234, %v3241
      %v3244 = vunpack.c.l.s4 1983009808
      %v3245 = vunpack.c.0.s8 %v3244
      %v3246 = vlaneseq
      %v3247 = vshrl.u32 %v3246, 7
      %v3248 = vsub.s32 %v3245, %v3247
      %v3249 = vrot.slane %v3235, %v3248
      %v3250 = vcombine.low %v3242, %v3249
      %v3251 = vcombine.low %v2964, %v2972
      %v3252 = vcombine.low %v2980, %v2979
      %v3254 = vunpack.c.l.s4 1983009808
      %v3255 = vunpack.c.0.s8 %v3254
      %v3256 = vlaneseq
      %v3257 = vshrl.u32 %v3256, 7
      %v3258 = vsub.s32 %v3255, %v3257
      %v3259 = vrot.slane %v3251, %v3258
      %v3261 = vunpack.c.l.s4 1983009808
      %v3262 = vunpack.c.0.s8 %v3261
      %v3263 = vlaneseq
      %v3264 = vshrl.u32 %v3263, 7
      %v3265 = vsub.s32 %v3262, %v3264
      %v3266 = vrot.slane %v3252, %v3265
      %v3267 = vcombine.low %v3259, %v3266
      %v3268 = vcombine.low %v2981, %v2989
      %v3269 = vcombine.low %v2997, %v2996
      %v3271 = vunpack.c.l.s4 1983009808
      %v3272 = vunpack.c.0.s8 %v3271
      %v3273 = vlaneseq
      %v3274 = vshrl.u32 %v3273, 7
      %v3275 = vsub.s32 %v3272, %v3274
      %v3276 = vrot.slane %v3268, %v3275
      %v3278 = vunpack.c.l.s4 1983009808
      %v3279 = vunpack.c.0.s8 %v3278
      %v3280 = vlaneseq
      %v3281 = vshrl.u32 %v3280, 7
      %v3282 = vsub.s32 %v3279, %v3281
      %v3283 = vrot.slane %v3269, %v3282
      %v3284 = vcombine.low %v3276, %v3283
      %v3285 = vcombine.low %v3005, %v3013
      %v3286 = vcombine.low %v3012, %v3014
      %v3288 = vunpack.c.l.s4 1983009808
      %v3289 = vunpack.c.0.s8 %v3288
      %v3290 = vlaneseq
      %v3291 = vshrl.u32 %v3290, 7
      %v3292 = vsub.s32 %v3289, %v3291
      %v3293 = vrot.slane %v3285, %v3292
      %v3295 = vunpack.c.l.s4 1983009808
      %v3296 = vunpack.c.0.s8 %v3295
      %v3297 = vlaneseq
      %v3298 = vshrl.u32 %v3297, 7
      %v3299 = vsub.s32 %v3296, %v3298
      %v3300 = vrot.slane %v3286, %v3299
      %v3301 = vcombine.low %v3293, %v3300
      %v3302 = vcombine.low %v3022, %v3030
      %v3303 = vcombine.low %v3029, %v3031
      %v3305 = vunpack.c.l.s4 1983009808
      %v3306 = vunpack.c.0.s8 %v3305
      %v3307 = vlaneseq
      %v3308 = vshrl.u32 %v3307, 7
      %v3309 = vsub.s32 %v3306, %v3308
      %v3310 = vrot.slane %v3302, %v3309
      %v3312 = vunpack.c.l.s4 1983009808
      %v3313 = vunpack.c.0.s8 %v3312
      %v3314 = vlaneseq
      %v3315 = vshrl.u32 %v3314, 7
      %v3316 = vsub.s32 %v3313, %v3315
      %v3317 = vrot.slane %v3303, %v3316
      %v3318 = vcombine.low %v3310, %v3317
      %v3319 = vcombine.low %v3047, %v3046
      %v3320 = vcombine.low %v3048, %v3056
      %v3322 = vunpack.c.l.s4 1983009808
      %v3323 = vunpack.c.0.s8 %v3322
      %v3324 = vlaneseq
      %v3325 = vshrl.u32 %v3324, 7
      %v3326 = vsub.s32 %v3323, %v3325
      %v3327 = vrot.slane %v3319, %v3326
      %v3329 = vunpack.c.l.s4 1983009808
      %v3330 = vunpack.c.0.s8 %v3329
      %v3331 = vlaneseq
      %v3332 = vshrl.u32 %v3331, 7
      %v3333 = vsub.s32 %v3330, %v3332
      %v3334 = vrot.slane %v3320, %v3333
      %v3335 = vcombine.low %v3327, %v3334
      %v3336 = vcombine.low %v3064, %v3063
      %v3337 = vcombine.low %v3065, %v3073
      %v3339 = vunpack.c.l.s4 1983009808
      %v3340 = vunpack.c.0.s8 %v3339
      %v3341 = vlaneseq
      %v3342 = vshrl.u32 %v3341, 7
      %v3343 = vsub.s32 %v3340, %v3342
      %v3344 = vrot.slane %v3336, %v3343
      %v3346 = vunpack.c.l.s4 1983009808
      %v3347 = vunpack.c.0.s8 %v3346
      %v3348 = vlaneseq
      %v3349 = vshrl.u32 %v3348, 7
      %v3350 = vsub.s32 %v3347, %v3349
      %v3351 = vrot.slane %v3337, %v3350
      %v3352 = vcombine.low %v3344, %v3351
      %v3353 = vcombine.low %v3080, %v3081
      %v3354 = vcombine.low %v3089, %v3097
      %v3356 = vunpack.c.l.s4 1983009808
      %v3357 = vunpack.c.0.s8 %v3356
      %v3358 = vlaneseq
      %v3359 = vshrl.u32 %v3358, 7
      %v3360 = vsub.s32 %v3357, %v3359
      %v3361 = vrot.slane %v3353, %v3360
      %v3363 = vunpack.c.l.s4 1983009808
      %v3364 = vunpack.c.0.s8 %v3363
      %v3365 = vlaneseq
      %v3366 = vshrl.u32 %v3365, 7
      %v3367 = vsub.s32 %v3364, %v3366
      %v3368 = vrot.slane %v3354, %v3367
      %v3369 = vcombine.low %v3361, %v3368
      %v3370 = vcombine.low %v3096, %v3098
      %v3371 = vcombine.low %v3106, %v3114
      %v3373 = vunpack.c.l.s4 1983009808
      %v3374 = vunpack.c.0.s8 %v3373
      %v3375 = vlaneseq
      %v3376 = vshrl.u32 %v3375, 7
      %v3377 = vsub.s32 %v3374, %v3376
      %v3378 = vrot.slane %v3370, %v3377
      %v3380 = vunpack.c.l.s4 1983009808
      %v3381 = vunpack.c.0.s8 %v3380
      %v3382 = vlaneseq
      %v3383 = vshrl.u32 %v3382, 7
      %v3384 = vsub.s32 %v3381, %v3383
      %v3385 = vrot.slane %v3371, %v3384
      %v3386 = vcombine.low %v3378, %v3385
      %v3387 = vcombine.low %v3115, %v3123
      %v3388 = vcombine.low %v3131, %v3130
      %v3390 = vunpack.c.l.s4 1983009808
      %v3391 = vunpack.c.0.s8 %v3390
      %v3392 = vlaneseq
      %v3393 = vshrl.u32 %v3392, 7
      %v3394 = vsub.s32 %v3391, %v3393
      %v3395 = vrot.slane %v3387, %v3394
      %v3397 = vunpack.c.l.s4 1983009808
      %v3398 = vunpack.c.0.s8 %v3397
      %v3399 = vlaneseq
      %v3400 = vshrl.u32 %v3399, 7
      %v3401 = vsub.s32 %v3398, %v3400
      %v3402 = vrot.slane %v3388, %v3401
      %v3403 = vcombine.low %v3395, %v3402
      %v3404 = vcombine.low %v3132, %v3140
      %v3405 = vcombine.low %v3148, %v3147
      %v3407 = vunpack.c.l.s4 1983009808
      %v3408 = vunpack.c.0.s8 %v3407
      %v3409 = vlaneseq
      %v3410 = vshrl.u32 %v3409, 7
      %v3411 = vsub.s32 %v3408, %v3410
      %v3412 = vrot.slane %v3404, %v3411
      %v3414 = vunpack.c.l.s4 1983009808
      %v3415 = vunpack.c.0.s8 %v3414
      %v3416 = vlaneseq
      %v3417 = vshrl.u32 %v3416, 7
      %v3418 = vsub.s32 %v3415, %v3417
      %v3419 = vrot.slane %v3405, %v3418
      %v3420 = vcombine.low %v3412, %v3419
      %vm3437 = vcmask 31744
      %3438 = vst.msk [vmem:[%s433] sm:$0xff] %vm3437, %v3165
      %3439 = vst.msk [vmem:[%s433 + $0x8] sm:$0xff] %vm3437, %v3182
      %3440 = vst.msk [vmem:[%s433 + $0x10] sm:$0xff] %vm3437, %v3199
      %3441 = vst.msk [vmem:[%s433 + $0x18] sm:$0xff] %vm3437, %v3216
      %3442 = vst.msk [vmem:[%s433 + $0x20] sm:$0xff] %vm3437, %v3233
      %3443 = vst.msk [vmem:[%s433 + $0x28] sm:$0xff] %vm3437, %v3250
      %3444 = vst.msk [vmem:[%s433 + $0x30] sm:$0xff] %vm3437, %v3267
      %3445 = vst.msk [vmem:[%s433 + $0x38] sm:$0xff] %vm3437, %v3284
      %3446 = vst.msk [vmem:[%s433 + $0x40] sm:$0xff] %vm3437, %v3301
      %3447 = vst.msk [vmem:[%s433 + $0x48] sm:$0xff] %vm3437, %v3318
      %3448 = vst.msk [vmem:[%s433 + $0x50] sm:$0xff] %vm3437, %v3335
      %3449 = vst.msk [vmem:[%s433 + $0x58] sm:$0xff] %vm3437, %v3352
      %3450 = vst.msk [vmem:[%s433 + $0x60] sm:$0xff] %vm3437, %v3369
      %3451 = vst.msk [vmem:[%s433 + $0x68] sm:$0xff] %vm3437, %v3386
      %3452 = vst.msk [vmem:[%s433 + $0x70] sm:$0xff] %vm3437, %v3403
      %3453 = vst.msk [vmem:[%s433 + $0x78] sm:$0xff] %vm3437, %v3420
      %3454 = vrot.lane.b32.xlu0 %v3165, 124
      %v3455 = vpop.permute.xlu0 %3454
      %3456 = vrot.lane.b32.xlu0 %v3182, 124
      %v3457 = vpop.permute.xlu0 %3456
      %3458 = vrot.lane.b32.xlu0 %v3199, 124
      %v3459 = vpop.permute.xlu0 %3458
      %3460 = vrot.lane.b32.xlu0 %v3216, 124
      %v3461 = vpop.permute.xlu0 %3460
      %3462 = vrot.lane.b32.xlu0 %v3233, 124
      %v3463 = vpop.permute.xlu0 %3462
      %3464 = vrot.lane.b32.xlu0 %v3250, 124
      %v3465 = vpop.permute.xlu0 %3464
      %3466 = vrot.lane.b32.xlu0 %v3267, 124
      %v3467 = vpop.permute.xlu0 %3466
      %3468 = vrot.lane.b32.xlu0 %v3284, 124
      %v3469 = vpop.permute.xlu0 %3468
      %3470 = vrot.lane.b32.xlu0 %v3301, 124
      %v3471 = vpop.permute.xlu0 %3470
      %3472 = vrot.lane.b32.xlu0 %v3318, 124
      %v3473 = vpop.permute.xlu0 %3472
      %3474 = vrot.lane.b32.xlu0 %v3335, 124
      %v3475 = vpop.permute.xlu0 %3474
      %3476 = vrot.lane.b32.xlu0 %v3352, 124
      %v3477 = vpop.permute.xlu0 %3476
      %3478 = vrot.lane.b32.xlu0 %v3369, 124
      %v3479 = vpop.permute.xlu0 %3478
      %3480 = vrot.lane.b32.xlu0 %v3386, 124
      %v3481 = vpop.permute.xlu0 %3480
      %3482 = vrot.lane.b32.xlu0 %v3403, 124
      %v3483 = vpop.permute.xlu0 %3482
      %3484 = vrot.lane.b32.xlu0 %v3420, 124
      %v3485 = vpop.permute.xlu0 %3484
      %3502 = vst.msk [vmem:[%s444] sm:$0xff] %vm1024, %v3455
      %3503 = vst.msk [vmem:[%s444 + $0x8] sm:$0xff] %vm1024, %v3457
      %3504 = vst.msk [vmem:[%s444 + $0x10] sm:$0xff] %vm1024, %v3459
      %3505 = vst.msk [vmem:[%s444 + $0x18] sm:$0xff] %vm1024, %v3461
      %3506 = vst.msk [vmem:[%s444 + $0x20] sm:$0xff] %vm1024, %v3463
      %3507 = vst.msk [vmem:[%s444 + $0x28] sm:$0xff] %vm1024, %v3465
      %3508 = vst.msk [vmem:[%s444 + $0x30] sm:$0xff] %vm1024, %v3467
      %3509 = vst.msk [vmem:[%s444 + $0x38] sm:$0xff] %vm1024, %v3469
      %3510 = vst.msk [vmem:[%s444 + $0x40] sm:$0xff] %vm1024, %v3471
      %3511 = vst.msk [vmem:[%s444 + $0x48] sm:$0xff] %vm1024, %v3473
      %3512 = vst.msk [vmem:[%s444 + $0x50] sm:$0xff] %vm1024, %v3475
      %3513 = vst.msk [vmem:[%s444 + $0x58] sm:$0xff] %vm1024, %v3477
      %3514 = vst.msk [vmem:[%s444 + $0x60] sm:$0xff] %vm1024, %v3479
      %3515 = vst.msk [vmem:[%s444 + $0x68] sm:$0xff] %vm1024, %v3481
      %3516 = vst.msk [vmem:[%s444 + $0x70] sm:$0xff] %vm1024, %v3483
      %3517 = vst.msk [vmem:[%s444 + $0x78] sm:$0xff] %vm1024, %v3485
      %s3518 = smul.u32 8, %s23
      %p3519 = scmp.lt.s32.totalorder %s22, 1
      %s3520 = scalar_select %p3519, %s22, 1
      %p3521 = scmp.lt.s32.totalorder %s3518, 15
      %s3522 = scalar_select %p3521, %s3518, 15
      %s3523 = smul.addr %s3522, 2
      %s3524 = smul.addr %s3520, 32
      %s3525 = sadd.s32 %s3523, %s3524
      %s3526 = smul.addr %s3525, 8
      %s3527 = scalar_lea.vmem %s5, %s3526
      %s3528 = smul.u32 8, %s23
      %p3529 = scmp.lt.s32.totalorder %s22, 1
      %s3530 = scalar_select %p3529, %s22, 1
      %p3531 = scmp.lt.s32.totalorder %s3528, 15
      %s3532 = scalar_select %p3531, %s3528, 15
      %s3533 = smul.addr %s3532, 2
      %s3534 = smul.addr %s3530, 32
      %s3535 = sadd.s32 %s3533, %s3534
      %s3536 = smul.addr %s3535, 8
      %s3537 = scalar_lea.vmem %s6, %s3536
      // Predicated region
      $region49: #{key_value_forward.1} parent=39 // pred_check
        %p3538 = pneg %p192
      $region50: #{key_value_forward.1} parent=39 // pred_check_branch
        %3540 = sbr.rel (%p3538) target = $region52
      $region51: #{key_value_forward.1} parent=39 // pred_region
        %s3541 = smul.u32 8, %s23
      $region52: #{key_value_forward.1} parent=39 // pred_fallthru
        _
      // Predicated region
      $region53: #{key_value_forward.1} parent=39 // pred_check
        %p3542 = pneg %p220
      $region54: #{key_value_forward.1} parent=39 // pred_check_branch
        %3544 = sbr.rel (%p3542) target = $region56
      $region55: #{key_value_forward.1} parent=39 // pred_region
        %s3545 = smul.u32 8, %s23
      $region56: #{key_value_forward.1} parent=39 // pred_fallthru
        _
    $region40: #{key_value_forward.1} parent=5 // pred_fallthru
      _
    %p3546 = scmp.le.s32.totalorder 2, %s13
    // Predicated region
    $region57: #{key_value_forward.1} parent=5 // pred_check
      %p3547 = pneg %p3546
    $region58: #{key_value_forward.1} parent=5 // pred_check_branch
      %3549 = sbr.rel (%p3547) target = $region60
    $region59: #{key_value_forward.1} parent=5 // pred_region
      %s3550 = ssub.s32 %s13, 2
      // Predicated region
      $region61: #{key_value_forward.1} parent=59 // pred_check
        %p3551 = pneg %p198
      $region62: #{key_value_forward.1} parent=59 // pred_check_branch
        %3553 = sbr.rel (%p3551) target = $region64
      $region63: #{key_value_forward.1} parent=59 // pred_region
        %s3554 = smul.u32 8, %s25
        %p3555 = scmp.lt.s32.totalorder %s24, 1
        %s3556 = scalar_select %p3555, %s24, 1
        %p3557 = scmp.lt.s32.totalorder %s3554, 15
        %s3558 = scalar_select %p3557, %s3554, 15
        %s3559 = smul.addr %s3558, 2
        %s3560 = smul.addr %s3556, 32
        %s3561 = sadd.s32 %s3559, %s3560
        %s3562 = smul.addr %s3561, 8
        %s3563 = scalar_lea.vmem %s5, %s3562
      $region64: #{key_value_forward.1} parent=59 // pred_fallthru
        _
      // Predicated region
      $region65: #{key_value_forward.1} parent=59 // pred_check
        %p3564 = pneg %p226
      $region66: #{key_value_forward.1} parent=59 // pred_check_branch
        %3566 = sbr.rel (%p3564) target = $region68
      $region67: #{key_value_forward.1} parent=59 // pred_region
        %s3567 = smul.u32 8, %s25
        %p3568 = scmp.lt.s32.totalorder %s24, 1
        %s3569 = scalar_select %p3568, %s24, 1
        %p3570 = scmp.lt.s32.totalorder %s3567, 15
        %s3571 = scalar_select %p3570, %s3567, 15
        %s3572 = smul.addr %s3571, 2
        %s3573 = smul.addr %s3569, 32
        %s3574 = sadd.s32 %s3572, %s3573
        %s3575 = smul.addr %s3574, 8
        %s3576 = scalar_lea.vmem %s6, %s3575
      $region68: #{key_value_forward.1} parent=59 // pred_fallthru
        _
    $region60: #{key_value_forward.1} parent=5 // pred_fallthru
      _
  $region6: #{key_value_forward.1} parent=0 // loop_footer
    %s17 = sadd.s32 1, %s13
  $region7: #{key_value_forward.1} parent=0 // loop_footer_branch
    %12 = sbr.rel target = $region3
  $region8: #{key_value_forward.1} parent=0 // loop_exit
    _

</llo_original>
